<compile_context>
chip_gen: v7x
topology: tpu7x:2x2x1
jax: 0.10.0
libtpu: 0.0.40
codegen_flags: <defaults>
</compile_context>

<pallas_src>
import jax
import jax.numpy as jnp
import numpy as np
from jax.experimental import pallas as pl
from jax.experimental.pallas import tpu as pltpu

FMAX = float(jnp.finfo(jnp.float32).max)
NEG_SLOPE = 0.01  # LeakyReLU slope used by the module (lrelu_keras)


def _leaky_relu(x):
    return jnp.where(x >= 0, x, NEG_SLOPE * x)


def make_residual_block_kernel(*, first, add_attention, downsample,
                               Cin, Cout, Cmid, L, BT, col):
    """col: static dict mapping small-parameter name -> column in the packed matrix."""
    N = BT * L
    K1 = 3 * Cin
    K2 = 3 * Cout + (Cin if downsample else 0)
    f32 = jnp.float32

    def kernel(*refs):
        i = 0
        x_ref = refs[i]; i += 1
        if add_attention:
            fc1_w_ref = refs[i]; i += 1
            fc2_w_ref = refs[i]; i += 1
        w1_ref = refs[i]; i += 1
        w2_ref = refs[i]; i += 1
        sm_ref = refs[i]; i += 1
        out_ref = refs[i]; i += 1
        rhs_ref = refs[i]                     # persistent VMEM scratch (Rrhs, N)

        x = x_ref[...]                        # (Cin, N)  f32, BT elements side by side
        sm = sm_ref[...]                      # packed small params (Rsm, ncols)

        # ---- hoisted per-invocation lane bookkeeping (single iota, masks reused) ----
        lane = jax.lax.broadcasted_iota(jnp.int32, (1, N), 1)
        pos = lane % L                         # position inside each length-L segment
        shifts = (-3, -2, -1, 1, 2, 3) if add_attention else (-1, 1)
        mask = {d: ((pos + d >= 0) & (pos + d <= L - 1)).astype(f32) for d in shifts}

        out = x

        if add_attention:
            # ---------------- ChannelAttention1D (stats over L, per element) --------
            fc1_b = sm[0:Cmid, col['fc1_b']:col['fc1_b'] + 1]
            fc2_b = sm[0:Cin, col['fc2_b']:col['fc2_b'] + 1]
            feat_cols = []
            for t in range(BT):                               # unrolled, tiny reduces
                xs = x[:, t * L:(t + 1) * L]                  # (Cin, L)
                mean = jnp.sum(xs, axis=1, keepdims=True) * (1.0 / L)
                cen = xs - mean                               # two-pass variance
                var = jnp.sum(cen * cen, axis=1, keepdims=True) * (1.0 / (L - 1))
                std = jnp.maximum(jnp.sqrt(jnp.maximum(var, 0.0)), 1e-10)
                mx = jnp.max(xs, axis=1, keepdims=True)
                feat_cols.append(jnp.concatenate([mean, std, mx], axis=0))  # (3Cin,1)
            feat = jnp.concatenate(feat_cols, axis=1)         # (3*Cin, BT)
            h = jnp.dot(fc1_w_ref[...], feat, preferred_element_type=f32) + fc1_b
            h = jnp.maximum(h, 0.0)
            ca = jnp.dot(fc2_w_ref[...], h, preferred_element_type=f32) + fc2_b
            ca = jnp.maximum(jax.nn.sigmoid(ca), 1e-6)        # (Cin, BT)
            out = jnp.concatenate(
                [x[:, t * L:(t + 1) * L] * ca[:, t:t + 1] for t in range(BT)], axis=1)

            # ---------------- SpatialAttention1D (stats over C + k=7 conv) ----------
            cmean = jnp.sum(out, axis=0, keepdims=True) * (1.0 / Cin)      # (1, N)
            ccen = out - cmean                                # two-pass variance
            cvar = jnp.sum(ccen * ccen, axis=0, keepdims=True) * (1.0 / (Cin - 1))
            cstd = jnp.maximum(jnp.sqrt(jnp.maximum(cvar, 0.0)), 1e-10)
            cmx = jnp.max(out, axis=0, keepdims=True)
            sp = jnp.concatenate([cmean, cstd, cmx], axis=0)               # (3, N)
            acc3 = sm[0:3, col['sa_w'] + 3:col['sa_w'] + 4] * sp           # d = 0 tap
            for k in range(7):                                # unrolled, XLU rolls
                d = k - 3
                if d == 0:
                    continue
                tap = sm[0:3, col['sa_w'] + k:col['sa_w'] + k + 1]         # (3, 1)
                acc3 = acc3 + tap * (mask[d] * pltpu.roll(sp, shift=(-d) % N, axis=1))
            sa = jnp.sum(acc3, axis=0, keepdims=True)                      # (1, N)
            sa = jnp.maximum(jax.nn.sigmoid(sa), 1e-6)
            out = out * sa

        if not first:
            # folded BatchNorm1d (eval) + LeakyReLU(0.01)
            out = out * sm[0:Cin, col['bn1_s']:col['bn1_s'] + 1] \
                  + sm[0:Cin, col['bn1_o']:col['bn1_o'] + 1]
            out = _leaky_relu(out)

        # conv1 (k=3, p=1, BN2 folded) -> one wide MXU matmul, RHS built in scratch
        rhs_ref[0:Cin, :] = mask[-1] * pltpu.roll(out, shift=1, axis=1)       # x[l-1]
        rhs_ref[Cin:2 * Cin, :] = out                                         # x[l]
        rhs_ref[2 * Cin:3 * Cin, :] = mask[1] * pltpu.roll(out, shift=N - 1, axis=1)
        y = jnp.dot(w1_ref[...], rhs_ref[0:K1, :], preferred_element_type=f32) \
            + sm[0:Cout, col['b1']:col['b1'] + 1]
        y = _leaky_relu(y)

        # conv2 (k=3, p=1) fused with the 1x1 downsample -> one wide MXU matmul
        rhs_ref[0:Cout, :] = mask[-1] * pltpu.roll(y, shift=1, axis=1)
        rhs_ref[Cout:2 * Cout, :] = y
        rhs_ref[2 * Cout:3 * Cout, :] = mask[1] * pltpu.roll(y, shift=N - 1, axis=1)
        if downsample:
            rhs_ref[3 * Cout:3 * Cout + Cin, :] = x           # residual via fused 1x1
        z = jnp.dot(w2_ref[...], rhs_ref[0:K2, :], preferred_element_type=f32) \
            + sm[0:Cout, col['b2']:col['b2'] + 1]
        if not downsample:
            z = z + x                                         # plain residual add

        out_ref[...] = z
        # pool_stride == 1 -> no MaxPool1d; dropout p=0 -> identity;
        # x[:, :, None, :] then x[:, :, 0, :] is a no-op.
        # TODO(synk): MaxPool1d (pool_stride > 1) and Dropout2d (p > 0) not wired.

    return kernel


def residual_block_forward(x, params, *, first=False, add_attention=True,
                           block_batch=4):
    B, Cin, L = x.shape
    Cout = params['conv1_w'].shape[0]
    downsample = (Cin != Cout)
    assert Cin >= 2, "degenerate Cin < 2 not supported"
    assert L % 128 == 0, "L must be a multiple of 128 (pad the sequence on the host)"
    # TODO(synk): host-side L padding (with stat/conv masking) for non-128-multiple L.
    eps = 1e-5
    f32 = jnp.float32

    BT = max(1, min(block_batch, B))          # batch elements per grid step
    G = -(-B // BT)                           # grid steps (keep >= 2 for v7x when possible)
    Bpad = G * BT
    N = BT * L

    xp = x.astype(f32)
    if Bpad != B:
        xp = jnp.pad(xp, ((0, Bpad - B), (0, 0), (0, 0)))
    # (Bpad, Cin, L) -> (G, Cin, BT*L): BT elements laid side by side along lanes.
    xw = xp.reshape(G, BT, Cin, L).transpose(0, 2, 1, 3).reshape(G, Cin, N)

    inputs = [xw]
    in_specs = [pl.BlockSpec((None, Cin, N), lambda g: (g, 0, 0))]

    def add_param(p):
        p = jnp.asarray(p, f32)
        inputs.append(p)
        nd = p.ndim
        in_specs.append(pl.BlockSpec(p.shape, lambda g, _nd=nd: (0,) * _nd))

    # ---- packed small-parameter matrix (single DMA instead of many tiny ones) ----
    small_cols = []
    col = {}

    def add_col(name, vec):
        col[name] = len(small_cols)
        small_cols.append(jnp.asarray(vec, f32).reshape(-1))

    Cmid = None
    if add_attention:
        Cmid = params['fc1_w'].shape[0]
        add_param(params['fc1_w'])                              # (Cmid, 3*Cin)
        add_param(params['fc2_w'])                              # (Cin, Cmid)
        add_col('fc1_b', params['fc1_b'])
        add_col('fc2_b', params['fc2_b'])
        saw = jnp.asarray(params['sa_w'], f32).reshape(3, 7)
        col['sa_w'] = len(small_cols)
        for k in range(7):
            small_cols.append(saw[:, k])
    if not first:
        bn1_s = jnp.asarray(params['bn1_gamma'], f32) / jnp.sqrt(
            jnp.asarray(params['bn1_var'], f32) + eps)
        bn1_o = jnp.asarray(params['bn1_beta'], f32) - jnp.asarray(params['bn1_mean'], f32) * bn1_s
        add_col('bn1_s', bn1_s)
        add_col('bn1_o', bn1_o)

    # Fold BN2 (eval) into conv1; fuse the 1x1 downsample into conv2 along K.
    bn2_s = jnp.asarray(params['bn2_gamma'], f32) / jnp.sqrt(
        jnp.asarray(params['bn2_var'], f32) + eps)
    bn2_o = jnp.asarray(params['bn2_beta'], f32) - jnp.asarray(params['bn2_mean'], f32) * bn2_s
    w1f = (jnp.asarray(params['conv1_w'], f32) * bn2_s[:, None, None]) \
        .transpose(0, 2, 1).reshape(Cout, 3 * Cin)
    b1f = jnp.asarray(params['conv1_b'], f32) * bn2_s + bn2_o
    w2f = jnp.asarray(params['conv2_w'], f32).transpose(0, 2, 1).reshape(Cout, 3 * Cout)
    if downsample:
        w2f = jnp.concatenate([w2f, jnp.asarray(params['ds_w'], f32)[:, :, 0]], axis=1)
        b2f = jnp.asarray(params['conv2_b'], f32) + jnp.asarray(params['ds_b'], f32)
    else:
        b2f = jnp.asarray(params['conv2_b'], f32)
    add_param(w1f)                                              # (Cout, 3*Cin)
    add_param(w2f)                                              # (Cout, 3*Cout [+ Cin])
    add_col('b1', b1f)
    add_col('b2', b2f)

    lens = [int(c.shape[0]) for c in small_cols]
    Rsm = ((max(lens + [8]) + 7) // 8) * 8
    sm = jnp.stack([jnp.pad(c, (0, Rsm - c.shape[0])) for c in small_cols], axis=1)
    add_param(sm)                                               # (Rsm, ncols)

    K1 = 3 * Cin
    K2 = 3 * Cout + (Cin if downsample else 0)
    Rrhs = max(K1, K2)

    kernel = make_residual_block_kernel(
        first=first, add_attention=add_attention, downsample=downsample,
        Cin=Cin, Cout=Cout, Cmid=Cmid, L=L, BT=BT, col=col)

    outw = pl.pallas_call(
        kernel,
        out_shape=jax.ShapeDtypeStruct((G, Cout, N), f32),
        grid_spec=pltpu.PrefetchScalarGridSpec(
            num_scalar_prefetch=0,
            grid=(G,),
            in_specs=in_specs,
            out_specs=pl.BlockSpec((None, Cout, N), lambda g: (g, 0, 0)),
            scratch_shapes=[pltpu.VMEM((Rrhs, N), f32)],        # reused conv RHS slab
        ),
        compiler_params=pltpu.CompilerParams(
            dimension_semantics=("parallel",),   # batch-block grid -> both TCs on v7x
        ),
    )(*inputs)

    out = outw.reshape(G, Cout, BT, L).transpose(0, 2, 1, 3).reshape(Bpad, Cout, L)
    return out[:B]


# ----------------------------- pure-JAX reference -----------------------------
def _conv1d(x, w, pad):
    return jax.lax.conv_general_dilated(
        x, w, window_strides=(1,), padding=[(pad, pad)],
        dimension_numbers=('NCH', 'OIH', 'NCH'),
        precision=jax.lax.Precision.HIGHEST)


def ref_forward(x, p, *, first=False, add_attention=True):
    eps = 1e-5
    hp = jax.lax.Precision.HIGHEST
    Cout = p['conv1_w'].shape[0]
    Cin = x.shape[1]
    downsample = (Cin != Cout)
    out = x
    if add_attention:
        mean_l = jnp.mean(out, axis=2)
        std_l = jnp.clip(jnp.std(out, axis=2, ddof=1), 1e-10, FMAX)
        max_l = jnp.max(out, axis=2)
        feat = jnp.concatenate([mean_l, std_l, max_l], axis=1)
        h = jax.nn.relu(jnp.dot(feat, p['fc1_w'].T, precision=hp) + p['fc1_b'])
        ca = jnp.clip(jax.nn.sigmoid(jnp.dot(h, p['fc2_w'].T, precision=hp) + p['fc2_b']),
                      1e-6, FMAX)
        out = out * ca[:, :, None]
        mean_c = jnp.mean(out, axis=1, keepdims=True)
        std_c = jnp.clip(jnp.std(out, axis=1, keepdims=True, ddof=1), 1e-10, FMAX)
        max_c = jnp.max(out, axis=1, keepdims=True)
        sp = jnp.concatenate([mean_c, std_c, max_c], axis=1)
        sa = jnp.clip(jax.nn.sigmoid(_conv1d(sp, p['sa_w'], 3)), 1e-6, FMAX)
        out = out * sa
    if not first:
        s = p['bn1_gamma'] / jnp.sqrt(p['bn1_var'] + eps)
        out = (out - p['bn1_mean'][None, :, None]) * s[None, :, None] + p['bn1_beta'][None, :, None]
        out = jnp.where(out >= 0, out, 0.01 * out)
    out = _conv1d(out, p['conv1_w'], 1) + p['conv1_b'][None, :, None]
    s2 = p['bn2_gamma'] / jnp.sqrt(p['bn2_var'] + eps)
    out = (out - p['bn2_mean'][None, :, None]) * s2[None, :, None] + p['bn2_beta'][None, :, None]
    out = jnp.where(out >= 0, out, 0.01 * out)
    out = _conv1d(out, p['conv2_w'], 1) + p['conv2_b'][None, :, None]
    if downsample:
        identity = _conv1d(x, p['ds_w'], 0) + p['ds_b'][None, :, None]
    else:
        identity = x
    return out + identity


if __name__ == "__main__":
    # B=8 with BT=4 -> grid of 2 steps (keeps both v7x TCs busy) and matmul N=512.
    B, Cin, Cout, L = 8, 32, 48, 128
    BT = 4
    ratio, ksa = 16, 7
    Cmid = Cin // ratio

    key = jax.random.PRNGKey(0)
    ks = jax.random.split(key, 20)
    params = {
        'fc1_w': 0.1 * jax.random.normal(ks[0], (Cmid, 3 * Cin), jnp.float32),
        'fc1_b': 0.1 * jax.random.normal(ks[1], (Cmid,), jnp.float32),
        'fc2_w': 0.1 * jax.random.normal(ks[2], (Cin, Cmid), jnp.float32),
        'fc2_b': 0.1 * jax.random.normal(ks[3], (Cin,), jnp.float32),
        'sa_w': 0.1 * jax.random.normal(ks[4], (1, 3, ksa), jnp.float32),
        'bn1_gamma': 1.0 + 0.1 * jax.random.normal(ks[5], (Cin,), jnp.float32),
        'bn1_beta': 0.1 * jax.random.normal(ks[6], (Cin,), jnp.float32),
        'bn1_mean': 0.1 * jax.random.normal(ks[7], (Cin,), jnp.float32),
        'bn1_var': jax.random.uniform(ks[8], (Cin,), jnp.float32, 0.5, 1.5),
        'conv1_w': 0.1 * jax.random.normal(ks[9], (Cout, Cin, 3), jnp.float32),
        'conv1_b': 0.1 * jax.random.normal(ks[10], (Cout,), jnp.float32),
        'bn2_gamma': 1.0 + 0.1 * jax.random.normal(ks[11], (Cout,), jnp.float32),
        'bn2_beta': 0.1 * jax.random.normal(ks[12], (Cout,), jnp.float32),
        'bn2_mean': 0.1 * jax.random.normal(ks[13], (Cout,), jnp.float32),
        'bn2_var': jax.random.uniform(ks[14], (Cout,), jnp.float32, 0.5, 1.5),
        'conv2_w': 0.1 * jax.random.normal(ks[15], (Cout, Cout, 3), jnp.float32),
        'conv2_b': 0.1 * jax.random.normal(ks[16], (Cout,), jnp.float32),
        'ds_w': 0.1 * jax.random.normal(ks[17], (Cout, Cin, 1), jnp.float32),
        'ds_b': 0.1 * jax.random.normal(ks[18], (Cout,), jnp.float32),
    }
    x = jax.random.normal(ks[19], (B, Cin, L), jnp.float32)

    out = jax.block_until_ready(residual_block_forward(x, params, block_batch=BT))
    ref = jax.block_until_ready(ref_forward(x, params))

    assert out.shape == (B, Cout, L)
    np.testing.assert_allclose(np.asarray(out), np.asarray(ref), rtol=2e-4, atol=2e-4)
    print("KERNEL_OK")
</pallas_src>

<mosaic_0001>
module attributes {stable_mosaic.version = 11 : i64} {
  func.func @kernel(%arg0: i32, %arg1: memref<1x32x512xf32, #tpu.memory_space<vmem>>, %arg2: memref<2x96xf32, #tpu.memory_space<vmem>>, %arg3: memref<32x2xf32, #tpu.memory_space<vmem>>, %arg4: memref<48x96xf32, #tpu.memory_space<vmem>>, %arg5: memref<48x176xf32, #tpu.memory_space<vmem>>, %arg6: memref<48x13xf32, #tpu.memory_space<vmem>>, %arg7: memref<1x48x512xf32, #tpu.memory_space<vmem>>, %arg8: memref<176x512xf32, #tpu.memory_space<vmem>>) attributes {dimension_semantics = [#tpu.dimension_semantics<parallel>], iteration_bounds = array<i64: 2>, scalar_prefetch = 0 : i64, scratch_operands = 1 : i64, tpu.core_type = #tpu.core_type<tc>, window_params = [{transform_indices = @transform_0, window_bounds = array<i64: 1, 32, 512>}, {pipeline_mode = #tpu.pipeline_mode<synchronous>, transform_indices = @transform_1, window_bounds = array<i64: 2, 96>}, {pipeline_mode = #tpu.pipeline_mode<synchronous>, transform_indices = @transform_2, window_bounds = array<i64: 32, 2>}, {pipeline_mode = #tpu.pipeline_mode<synchronous>, transform_indices = @transform_3, window_bounds = array<i64: 48, 96>}, {pipeline_mode = #tpu.pipeline_mode<synchronous>, transform_indices = @transform_4, window_bounds = array<i64: 48, 176>}, {pipeline_mode = #tpu.pipeline_mode<synchronous>, transform_indices = @transform_5, window_bounds = array<i64: 48, 13>}, {transform_indices = @transform_6, window_bounds = array<i64: 1, 48, 512>}]} {
    %c0 = arith.constant 0 : index
    %c0_0 = arith.constant 0 : index
    %c0_1 = arith.constant 0 : index
    %0 = vector.load %arg1[%c0, %c0_0, %c0_1] : memref<1x32x512xf32, #tpu.memory_space<vmem>>, vector<1x32x512xf32>
    %1 = vector.shape_cast %0 : vector<1x32x512xf32> to vector<32x512xf32>
    %c0_2 = arith.constant 0 : index
    %c0_3 = arith.constant 0 : index
    %2 = vector.load %arg6[%c0_2, %c0_3] : memref<48x13xf32, #tpu.memory_space<vmem>>, vector<48x13xf32>
    %3 = tpu.iota {dimensions = array<i32: 1>} : vector<1x512xi32>
    %c128_i32 = arith.constant 128 : i32
    %c0_i32 = arith.constant 0 : i32
    %4 = arith.cmpi eq, %c128_i32, %c0_i32 : i32
    %c1_i32 = arith.constant 1 : i32
    %5 = arith.select %4, %c1_i32, %c128_i32 : i32
    %6 = vector.broadcast %5 : i32 to vector<1x512xi32>
    %7 = arith.remsi %3, %6 : vector<1x512xi32>
    %c0_i32_4 = arith.constant 0 : i32
    %8 = vector.broadcast %c0_i32_4 : i32 to vector<1x512xi32>
    %9 = arith.cmpi ne, %7, %8 : vector<1x512xi32>
    %c0_i32_5 = arith.constant 0 : i32
    %10 = vector.broadcast %c0_i32_5 : i32 to vector<1x512xi32>
    %11 = arith.cmpi slt, %7, %10 : vector<1x512xi32>
    %c0_i32_6 = arith.constant 0 : i32
    %12 = arith.cmpi slt, %5, %c0_i32_6 : i32
    %13 = vector.broadcast %12 : i1 to vector<1x512xi1>
    %14 = vector.broadcast %13 : vector<1x512xi1> to vector<1x512xi1>
    %15 = arith.xori %11, %14 : vector<1x512xi1>
    %16 = arith.andi %15, %9 : vector<1x512xi1>
    %17 = vector.broadcast %5 : i32 to vector<1x512xi32>
    %18 = arith.addi %7, %17 : vector<1x512xi32>
    %19 = arith.select %16, %18, %7 : vector<1x512xi1>, vector<1x512xi32>
    %c-3_i32 = arith.constant -3 : i32
    %20 = vector.broadcast %c-3_i32 : i32 to vector<1x512xi32>
    %21 = arith.addi %19, %20 : vector<1x512xi32>
    %c0_i32_7 = arith.constant 0 : i32
    %22 = vector.broadcast %c0_i32_7 : i32 to vector<1x512xi32>
    %23 = arith.cmpi sge, %21, %22 : vector<1x512xi32>
    %c-3_i32_8 = arith.constant -3 : i32
    %24 = vector.broadcast %c-3_i32_8 : i32 to vector<1x512xi32>
    %25 = arith.addi %19, %24 : vector<1x512xi32>
    %c127_i32 = arith.constant 127 : i32
    %26 = vector.broadcast %c127_i32 : i32 to vector<1x512xi32>
    %27 = arith.cmpi sle, %25, %26 : vector<1x512xi32>
    %28 = arith.andi %23, %27 : vector<1x512xi1>
    %29 = arith.extui %28 : vector<1x512xi1> to vector<1x512xi32>
    %30 = arith.sitofp %29 : vector<1x512xi32> to vector<1x512xf32>
    %c-2_i32 = arith.constant -2 : i32
    %31 = vector.broadcast %c-2_i32 : i32 to vector<1x512xi32>
    %32 = arith.addi %19, %31 : vector<1x512xi32>
    %c0_i32_9 = arith.constant 0 : i32
    %33 = vector.broadcast %c0_i32_9 : i32 to vector<1x512xi32>
    %34 = arith.cmpi sge, %32, %33 : vector<1x512xi32>
    %c-2_i32_10 = arith.constant -2 : i32
    %35 = vector.broadcast %c-2_i32_10 : i32 to vector<1x512xi32>
    %36 = arith.addi %19, %35 : vector<1x512xi32>
    %c127_i32_11 = arith.constant 127 : i32
    %37 = vector.broadcast %c127_i32_11 : i32 to vector<1x512xi32>
    %38 = arith.cmpi sle, %36, %37 : vector<1x512xi32>
    %39 = arith.andi %34, %38 : vector<1x512xi1>
    %40 = arith.extui %39 : vector<1x512xi1> to vector<1x512xi32>
    %41 = arith.sitofp %40 : vector<1x512xi32> to vector<1x512xf32>
    %c-1_i32 = arith.constant -1 : i32
    %42 = vector.broadcast %c-1_i32 : i32 to vector<1x512xi32>
    %43 = arith.addi %19, %42 : vector<1x512xi32>
    %c0_i32_12 = arith.constant 0 : i32
    %44 = vector.broadcast %c0_i32_12 : i32 to vector<1x512xi32>
    %45 = arith.cmpi sge, %43, %44 : vector<1x512xi32>
    %c-1_i32_13 = arith.constant -1 : i32
    %46 = vector.broadcast %c-1_i32_13 : i32 to vector<1x512xi32>
    %47 = arith.addi %19, %46 : vector<1x512xi32>
    %c127_i32_14 = arith.constant 127 : i32
    %48 = vector.broadcast %c127_i32_14 : i32 to vector<1x512xi32>
    %49 = arith.cmpi sle, %47, %48 : vector<1x512xi32>
    %50 = arith.andi %45, %49 : vector<1x512xi1>
    %51 = arith.extui %50 : vector<1x512xi1> to vector<1x512xi32>
    %52 = arith.sitofp %51 : vector<1x512xi32> to vector<1x512xf32>
    %c1_i32_15 = arith.constant 1 : i32
    %53 = vector.broadcast %c1_i32_15 : i32 to vector<1x512xi32>
    %54 = arith.addi %19, %53 : vector<1x512xi32>
    %c0_i32_16 = arith.constant 0 : i32
    %55 = vector.broadcast %c0_i32_16 : i32 to vector<1x512xi32>
    %56 = arith.cmpi sge, %54, %55 : vector<1x512xi32>
    %c1_i32_17 = arith.constant 1 : i32
    %57 = vector.broadcast %c1_i32_17 : i32 to vector<1x512xi32>
    %58 = arith.addi %19, %57 : vector<1x512xi32>
    %c127_i32_18 = arith.constant 127 : i32
    %59 = vector.broadcast %c127_i32_18 : i32 to vector<1x512xi32>
    %60 = arith.cmpi sle, %58, %59 : vector<1x512xi32>
    %61 = arith.andi %56, %60 : vector<1x512xi1>
    %62 = arith.extui %61 : vector<1x512xi1> to vector<1x512xi32>
    %63 = arith.sitofp %62 : vector<1x512xi32> to vector<1x512xf32>
    %c2_i32 = arith.constant 2 : i32
    %64 = vector.broadcast %c2_i32 : i32 to vector<1x512xi32>
    %65 = arith.addi %19, %64 : vector<1x512xi32>
    %c0_i32_19 = arith.constant 0 : i32
    %66 = vector.broadcast %c0_i32_19 : i32 to vector<1x512xi32>
    %67 = arith.cmpi sge, %65, %66 : vector<1x512xi32>
    %c2_i32_20 = arith.constant 2 : i32
    %68 = vector.broadcast %c2_i32_20 : i32 to vector<1x512xi32>
    %69 = arith.addi %19, %68 : vector<1x512xi32>
    %c127_i32_21 = arith.constant 127 : i32
    %70 = vector.broadcast %c127_i32_21 : i32 to vector<1x512xi32>
    %71 = arith.cmpi sle, %69, %70 : vector<1x512xi32>
    %72 = arith.andi %67, %71 : vector<1x512xi1>
    %73 = arith.extui %72 : vector<1x512xi1> to vector<1x512xi32>
    %74 = arith.sitofp %73 : vector<1x512xi32> to vector<1x512xf32>
    %c3_i32 = arith.constant 3 : i32
    %75 = vector.broadcast %c3_i32 : i32 to vector<1x512xi32>
    %76 = arith.addi %19, %75 : vector<1x512xi32>
    %c0_i32_22 = arith.constant 0 : i32
    %77 = vector.broadcast %c0_i32_22 : i32 to vector<1x512xi32>
    %78 = arith.cmpi sge, %76, %77 : vector<1x512xi32>
    %c3_i32_23 = arith.constant 3 : i32
    %79 = vector.broadcast %c3_i32_23 : i32 to vector<1x512xi32>
    %80 = arith.addi %19, %79 : vector<1x512xi32>
    %c127_i32_24 = arith.constant 127 : i32
    %81 = vector.broadcast %c127_i32_24 : i32 to vector<1x512xi32>
    %82 = arith.cmpi sle, %80, %81 : vector<1x512xi32>
    %83 = arith.andi %78, %82 : vector<1x512xi1>
    %84 = arith.extui %83 : vector<1x512xi1> to vector<1x512xi32>
    %85 = arith.sitofp %84 : vector<1x512xi32> to vector<1x512xf32>
    %86 = vector.extract_strided_slice %2 {offsets = [0, 0], sizes = [2, 1], strides = [1, 1]} : vector<48x13xf32> to vector<2x1xf32>
    %87 = vector.extract_strided_slice %2 {offsets = [0, 1], sizes = [32, 1], strides = [1, 1]} : vector<48x13xf32> to vector<32x1xf32>
    %88 = vector.extract_strided_slice %1 {offsets = [0, 0], sizes = [32, 128], strides = [1, 1]} : vector<32x512xf32> to vector<32x128xf32>
    %cst = arith.constant dense<0.000000e+00> : vector<32xf32>
    %89 = vector.multi_reduction <add>, %88, %cst [1] : vector<32x128xf32> to vector<32xf32>
    %90 = vector.shape_cast %89 : vector<32xf32> to vector<32x1xf32>
    %cst_25 = arith.constant 7.812500e-03 : f32
    %91 = vector.broadcast %cst_25 : f32 to vector<32x1xf32>
    %92 = arith.mulf %90, %91 : vector<32x1xf32>
    %93 = vector.broadcast %92 : vector<32x1xf32> to vector<32x128xf32>
    %94 = arith.subf %88, %93 : vector<32x128xf32>
    %95 = arith.mulf %94, %94 : vector<32x128xf32>
    %cst_26 = arith.constant dense<0.000000e+00> : vector<32xf32>
    %96 = vector.multi_reduction <add>, %95, %cst_26 [1] : vector<32x128xf32> to vector<32xf32>
    %97 = vector.shape_cast %96 : vector<32xf32> to vector<32x1xf32>
    %cst_27 = arith.constant 0.00787401571 : f32
    %98 = vector.broadcast %cst_27 : f32 to vector<32x1xf32>
    %99 = arith.mulf %97, %98 : vector<32x1xf32>
    %cst_28 = arith.constant 0.000000e+00 : f32
    %100 = vector.broadcast %cst_28 : f32 to vector<32x1xf32>
    %101 = arith.maximumf %99, %100 : vector<32x1xf32>
    %102 = math.sqrt %101 : vector<32x1xf32>
    %cst_29 = arith.constant 1.000000e-10 : f32
    %103 = vector.broadcast %cst_29 : f32 to vector<32x1xf32>
    %104 = arith.maximumf %102, %103 : vector<32x1xf32>
    %cst_30 = arith.constant dense<0xFF800000> : vector<32xf32>
    %105 = vector.multi_reduction <maximumf>, %88, %cst_30 [1] : vector<32x128xf32> to vector<32xf32>
    %106 = vector.shape_cast %105 : vector<32xf32> to vector<32x1xf32>
    %107 = tpu.concatenate %92, %104, %106 in 0 : vector<32x1xf32>, vector<32x1xf32>, vector<32x1xf32> -> vector<96x1xf32>
    %108 = vector.extract_strided_slice %1 {offsets = [0, 128], sizes = [32, 128], strides = [1, 1]} : vector<32x512xf32> to vector<32x128xf32>
    %cst_31 = arith.constant dense<0.000000e+00> : vector<32xf32>
    %109 = vector.multi_reduction <add>, %108, %cst_31 [1] : vector<32x128xf32> to vector<32xf32>
    %110 = vector.shape_cast %109 : vector<32xf32> to vector<32x1xf32>
    %cst_32 = arith.constant 7.812500e-03 : f32
    %111 = vector.broadcast %cst_32 : f32 to vector<32x1xf32>
    %112 = arith.mulf %110, %111 : vector<32x1xf32>
    %113 = vector.broadcast %112 : vector<32x1xf32> to vector<32x128xf32>
    %114 = arith.subf %108, %113 : vector<32x128xf32>
    %115 = arith.mulf %114, %114 : vector<32x128xf32>
    %cst_33 = arith.constant dense<0.000000e+00> : vector<32xf32>
    %116 = vector.multi_reduction <add>, %115, %cst_33 [1] : vector<32x128xf32> to vector<32xf32>
    %117 = vector.shape_cast %116 : vector<32xf32> to vector<32x1xf32>
    %cst_34 = arith.constant 0.00787401571 : f32
    %118 = vector.broadcast %cst_34 : f32 to vector<32x1xf32>
    %119 = arith.mulf %117, %118 : vector<32x1xf32>
    %cst_35 = arith.constant 0.000000e+00 : f32
    %120 = vector.broadcast %cst_35 : f32 to vector<32x1xf32>
    %121 = arith.maximumf %119, %120 : vector<32x1xf32>
    %122 = math.sqrt %121 : vector<32x1xf32>
    %cst_36 = arith.constant 1.000000e-10 : f32
    %123 = vector.broadcast %cst_36 : f32 to vector<32x1xf32>
    %124 = arith.maximumf %122, %123 : vector<32x1xf32>
    %cst_37 = arith.constant dense<0xFF800000> : vector<32xf32>
    %125 = vector.multi_reduction <maximumf>, %108, %cst_37 [1] : vector<32x128xf32> to vector<32xf32>
    %126 = vector.shape_cast %125 : vector<32xf32> to vector<32x1xf32>
    %127 = tpu.concatenate %112, %124, %126 in 0 : vector<32x1xf32>, vector<32x1xf32>, vector<32x1xf32> -> vector<96x1xf32>
    %128 = vector.extract_strided_slice %1 {offsets = [0, 256], sizes = [32, 128], strides = [1, 1]} : vector<32x512xf32> to vector<32x128xf32>
    %cst_38 = arith.constant dense<0.000000e+00> : vector<32xf32>
    %129 = vector.multi_reduction <add>, %128, %cst_38 [1] : vector<32x128xf32> to vector<32xf32>
    %130 = vector.shape_cast %129 : vector<32xf32> to vector<32x1xf32>
    %cst_39 = arith.constant 7.812500e-03 : f32
    %131 = vector.broadcast %cst_39 : f32 to vector<32x1xf32>
    %132 = arith.mulf %130, %131 : vector<32x1xf32>
    %133 = vector.broadcast %132 : vector<32x1xf32> to vector<32x128xf32>
    %134 = arith.subf %128, %133 : vector<32x128xf32>
    %135 = arith.mulf %134, %134 : vector<32x128xf32>
    %cst_40 = arith.constant dense<0.000000e+00> : vector<32xf32>
    %136 = vector.multi_reduction <add>, %135, %cst_40 [1] : vector<32x128xf32> to vector<32xf32>
    %137 = vector.shape_cast %136 : vector<32xf32> to vector<32x1xf32>
    %cst_41 = arith.constant 0.00787401571 : f32
    %138 = vector.broadcast %cst_41 : f32 to vector<32x1xf32>
    %139 = arith.mulf %137, %138 : vector<32x1xf32>
    %cst_42 = arith.constant 0.000000e+00 : f32
    %140 = vector.broadcast %cst_42 : f32 to vector<32x1xf32>
    %141 = arith.maximumf %139, %140 : vector<32x1xf32>
    %142 = math.sqrt %141 : vector<32x1xf32>
    %cst_43 = arith.constant 1.000000e-10 : f32
    %143 = vector.broadcast %cst_43 : f32 to vector<32x1xf32>
    %144 = arith.maximumf %142, %143 : vector<32x1xf32>
    %cst_44 = arith.constant dense<0xFF800000> : vector<32xf32>
    %145 = vector.multi_reduction <maximumf>, %128, %cst_44 [1] : vector<32x128xf32> to vector<32xf32>
    %146 = vector.shape_cast %145 : vector<32xf32> to vector<32x1xf32>
    %147 = tpu.concatenate %132, %144, %146 in 0 : vector<32x1xf32>, vector<32x1xf32>, vector<32x1xf32> -> vector<96x1xf32>
    %148 = vector.extract_strided_slice %1 {offsets = [0, 384], sizes = [32, 128], strides = [1, 1]} : vector<32x512xf32> to vector<32x128xf32>
    %cst_45 = arith.constant dense<0.000000e+00> : vector<32xf32>
    %149 = vector.multi_reduction <add>, %148, %cst_45 [1] : vector<32x128xf32> to vector<32xf32>
    %150 = vector.shape_cast %149 : vector<32xf32> to vector<32x1xf32>
    %cst_46 = arith.constant 7.812500e-03 : f32
    %151 = vector.broadcast %cst_46 : f32 to vector<32x1xf32>
    %152 = arith.mulf %150, %151 : vector<32x1xf32>
    %153 = vector.broadcast %152 : vector<32x1xf32> to vector<32x128xf32>
    %154 = arith.subf %148, %153 : vector<32x128xf32>
    %155 = arith.mulf %154, %154 : vector<32x128xf32>
    %cst_47 = arith.constant dense<0.000000e+00> : vector<32xf32>
    %156 = vector.multi_reduction <add>, %155, %cst_47 [1] : vector<32x128xf32> to vector<32xf32>
    %157 = vector.shape_cast %156 : vector<32xf32> to vector<32x1xf32>
    %cst_48 = arith.constant 0.00787401571 : f32
    %158 = vector.broadcast %cst_48 : f32 to vector<32x1xf32>
    %159 = arith.mulf %157, %158 : vector<32x1xf32>
    %cst_49 = arith.constant 0.000000e+00 : f32
    %160 = vector.broadcast %cst_49 : f32 to vector<32x1xf32>
    %161 = arith.maximumf %159, %160 : vector<32x1xf32>
    %162 = math.sqrt %161 : vector<32x1xf32>
    %cst_50 = arith.constant 1.000000e-10 : f32
    %163 = vector.broadcast %cst_50 : f32 to vector<32x1xf32>
    %164 = arith.maximumf %162, %163 : vector<32x1xf32>
    %cst_51 = arith.constant dense<0xFF800000> : vector<32xf32>
    %165 = vector.multi_reduction <maximumf>, %148, %cst_51 [1] : vector<32x128xf32> to vector<32xf32>
    %166 = vector.shape_cast %165 : vector<32xf32> to vector<32x1xf32>
    %167 = tpu.concatenate %152, %164, %166 in 0 : vector<32x1xf32>, vector<32x1xf32>, vector<32x1xf32> -> vector<96x1xf32>
    %168 = tpu.concatenate %107, %127, %147, %167 in 1 : vector<96x1xf32>, vector<96x1xf32>, vector<96x1xf32>, vector<96x1xf32> -> vector<96x4xf32>
    %c0_52 = arith.constant 0 : index
    %c0_53 = arith.constant 0 : index
    %169 = vector.load %arg2[%c0_52, %c0_53] : memref<2x96xf32, #tpu.memory_space<vmem>>, vector<2x96xf32>
    %cst_54 = arith.constant dense<0.000000e+00> : vector<2x4xf32>
    %170 = tpu.matmul %169, %168, %cst_54 {dimension_numbers = #tpu.dot_dimension_numbers<[1], [0], [0], [1], [0, 0, 1, 1], [], []>} : vector<2x96xf32>, vector<96x4xf32>, vector<2x4xf32> -> vector<2x4xf32>
    %171 = vector.broadcast %86 : vector<2x1xf32> to vector<2x4xf32>
    %172 = arith.addf %170, %171 : vector<2x4xf32>
    %cst_55 = arith.constant 0.000000e+00 : f32
    %173 = vector.broadcast %cst_55 : f32 to vector<2x4xf32>
    %174 = arith.maximumf %172, %173 : vector<2x4xf32>
    %c0_56 = arith.constant 0 : index
    %c0_57 = arith.constant 0 : index
    %175 = vector.load %arg3[%c0_56, %c0_57] : memref<32x2xf32, #tpu.memory_space<vmem>>, vector<32x2xf32>
    %cst_58 = arith.constant dense<0.000000e+00> : vector<32x4xf32>
    %176 = tpu.matmul %175, %174, %cst_58 {dimension_numbers = #tpu.dot_dimension_numbers<[1], [0], [0], [1], [0, 0, 1, 1], [], []>} : vector<32x2xf32>, vector<2x4xf32>, vector<32x4xf32> -> vector<32x4xf32>
    %177 = vector.broadcast %87 : vector<32x1xf32> to vector<32x4xf32>
    %178 = arith.addf %176, %177 : vector<32x4xf32>
    %179 = arith.negf %178 : vector<32x4xf32>
    %180 = math.exp %179 : vector<32x4xf32>
    %cst_59 = arith.constant 1.000000e+00 : f32
    %181 = vector.broadcast %cst_59 : f32 to vector<32x4xf32>
    %182 = arith.addf %181, %180 : vector<32x4xf32>
    %183 = arith.divf %181, %182 : vector<32x4xf32>
    %cst_60 = arith.constant 9.99999997E-7 : f32
    %184 = vector.broadcast %cst_60 : f32 to vector<32x4xf32>
    %185 = arith.maximumf %183, %184 : vector<32x4xf32>
    %186 = vector.extract_strided_slice %1 {offsets = [0, 0], sizes = [32, 128], strides = [1, 1]} : vector<32x512xf32> to vector<32x128xf32>
    %187 = vector.extract_strided_slice %185 {offsets = [0, 0], sizes = [32, 1], strides = [1, 1]} : vector<32x4xf32> to vector<32x1xf32>
    %188 = vector.broadcast %187 : vector<32x1xf32> to vector<32x128xf32>
    %189 = arith.mulf %186, %188 : vector<32x128xf32>
    %190 = vector.extract_strided_slice %1 {offsets = [0, 128], sizes = [32, 128], strides = [1, 1]} : vector<32x512xf32> to vector<32x128xf32>
    %191 = vector.extract_strided_slice %185 {offsets = [0, 1], sizes = [32, 1], strides = [1, 1]} : vector<32x4xf32> to vector<32x1xf32>
    %192 = vector.broadcast %191 : vector<32x1xf32> to vector<32x128xf32>
    %193 = arith.mulf %190, %192 : vector<32x128xf32>
    %194 = vector.extract_strided_slice %1 {offsets = [0, 256], sizes = [32, 128], strides = [1, 1]} : vector<32x512xf32> to vector<32x128xf32>
    %195 = vector.extract_strided_slice %185 {offsets = [0, 2], sizes = [32, 1], strides = [1, 1]} : vector<32x4xf32> to vector<32x1xf32>
    %196 = vector.broadcast %195 : vector<32x1xf32> to vector<32x128xf32>
    %197 = arith.mulf %194, %196 : vector<32x128xf32>
    %198 = vector.extract_strided_slice %1 {offsets = [0, 384], sizes = [32, 128], strides = [1, 1]} : vector<32x512xf32> to vector<32x128xf32>
    %199 = vector.extract_strided_slice %185 {offsets = [0, 3], sizes = [32, 1], strides = [1, 1]} : vector<32x4xf32> to vector<32x1xf32>
    %200 = vector.broadcast %199 : vector<32x1xf32> to vector<32x128xf32>
    %201 = arith.mulf %198, %200 : vector<32x128xf32>
    %202 = tpu.concatenate %189, %193, %197, %201 in 1 : vector<32x128xf32>, vector<32x128xf32>, vector<32x128xf32>, vector<32x128xf32> -> vector<32x512xf32>
    %cst_61 = arith.constant dense<0.000000e+00> : vector<512xf32>
    %203 = vector.multi_reduction <add>, %202, %cst_61 [0] : vector<32x512xf32> to vector<512xf32>
    %204 = vector.shape_cast %203 : vector<512xf32> to vector<1x512xf32>
    %cst_62 = arith.constant 3.125000e-02 : f32
    %205 = vector.broadcast %cst_62 : f32 to vector<1x512xf32>
    %206 = arith.mulf %204, %205 : vector<1x512xf32>
    %207 = vector.broadcast %206 : vector<1x512xf32> to vector<32x512xf32>
    %208 = arith.subf %202, %207 : vector<32x512xf32>
    %209 = arith.mulf %208, %208 : vector<32x512xf32>
    %cst_63 = arith.constant dense<0.000000e+00> : vector<512xf32>
    %210 = vector.multi_reduction <add>, %209, %cst_63 [0] : vector<32x512xf32> to vector<512xf32>
    %211 = vector.shape_cast %210 : vector<512xf32> to vector<1x512xf32>
    %cst_64 = arith.constant 0.0322580636 : f32
    %212 = vector.broadcast %cst_64 : f32 to vector<1x512xf32>
    %213 = arith.mulf %211, %212 : vector<1x512xf32>
    %cst_65 = arith.constant 0.000000e+00 : f32
    %214 = vector.broadcast %cst_65 : f32 to vector<1x512xf32>
    %215 = arith.maximumf %213, %214 : vector<1x512xf32>
    %216 = math.sqrt %215 : vector<1x512xf32>
    %cst_66 = arith.constant 1.000000e-10 : f32
    %217 = vector.broadcast %cst_66 : f32 to vector<1x512xf32>
    %218 = arith.maximumf %216, %217 : vector<1x512xf32>
    %cst_67 = arith.constant dense<0xFF800000> : vector<512xf32>
    %219 = vector.multi_reduction <maximumf>, %202, %cst_67 [0] : vector<32x512xf32> to vector<512xf32>
    %220 = vector.shape_cast %219 : vector<512xf32> to vector<1x512xf32>
    %221 = tpu.concatenate %206, %218, %220 in 0 : vector<1x512xf32>, vector<1x512xf32>, vector<1x512xf32> -> vector<3x512xf32>
    %222 = vector.extract_strided_slice %2 {offsets = [0, 5], sizes = [3, 1], strides = [1, 1]} : vector<48x13xf32> to vector<3x1xf32>
    %223 = vector.broadcast %222 : vector<3x1xf32> to vector<3x512xf32>
    %224 = arith.mulf %223, %221 : vector<3x512xf32>
    %225 = vector.extract_strided_slice %2 {offsets = [0, 2], sizes = [3, 1], strides = [1, 1]} : vector<48x13xf32> to vector<3x1xf32>
    %c3_i32_68 = arith.constant 3 : i32
    %226 = tpu.dynamic_rotate %221 by %c3_i32_68 dim 1 : vector<3x512xf32>, i32 -> vector<3x512xf32>
    %227 = vector.broadcast %30 : vector<1x512xf32> to vector<3x512xf32>
    %228 = arith.mulf %227, %226 : vector<3x512xf32>
    %229 = vector.broadcast %225 : vector<3x1xf32> to vector<3x512xf32>
    %230 = arith.mulf %229, %228 : vector<3x512xf32>
    %231 = arith.addf %224, %230 : vector<3x512xf32>
    %232 = vector.extract_strided_slice %2 {offsets = [0, 3], sizes = [3, 1], strides = [1, 1]} : vector<48x13xf32> to vector<3x1xf32>
    %c2_i32_69 = arith.constant 2 : i32
    %233 = tpu.dynamic_rotate %221 by %c2_i32_69 dim 1 : vector<3x512xf32>, i32 -> vector<3x512xf32>
    %234 = vector.broadcast %41 : vector<1x512xf32> to vector<3x512xf32>
    %235 = arith.mulf %234, %233 : vector<3x512xf32>
    %236 = vector.broadcast %232 : vector<3x1xf32> to vector<3x512xf32>
    %237 = arith.mulf %236, %235 : vector<3x512xf32>
    %238 = arith.addf %231, %237 : vector<3x512xf32>
    %239 = vector.extract_strided_slice %2 {offsets = [0, 4], sizes = [3, 1], strides = [1, 1]} : vector<48x13xf32> to vector<3x1xf32>
    %c1_i32_70 = arith.constant 1 : i32
    %240 = tpu.dynamic_rotate %221 by %c1_i32_70 dim 1 : vector<3x512xf32>, i32 -> vector<3x512xf32>
    %241 = vector.broadcast %52 : vector<1x512xf32> to vector<3x512xf32>
    %242 = arith.mulf %241, %240 : vector<3x512xf32>
    %243 = vector.broadcast %239 : vector<3x1xf32> to vector<3x512xf32>
    %244 = arith.mulf %243, %242 : vector<3x512xf32>
    %245 = arith.addf %238, %244 : vector<3x512xf32>
    %246 = vector.extract_strided_slice %2 {offsets = [0, 6], sizes = [3, 1], strides = [1, 1]} : vector<48x13xf32> to vector<3x1xf32>
    %c511_i32 = arith.constant 511 : i32
    %247 = tpu.dynamic_rotate %221 by %c511_i32 dim 1 : vector<3x512xf32>, i32 -> vector<3x512xf32>
    %248 = vector.broadcast %63 : vector<1x512xf32> to vector<3x512xf32>
    %249 = arith.mulf %248, %247 : vector<3x512xf32>
    %250 = vector.broadcast %246 : vector<3x1xf32> to vector<3x512xf32>
    %251 = arith.mulf %250, %249 : vector<3x512xf32>
    %252 = arith.addf %245, %251 : vector<3x512xf32>
    %253 = vector.extract_strided_slice %2 {offsets = [0, 7], sizes = [3, 1], strides = [1, 1]} : vector<48x13xf32> to vector<3x1xf32>
    %c510_i32 = arith.constant 510 : i32
    %254 = tpu.dynamic_rotate %221 by %c510_i32 dim 1 : vector<3x512xf32>, i32 -> vector<3x512xf32>
    %255 = vector.broadcast %74 : vector<1x512xf32> to vector<3x512xf32>
    %256 = arith.mulf %255, %254 : vector<3x512xf32>
    %257 = vector.broadcast %253 : vector<3x1xf32> to vector<3x512xf32>
    %258 = arith.mulf %257, %256 : vector<3x512xf32>
    %259 = arith.addf %252, %258 : vector<3x512xf32>
    %260 = vector.extract_strided_slice %2 {offsets = [0, 8], sizes = [3, 1], strides = [1, 1]} : vector<48x13xf32> to vector<3x1xf32>
    %c509_i32 = arith.constant 509 : i32
    %261 = tpu.dynamic_rotate %221 by %c509_i32 dim 1 : vector<3x512xf32>, i32 -> vector<3x512xf32>
    %262 = vector.broadcast %85 : vector<1x512xf32> to vector<3x512xf32>
    %263 = arith.mulf %262, %261 : vector<3x512xf32>
    %264 = vector.broadcast %260 : vector<3x1xf32> to vector<3x512xf32>
    %265 = arith.mulf %264, %263 : vector<3x512xf32>
    %266 = arith.addf %259, %265 : vector<3x512xf32>
    %cst_71 = arith.constant dense<0.000000e+00> : vector<512xf32>
    %267 = vector.multi_reduction <add>, %266, %cst_71 [0] : vector<3x512xf32> to vector<512xf32>
    %268 = vector.shape_cast %267 : vector<512xf32> to vector<1x512xf32>
    %269 = arith.negf %268 : vector<1x512xf32>
    %270 = math.exp %269 : vector<1x512xf32>
    %cst_72 = arith.constant 1.000000e+00 : f32
    %271 = vector.broadcast %cst_72 : f32 to vector<1x512xf32>
    %272 = arith.addf %271, %270 : vector<1x512xf32>
    %273 = arith.divf %271, %272 : vector<1x512xf32>
    %cst_73 = arith.constant 9.99999997E-7 : f32
    %274 = vector.broadcast %cst_73 : f32 to vector<1x512xf32>
    %275 = arith.maximumf %273, %274 : vector<1x512xf32>
    %276 = vector.broadcast %275 : vector<1x512xf32> to vector<32x512xf32>
    %277 = arith.mulf %202, %276 : vector<32x512xf32>
    %278 = vector.extract_strided_slice %2 {offsets = [0, 9], sizes = [32, 1], strides = [1, 1]} : vector<48x13xf32> to vector<32x1xf32>
    %279 = vector.broadcast %278 : vector<32x1xf32> to vector<32x512xf32>
    %280 = arith.mulf %277, %279 : vector<32x512xf32>
    %281 = vector.extract_strided_slice %2 {offsets = [0, 10], sizes = [32, 1], strides = [1, 1]} : vector<48x13xf32> to vector<32x1xf32>
    %282 = vector.broadcast %281 : vector<32x1xf32> to vector<32x512xf32>
    %283 = arith.addf %280, %282 : vector<32x512xf32>
    %cst_74 = arith.constant 0.000000e+00 : f32
    %284 = vector.broadcast %cst_74 : f32 to vector<32x512xf32>
    %285 = arith.cmpf oge, %283, %284 : vector<32x512xf32>
    %cst_75 = arith.constant 0.00999999977 : f32
    %286 = vector.broadcast %cst_75 : f32 to vector<32x512xf32>
    %287 = arith.mulf %286, %283 : vector<32x512xf32>
    %288 = arith.select %285, %283, %287 : vector<32x512xi1>, vector<32x512xf32>
    %c1_i32_76 = arith.constant 1 : i32
    %289 = tpu.dynamic_rotate %288 by %c1_i32_76 dim 1 : vector<32x512xf32>, i32 -> vector<32x512xf32>
    %290 = vector.broadcast %52 : vector<1x512xf32> to vector<32x512xf32>
    %291 = arith.mulf %290, %289 : vector<32x512xf32>
    %c0_77 = arith.constant 0 : index
    %c0_78 = arith.constant 0 : index
    %292 = vector.load %arg8[%c0_77, %c0_78] : memref<176x512xf32, #tpu.memory_space<vmem>>, vector<32x512xf32>
    tpu.vector_store %arg8[%c0_77, %c0_78], %291 {strides = array<i32>} : memref<176x512xf32, #tpu.memory_space<vmem>>, vector<32x512xf32>,
    %c32 = arith.constant 32 : index
    %c0_79 = arith.constant 0 : index
    %293 = vector.load %arg8[%c32, %c0_79] : memref<176x512xf32, #tpu.memory_space<vmem>>, vector<32x512xf32>
    tpu.vector_store %arg8[%c32, %c0_79], %288 {strides = array<i32>} : memref<176x512xf32, #tpu.memory_space<vmem>>, vector<32x512xf32>,
    %c511_i32_80 = arith.constant 511 : i32
    %294 = tpu.dynamic_rotate %288 by %c511_i32_80 dim 1 : vector<32x512xf32>, i32 -> vector<32x512xf32>
    %295 = vector.broadcast %63 : vector<1x512xf32> to vector<32x512xf32>
    %296 = arith.mulf %295, %294 : vector<32x512xf32>
    %c64 = arith.constant 64 : index
    %c0_81 = arith.constant 0 : index
    %297 = vector.load %arg8[%c64, %c0_81] : memref<176x512xf32, #tpu.memory_space<vmem>>, vector<32x512xf32>
    tpu.vector_store %arg8[%c64, %c0_81], %296 {strides = array<i32>} : memref<176x512xf32, #tpu.memory_space<vmem>>, vector<32x512xf32>,
    %c0_82 = arith.constant 0 : index
    %c0_83 = arith.constant 0 : index
    %298 = vector.load %arg4[%c0_82, %c0_83] : memref<48x96xf32, #tpu.memory_space<vmem>>, vector<48x96xf32>
    %c0_84 = arith.constant 0 : index
    %c0_85 = arith.constant 0 : index
    %299 = vector.load %arg8[%c0_84, %c0_85] : memref<176x512xf32, #tpu.memory_space<vmem>>, vector<96x512xf32>
    %cst_86 = arith.constant dense<0.000000e+00> : vector<48x512xf32>
    %300 = tpu.matmul %298, %299, %cst_86 {dimension_numbers = #tpu.dot_dimension_numbers<[1], [0], [0], [1], [0, 0, 1, 1], [], []>} : vector<48x96xf32>, vector<96x512xf32>, vector<48x512xf32> -> vector<48x512xf32>
    %301 = vector.extract_strided_slice %2 {offsets = [0, 11], sizes = [48, 1], strides = [1, 1]} : vector<48x13xf32> to vector<48x1xf32>
    %302 = vector.broadcast %301 : vector<48x1xf32> to vector<48x512xf32>
    %303 = arith.addf %300, %302 : vector<48x512xf32>
    %cst_87 = arith.constant 0.000000e+00 : f32
    %304 = vector.broadcast %cst_87 : f32 to vector<48x512xf32>
    %305 = arith.cmpf oge, %303, %304 : vector<48x512xf32>
    %cst_88 = arith.constant 0.00999999977 : f32
    %306 = vector.broadcast %cst_88 : f32 to vector<48x512xf32>
    %307 = arith.mulf %306, %303 : vector<48x512xf32>
    %308 = arith.select %305, %303, %307 : vector<48x512xi1>, vector<48x512xf32>
    %c1_i32_89 = arith.constant 1 : i32
    %309 = tpu.dynamic_rotate %308 by %c1_i32_89 dim 1 : vector<48x512xf32>, i32 -> vector<48x512xf32>
    %310 = vector.broadcast %52 : vector<1x512xf32> to vector<48x512xf32>
    %311 = arith.mulf %310, %309 : vector<48x512xf32>
    %c0_90 = arith.constant 0 : index
    %c0_91 = arith.constant 0 : index
    %312 = vector.load %arg8[%c0_90, %c0_91] : memref<176x512xf32, #tpu.memory_space<vmem>>, vector<48x512xf32>
    tpu.vector_store %arg8[%c0_90, %c0_91], %311 {strides = array<i32>} : memref<176x512xf32, #tpu.memory_space<vmem>>, vector<48x512xf32>,
    %c48 = arith.constant 48 : index
    %c0_92 = arith.constant 0 : index
    %313 = vector.load %arg8[%c48, %c0_92] : memref<176x512xf32, #tpu.memory_space<vmem>>, vector<48x512xf32>
    tpu.vector_store %arg8[%c48, %c0_92], %308 {strides = array<i32>} : memref<176x512xf32, #tpu.memory_space<vmem>>, vector<48x512xf32>,
    %c511_i32_93 = arith.constant 511 : i32
    %314 = tpu.dynamic_rotate %308 by %c511_i32_93 dim 1 : vector<48x512xf32>, i32 -> vector<48x512xf32>
    %315 = vector.broadcast %63 : vector<1x512xf32> to vector<48x512xf32>
    %316 = arith.mulf %315, %314 : vector<48x512xf32>
    %c96 = arith.constant 96 : index
    %c0_94 = arith.constant 0 : index
    %317 = vector.load %arg8[%c96, %c0_94] : memref<176x512xf32, #tpu.memory_space<vmem>>, vector<48x512xf32>
    tpu.vector_store %arg8[%c96, %c0_94], %316 {strides = array<i32>} : memref<176x512xf32, #tpu.memory_space<vmem>>, vector<48x512xf32>,
    %c144 = arith.constant 144 : index
    %c0_95 = arith.constant 0 : index
    %318 = vector.load %arg8[%c144, %c0_95] : memref<176x512xf32, #tpu.memory_space<vmem>>, vector<32x512xf32>
    tpu.vector_store %arg8[%c144, %c0_95], %1 {strides = array<i32>} : memref<176x512xf32, #tpu.memory_space<vmem>>, vector<32x512xf32>,
    %c0_96 = arith.constant 0 : index
    %c0_97 = arith.constant 0 : index
    %319 = vector.load %arg5[%c0_96, %c0_97] : memref<48x176xf32, #tpu.memory_space<vmem>>, vector<48x176xf32>
    %c0_98 = arith.constant 0 : index
    %c0_99 = arith.constant 0 : index
    %320 = vector.load %arg8[%c0_98, %c0_99] : memref<176x512xf32, #tpu.memory_space<vmem>>, vector<176x512xf32>
    %cst_100 = arith.constant dense<0.000000e+00> : vector<48x512xf32>
    %321 = tpu.matmul %319, %320, %cst_100 {dimension_numbers = #tpu.dot_dimension_numbers<[1], [0], [0], [1], [0, 0, 1, 1], [], []>} : vector<48x176xf32>, vector<176x512xf32>, vector<48x512xf32> -> vector<48x512xf32>
    %322 = vector.extract_strided_slice %2 {offsets = [0, 12], sizes = [48, 1], strides = [1, 1]} : vector<48x13xf32> to vector<48x1xf32>
    %323 = vector.broadcast %322 : vector<48x1xf32> to vector<48x512xf32>
    %324 = arith.addf %321, %323 : vector<48x512xf32>
    %c0_101 = arith.constant 0 : index
    %c0_102 = arith.constant 0 : index
    %c0_103 = arith.constant 0 : index
    %325 = vector.load %arg7[%c0_101, %c0_102, %c0_103] : memref<1x48x512xf32, #tpu.memory_space<vmem>>, vector<1x48x512xf32>
    %326 = vector.shape_cast %325 : vector<1x48x512xf32> to vector<48x512xf32>
    %327 = vector.shape_cast %324 : vector<48x512xf32> to vector<1x48x512xf32>
    tpu.vector_store %arg7[%c0_101, %c0_102, %c0_103], %327 {strides = array<i32>} : memref<1x48x512xf32, #tpu.memory_space<vmem>>, vector<1x48x512xf32>,
    return
  }
  func.func @transform_0(%arg0: i32) -> (i32, i32, i32) {
    %c0_i32 = arith.constant 0 : i32
    %c0_i32_0 = arith.constant 0 : i32
    %c0_i32_1 = arith.constant 0 : i32
    return %arg0, %c0_i32, %c0_i32_0 : i32, i32, i32
  }
  func.func @transform_1(%arg0: i32) -> (i32, i32) {
    %c0_i32 = arith.constant 0 : i32
    %c0_i32_0 = arith.constant 0 : i32
    %c0_i32_1 = arith.constant 0 : i32
    return %c0_i32, %c0_i32_0 : i32, i32
  }
  func.func @transform_2(%arg0: i32) -> (i32, i32) {
    %c0_i32 = arith.constant 0 : i32
    %c0_i32_0 = arith.constant 0 : i32
    %c0_i32_1 = arith.constant 0 : i32
    return %c0_i32, %c0_i32_0 : i32, i32
  }
  func.func @transform_3(%arg0: i32) -> (i32, i32) {
    %c0_i32 = arith.constant 0 : i32
    %c0_i32_0 = arith.constant 0 : i32
    %c0_i32_1 = arith.constant 0 : i32
    return %c0_i32, %c0_i32_0 : i32, i32
  }
  func.func @transform_4(%arg0: i32) -> (i32, i32) {
    %c0_i32 = arith.constant 0 : i32
    %c0_i32_0 = arith.constant 0 : i32
    %c0_i32_1 = arith.constant 0 : i32
    return %c0_i32, %c0_i32_0 : i32, i32
  }
  func.func @transform_5(%arg0: i32) -> (i32, i32) {
    %c0_i32 = arith.constant 0 : i32
    %c0_i32_0 = arith.constant 0 : i32
    %c0_i32_1 = arith.constant 0 : i32
    return %c0_i32, %c0_i32_0 : i32, i32
  }
  func.func @transform_6(%arg0: i32) -> (i32, i32, i32) {
    %c0_i32 = arith.constant 0 : i32
    %c0_i32_0 = arith.constant 0 : i32
    %c0_i32_1 = arith.constant 0 : i32
    return %arg0, %c0_i32, %c0_i32_0 : i32, i32, i32
  }
}

</mosaic_0001>

<llo_original>
// kernel: tpu_custom_call.1
$region0: #{tpu_custom_call.1}
  #allocation0 [shape = 'u32[]', space=smem, size = 0x4, offset = 0x4, fixed_abs, tag = 'smem constant byte address 0x4 - core index']
  #allocation1 [shape = 'u32[144,128]{1,0:T(1,128)}', space=vmem, size = 0x12000, scoped, tag = 'internal scratch']
  #allocation2 [shape = 'f32[176,512]{1,0:T(8,128)}', space=vmem, size = 0x58000, scoped, tag = 'scratch operand']
  %s0 = inlined_call_operand.hbm [shape: f32[2,32,512], index: 0, kind: input, shape index: {}]
  %s1 = inlined_call_operand.vmem [shape: f32[2,96], index: 1, kind: input, shape index: {}]
  %s2 = inlined_call_operand.vmem [shape: f32[32,2], index: 2, kind: input, shape index: {}]
  %s3 = inlined_call_operand.hbm [shape: f32[48,96], index: 3, kind: input, shape index: {}]
  %s4 = inlined_call_operand.vmem [shape: f32[48,176], index: 4, kind: input, shape index: {}]
  %s5 = inlined_call_operand.vmem [shape: f32[48,13], index: 5, kind: input, shape index: {}]
  %s6 = inlined_call_operand.hbm [shape: f32[2,48,512], index: 6, kind: output, shape index: {}]
  %s7 = sld [smem:[#allocation0]]
  $region65: #{tpu_custom_call.1} parent=0
    _
  %s9 = ssub.s32 1, %s7
  %s10 = scalar_select 0, %s9, %s7
  $region1: #{tpu_custom_call.1} parent=0
    #allocation3 [shape = 'u8[131072]{0}', space=vmem, size = 0x20000, scoped, tag = 'input window, operand 0']
    #allocation4 [shape = 's32[2]{0}', space=sflag, size = 0x8, scoped, tag = 'scoped memory for tpu_custom_call.1']
    #allocation5 [shape = 's32[2]{0}', space=sflag, size = 0x8, scoped, tag = 'scoped memory for tpu_custom_call.1']
    #allocation6 [shape = 'u8[24576]{0}', space=vmem, size = 0x6000, scoped, tag = 'input window, operand 3, single buffered']
    #allocation7 [shape = 's32[1]{0}', space=sflag, size = 0x4, scoped, tag = 'scoped memory for tpu_custom_call.1']
    #allocation8 [shape = 'u8[196608]{0}', space=vmem, size = 0x30000, scoped, tag = 'output window, operand 0']
    %11 = vsyncpa [#allocation4], 0
    %s12 = scalar_lea.sflag [#allocation4], 1
    %13 = vsyncpa %s12, 0
    %14 = vsyncpa [#allocation7], 0
    %15 = vsyncpa [#allocation5], 0
    %s16 = scalar_lea.sflag [#allocation5], 1
    %17 = vsyncpa %s16, 0
    loop: start=0, step=1, limit=4
    $region2: #{tpu_custom_call.1} parent=1 // loop_pre_header
      _
    $region3: #{tpu_custom_call.1} parent=1 // loop_header
      %s19 = sphi 0, %s23
      %p20 = scmp.ge.s32.totalorder %s19, 4
      %s29 = sphi 0, %s31
      %s32 = sphi 0, %s29
      %s33 = sphi 0, %s32
      %s49 = sphi 0, %s33
      %s53 = sphi 0, %s53
      %s55 = sphi 0, %s53
      %s56 = sphi 0, %s55
      %s70 = sphi 0, %s56
      %s74 = sphi 0, %s74
      %s76 = sphi 0, %s74
      %s77 = sphi 0, %s76
      %s91 = sphi 0, %s77
      %s95 = sphi 0, %s95
      %s97 = sphi 0, %s95
      %s98 = sphi 0, %s97
      %s112 = sphi 0, %s98
      %s116 = sphi 0, %s116
      %s118 = sphi 0, %s116
      %s119 = sphi 0, %s118
      %s133 = sphi 0, %s119
      %s137 = sphi 0, %s137
      %s139 = sphi 0, %s137
      %s140 = sphi 0, %s139
      %s154 = sphi 0, %s140
      %s160 = sphi 0, %s162
      %s163 = sphi 0, %s160
      %s164 = sphi 0, %s163
      %s180 = sphi 0, %s164
    $region4: #{tpu_custom_call.1} parent=1 // loop_header_branch
      %22 = sbr.rel (%p20) target = $region8
    $region5: #{tpu_custom_call.1} parent=1 // loop_body
      %s24 = ssub.s32 %s19, 1
      %s25 = ssub.s32 %s19, 2
      %s26 = sadd.s32 %s19, 1
      %s27 = ssub.s32 %s19, %s26
      %p28 = scmp.eq.s32.totalorder %s27, 0
      %s30 = sadd.s32 %s29, 1
      %s31 = scalar_select %p28, %s29, %s30
      %p34 = pneg %p28
      %p35 = scmp.eq.s32.totalorder %s19, 1
      %p36 = por %p34, %p35
      %p37 = scmp.ne.s32.totalorder %s29, %s32
      %p38 = scmp.eq.s32.totalorder %s19, 0
      %p39 = por %p37, %p38
      %p40 = scmp.ne.s32.totalorder %s29, %s32
      %p41 = scmp.eq.s32.totalorder %s24, 1
      %p42 = por %p40, %p41
      %p43 = scmp.ne.s32.totalorder %s32, %s33
      %p44 = scmp.eq.s32.totalorder %s24, 0
      %p45 = por %p43, %p44
      %p46 = scmp.ne.s32.totalorder %s32, %s33
      %p47 = scmp.eq.s32.totalorder %s25, 1
      %p48 = por %p46, %p47
      %p50 = scmp.ne.s32.totalorder %s33, %s49
      %p51 = scmp.eq.s32.totalorder %s25, 0
      %p52 = por %p50, %p51
      %s54 = sadd.s32 %s53, 1
      %p57 = scmp.eq.s32.totalorder %s19, 1
      %p58 = scmp.ne.s32.totalorder %s53, %s55
      %p59 = scmp.eq.s32.totalorder %s19, 0
      %p60 = por %p58, %p59
      %p61 = scmp.ne.s32.totalorder %s53, %s55
      %p62 = scmp.eq.s32.totalorder %s24, 1
      %p63 = por %p61, %p62
      %p64 = scmp.ne.s32.totalorder %s55, %s56
      %p65 = scmp.eq.s32.totalorder %s24, 0
      %p66 = por %p64, %p65
      %p67 = scmp.ne.s32.totalorder %s55, %s56
      %p68 = scmp.eq.s32.totalorder %s25, 1
      %p69 = por %p67, %p68
      %p71 = scmp.ne.s32.totalorder %s56, %s70
      %p72 = scmp.eq.s32.totalorder %s25, 0
      %p73 = por %p71, %p72
      %s75 = sadd.s32 %s74, 1
      %p78 = scmp.eq.s32.totalorder %s19, 1
      %p79 = scmp.ne.s32.totalorder %s74, %s76
      %p80 = scmp.eq.s32.totalorder %s19, 0
      %p81 = por %p79, %p80
      %p82 = scmp.ne.s32.totalorder %s74, %s76
      %p83 = scmp.eq.s32.totalorder %s24, 1
      %p84 = por %p82, %p83
      %p85 = scmp.ne.s32.totalorder %s76, %s77
      %p86 = scmp.eq.s32.totalorder %s24, 0
      %p87 = por %p85, %p86
      %p88 = scmp.ne.s32.totalorder %s76, %s77
      %p89 = scmp.eq.s32.totalorder %s25, 1
      %p90 = por %p88, %p89
      %p92 = scmp.ne.s32.totalorder %s77, %s91
      %p93 = scmp.eq.s32.totalorder %s25, 0
      %p94 = por %p92, %p93
      %s96 = sadd.s32 %s95, 1
      %p99 = scmp.eq.s32.totalorder %s19, 1
      %p100 = scmp.ne.s32.totalorder %s95, %s97
      %p101 = scmp.eq.s32.totalorder %s19, 0
      %p102 = por %p100, %p101
      %p103 = scmp.ne.s32.totalorder %s95, %s97
      %p104 = scmp.eq.s32.totalorder %s24, 1
      %p105 = por %p103, %p104
      %p106 = scmp.ne.s32.totalorder %s97, %s98
      %p107 = scmp.eq.s32.totalorder %s24, 0
      %p108 = por %p106, %p107
      %p109 = scmp.ne.s32.totalorder %s97, %s98
      %p110 = scmp.eq.s32.totalorder %s25, 1
      %p111 = por %p109, %p110
      %p113 = scmp.ne.s32.totalorder %s98, %s112
      %p114 = scmp.eq.s32.totalorder %s25, 0
      %p115 = por %p113, %p114
      %s117 = sadd.s32 %s116, 1
      %p120 = scmp.eq.s32.totalorder %s19, 1
      %p121 = scmp.ne.s32.totalorder %s116, %s118
      %p122 = scmp.eq.s32.totalorder %s19, 0
      %p123 = por %p121, %p122
      %p124 = scmp.ne.s32.totalorder %s116, %s118
      %p125 = scmp.eq.s32.totalorder %s24, 1
      %p126 = por %p124, %p125
      %p127 = scmp.ne.s32.totalorder %s118, %s119
      %p128 = scmp.eq.s32.totalorder %s24, 0
      %p129 = por %p127, %p128
      %p130 = scmp.ne.s32.totalorder %s118, %s119
      %p131 = scmp.eq.s32.totalorder %s25, 1
      %p132 = por %p130, %p131
      %p134 = scmp.ne.s32.totalorder %s119, %s133
      %p135 = scmp.eq.s32.totalorder %s25, 0
      %p136 = por %p134, %p135
      %s138 = sadd.s32 %s137, 1
      %p141 = scmp.eq.s32.totalorder %s19, 1
      %p142 = scmp.ne.s32.totalorder %s137, %s139
      %p143 = scmp.eq.s32.totalorder %s19, 0
      %p144 = por %p142, %p143
      %p145 = scmp.ne.s32.totalorder %s137, %s139
      %p146 = scmp.eq.s32.totalorder %s24, 1
      %p147 = por %p145, %p146
      %p148 = scmp.ne.s32.totalorder %s139, %s140
      %p149 = scmp.eq.s32.totalorder %s24, 0
      %p150 = por %p148, %p149
      %p151 = scmp.ne.s32.totalorder %s139, %s140
      %p152 = scmp.eq.s32.totalorder %s25, 1
      %p153 = por %p151, %p152
      %p155 = scmp.ne.s32.totalorder %s140, %s154
      %p156 = scmp.eq.s32.totalorder %s25, 0
      %p157 = por %p155, %p156
      %s158 = ssub.s32 %s19, %s26
      %p159 = scmp.eq.s32.totalorder %s158, 0
      %s161 = sadd.s32 %s160, 1
      %s162 = scalar_select %p159, %s160, %s161
      %p165 = pneg %p159
      %p166 = scmp.eq.s32.totalorder %s19, 1
      %p167 = por %p165, %p166
      %p168 = scmp.ne.s32.totalorder %s160, %s163
      %p169 = scmp.eq.s32.totalorder %s19, 0
      %p170 = por %p168, %p169
      %p171 = scmp.ne.s32.totalorder %s160, %s163
      %p172 = scmp.eq.s32.totalorder %s24, 1
      %p173 = por %p171, %p172
      %p174 = scmp.ne.s32.totalorder %s163, %s164
      %p175 = scmp.eq.s32.totalorder %s24, 0
      %p176 = por %p174, %p175
      %p177 = scmp.ne.s32.totalorder %s163, %s164
      %p178 = scmp.eq.s32.totalorder %s25, 1
      %p179 = por %p177, %p178
      %p181 = scmp.ne.s32.totalorder %s164, %s180
      %p182 = scmp.eq.s32.totalorder %s25, 0
      %p183 = por %p181, %p182
      %p184 = scmp.le.s32.totalorder 1, %s19
      %p185 = scmp.lt.s32.totalorder %s19, 3
      %p186 = pnand %p184, %p185
      %p187 = pneg %p186
      // Predicated region
      $region9: #{tpu_custom_call.1} parent=5 // pred_check
        _
      $region10: #{tpu_custom_call.1} parent=5 // pred_check_branch
        %189 = sbr.rel (%p186) target = $region12
      $region11: #{tpu_custom_call.1} parent=5 // pred_region
        %s190 = ssub.s32 %s19, 1
        // Predicated region
        $region13: #{tpu_custom_call.1} parent=11 // pred_check
          %p191 = pneg %p66
        $region14: #{tpu_custom_call.1} parent=11 // pred_check_branch
          %193 = sbr.rel (%p191) target = $region16
        $region15: #{tpu_custom_call.1} parent=11 // pred_region
          _
        $region16: #{tpu_custom_call.1} parent=11 // pred_fallthru
          _
        // Predicated region
        $region17: #{tpu_custom_call.1} parent=11 // pred_check
          %p194 = pneg %p87
        $region18: #{tpu_custom_call.1} parent=11 // pred_check_branch
          %196 = sbr.rel (%p194) target = $region20
        $region19: #{tpu_custom_call.1} parent=11 // pred_region
          _
        $region20: #{tpu_custom_call.1} parent=11 // pred_fallthru
          _
        // Predicated region
        $region21: #{tpu_custom_call.1} parent=11 // pred_check
          %p197 = pneg %p108
        $region22: #{tpu_custom_call.1} parent=11 // pred_check_branch
          %199 = sbr.rel (%p197) target = $region24
        $region23: #{tpu_custom_call.1} parent=11 // pred_region
          %s201 = ssub.s32 768, 768
          %202 = vsyncadd [#allocation7], %s201
          %s203 = sshll.u32 [#allocation6], 4
          %s204 = int_to_ptr.vmem [resolvable:$true] %s203
          %209 = dma.hbm_to_vmem [thread:$0]  %s3, 768, %s204, [#allocation7], 128, 128, 8
        $region24: #{tpu_custom_call.1} parent=11 // pred_fallthru
          _
        // Predicated region
        $region25: #{tpu_custom_call.1} parent=11 // pred_check
          %p210 = pneg %p129
        $region26: #{tpu_custom_call.1} parent=11 // pred_check_branch
          %212 = sbr.rel (%p210) target = $region28
        $region27: #{tpu_custom_call.1} parent=11 // pred_region
          _
        $region28: #{tpu_custom_call.1} parent=11 // pred_fallthru
          _
        // Predicated region
        $region29: #{tpu_custom_call.1} parent=11 // pred_check
          %p213 = pneg %p150
        $region30: #{tpu_custom_call.1} parent=11 // pred_check_branch
          %215 = sbr.rel (%p213) target = $region32
        $region31: #{tpu_custom_call.1} parent=11 // pred_region
          _
        $region32: #{tpu_custom_call.1} parent=11 // pred_fallthru
          _
      $region12: #{tpu_custom_call.1} parent=5 // pred_fallthru
        _
      %p216 = scmp.lt.s32.totalorder %s19, 2
      // Predicated region
      $region33: #{tpu_custom_call.1} parent=5 // pred_check
        %p217 = pneg %p216
      $region34: #{tpu_custom_call.1} parent=5 // pred_check_branch
        %219 = sbr.rel (%p217) target = $region36
      $region35: #{tpu_custom_call.1} parent=5 // pred_region
        // Predicated region
        $region37: #{tpu_custom_call.1} parent=35 // pred_check
          %p220 = pneg %p39
        $region38: #{tpu_custom_call.1} parent=35 // pred_check_branch
          %222 = sbr.rel (%p220) target = $region40
        $region39: #{tpu_custom_call.1} parent=35 // pred_region
          %s223 = sand.u32 %s29, 1
          %s224 = scalar_lea.sflag [#allocation4], %s223
          %s225 = sand.u32 %s29, 1
          %s226 = smul.addr %s225, 128
          %s227 = scalar_lea.vmem [#allocation3], %s226
          %s229 = ssub.s32 2048, 2048
          %230 = vsyncadd %s224, %s229
          %s231 = smul.addr %s19, 16
          %s232 = smul.addr %s231, 128
          %s233 = scalar_lea.hbm %s0, %s232
          %s234 = sshll.u32 %s227, 4
          %s235 = int_to_ptr.vmem [resolvable:$true] %s234
          %240 = dma.hbm_to_vmem [thread:$0]  %s233, 2048, %s235, %s224, 512, 512, 32
        $region40: #{tpu_custom_call.1} parent=35 // pred_fallthru
          _
      $region36: #{tpu_custom_call.1} parent=5 // pred_fallthru
        _
      %p241 = scmp.le.s32.totalorder 1, %s19
      %p242 = scmp.lt.s32.totalorder %s19, 3
      %p243 = pnand %p241, %p242
      %p244 = pneg %p243
      // Predicated region
      $region41: #{tpu_custom_call.1} parent=5 // pred_check
        _
      $region42: #{tpu_custom_call.1} parent=5 // pred_check_branch
        %246 = sbr.rel (%p243) target = $region44
      $region43: #{tpu_custom_call.1} parent=5 // pred_region
        %s247 = ssub.s32 %s19, 1
        %s248 = sand.u32 %s32, 1
        %s249 = scalar_lea.sflag [#allocation4], %s248
        %s250 = sand.u32 %s32, 1
        %s251 = smul.addr %s250, 128
        %s252 = scalar_lea.vmem [#allocation3], %s251
        // Predicated region
        $region45: #{tpu_custom_call.1} parent=43 // pred_check
          %p253 = pneg %p45
        $region46: #{tpu_custom_call.1} parent=43 // pred_check_branch
          %255 = sbr.rel (%p253) target = $region48
        $region47: #{tpu_custom_call.1} parent=43 // pred_region
          %256 = dma.done %s249, 2048
        $region48: #{tpu_custom_call.1} parent=43 // pred_fallthru
          _
        // Predicated region
        $region49: #{tpu_custom_call.1} parent=43 // pred_check
          %p257 = pneg %p108
        $region50: #{tpu_custom_call.1} parent=43 // pred_check_branch
          %259 = sbr.rel (%p257) target = $region52
        $region51: #{tpu_custom_call.1} parent=43 // pred_region
          %260 = dma.done [#allocation7], 768
        $region52: #{tpu_custom_call.1} parent=43 // pred_fallthru
          _
        %s261 = sand.u32 %s32, 1
        %s262 = scalar_lea.sflag [#allocation4], %s261
        %s263 = sand.u32 %s32, 1
        %s264 = smul.addr %s263, 128
        %s265 = scalar_lea.vmem [#allocation3], %s264
        %p266 = pneg %p45
        %p267 = pneg %p42
        %p268 = pneg %p66
        %p269 = pneg %p63
        %p270 = pneg %p87
        %p271 = pneg %p84
        %p272 = pneg %p108
        %p273 = pneg %p105
        %p274 = pneg %p129
        %p275 = pneg %p126
        %p276 = pneg %p150
        %p277 = pneg %p147
        %p278 = pneg %p176
        %p279 = pneg %p173
        %s280 = sand.u32 %s163, 1
        %s281 = scalar_lea.sflag [#allocation5], %s280
        %s282 = sand.u32 %s163, 1
        %s283 = smul.addr %s282, 192
        %s284 = scalar_lea.vmem [#allocation8], %s283
        %v285 = vld [vmem:[%s252] sm:$0xff]
        %v286 = vld [vmem:[%s252 + $0x8] sm:$0xff]
        %v287 = vld [vmem:[%s252 + $0x10] sm:$0xff]
        %v288 = vld [vmem:[%s252 + $0x18] sm:$0xff]
        %v289 = vld [vmem:[%s252 + $0x20] sm:$0xff]
        %v290 = vld [vmem:[%s252 + $0x28] sm:$0xff]
        %v291 = vld [vmem:[%s252 + $0x30] sm:$0xff]
        %v292 = vld [vmem:[%s252 + $0x38] sm:$0xff]
        %v293 = vld [vmem:[%s252 + $0x40] sm:$0xff]
        %v294 = vld [vmem:[%s252 + $0x48] sm:$0xff]
        %v295 = vld [vmem:[%s252 + $0x50] sm:$0xff]
        %v296 = vld [vmem:[%s252 + $0x58] sm:$0xff]
        %v297 = vld [vmem:[%s252 + $0x60] sm:$0xff]
        %v298 = vld [vmem:[%s252 + $0x68] sm:$0xff]
        %v299 = vld [vmem:[%s252 + $0x70] sm:$0xff]
        %v300 = vld [vmem:[%s252 + $0x78] sm:$0xff]
        %v301 = vld [vmem:[%s5] sm:$0xff]
        %v302 = vld [vmem:[%s5 + $0x8] sm:$0xff]
        %v303 = vld [vmem:[%s5 + $0x10] sm:$0xff]
        %v304 = vld [vmem:[%s5 + $0x18] sm:$0xff]
        %v305 = vld [vmem:[%s5 + $0x20] sm:$0xff]
        %v306 = vld [vmem:[%s5 + $0x28] sm:$0xff]
        %v307 = vlaneseq
        %v308 = vand.u32 %v307, 127
        %v309 = vadd.s32 %v308, 128
        %v310 = vadd.s32 %v308, 256
        %v311 = vadd.s32 %v308, 384
        %vm312 = vcmp.lt.s32.totalorder %v308, 0
        %v313 = vsub.s32 0, %v308
        %v314 = vsel %vm312, %v313, %v308
        %v315 = vshrl.u32 %v314, 7
        %v316 = vand.u32 %v314, 127
        %v317 = vsub.s32 0, %v316
        %v318 = vsel %vm312, %v317, %v316
        %vm319 = vcmp.lt.s32.totalorder %v309, 0
        %v320 = vsub.s32 0, %v309
        %v321 = vsel %vm319, %v320, %v309
        %v322 = vshrl.u32 %v321, 7
        %v323 = vand.u32 %v321, 127
        %v324 = vsub.s32 0, %v323
        %v325 = vsel %vm319, %v324, %v323
        %vm326 = vcmp.lt.s32.totalorder %v310, 0
        %v327 = vsub.s32 0, %v310
        %v328 = vsel %vm326, %v327, %v310
        %v329 = vshrl.u32 %v328, 7
        %v330 = vand.u32 %v328, 127
        %v331 = vsub.s32 0, %v330
        %v332 = vsel %vm326, %v331, %v330
        %vm333 = vcmp.lt.s32.totalorder %v311, 0
        %v334 = vsub.s32 0, %v311
        %v335 = vsel %vm333, %v334, %v311
        %v336 = vshrl.u32 %v335, 7
        %v337 = vand.u32 %v335, 127
        %v338 = vsub.s32 0, %v337
        %v339 = vsel %vm333, %v338, %v337
        %vm340 = vcmp.ne.s32.totalorder %v318, 0
        %vm341 = vcmp.ne.s32.totalorder %v325, 0
        %vm342 = vcmp.ne.s32.totalorder %v332, 0
        %vm343 = vcmp.ne.s32.totalorder %v339, 0
        %vm344 = vcmp.lt.s32.totalorder %v318, 0
        %vm345 = vcmp.lt.s32.totalorder %v325, 0
        %vm346 = vcmp.lt.s32.totalorder %v332, 0
        %vm347 = vcmp.lt.s32.totalorder %v339, 0
        %vm348 = vmand %vm344, %vm340
        %vm349 = vmand %vm345, %vm341
        %vm350 = vmand %vm346, %vm342
        %vm351 = vmand %vm347, %vm343
        %v352 = vadd.s32 %v318, 128
        %v353 = vadd.s32 %v325, 128
        %v354 = vadd.s32 %v332, 128
        %v355 = vadd.s32 %v339, 128
        %v356 = vsel %vm348, %v352, %v318
        %v357 = vsel %vm349, %v353, %v325
        %v358 = vsel %vm350, %v354, %v332
        %v359 = vsel %vm351, %v355, %v339
        %v360 = vadd.s32 %v356, 4294967293
        %v361 = vadd.s32 %v357, 4294967293
        %v362 = vadd.s32 %v358, 4294967293
        %v363 = vadd.s32 %v359, 4294967293
        %vm364 = vcmp.ge.s32.totalorder %v360, 0
        %vm365 = vcmp.ge.s32.totalorder %v361, 0
        %vm366 = vcmp.ge.s32.totalorder %v362, 0
        %vm367 = vcmp.ge.s32.totalorder %v363, 0
        %vm368 = vcmp.le.s32.totalorder %v360, 127
        %vm369 = vcmp.le.s32.totalorder %v361, 127
        %vm370 = vcmp.le.s32.totalorder %v362, 127
        %vm371 = vcmp.le.s32.totalorder %v363, 127
        %vm372 = vmand %vm364, %vm368
        %vm373 = vmand %vm365, %vm369
        %vm374 = vmand %vm366, %vm370
        %vm375 = vmand %vm367, %vm371
        %v376 = vsel %vm372, 1, 0
        %v377 = vsel %vm373, 1, 0
        %v378 = vsel %vm374, 1, 0
        %v379 = vsel %vm375, 1, 0
        %v380 = vcvt.s32.f32 %v376
        %v381 = vcvt.s32.f32 %v377
        %v382 = vcvt.s32.f32 %v378
        %v383 = vcvt.s32.f32 %v379
        %v384 = vadd.s32 %v356, 4294967294
        %v385 = vadd.s32 %v357, 4294967294
        %v386 = vadd.s32 %v358, 4294967294
        %v387 = vadd.s32 %v359, 4294967294
        %vm388 = vcmp.ge.s32.totalorder %v384, 0
        %vm389 = vcmp.ge.s32.totalorder %v385, 0
        %vm390 = vcmp.ge.s32.totalorder %v386, 0
        %vm391 = vcmp.ge.s32.totalorder %v387, 0
        %vm392 = vcmp.le.s32.totalorder %v384, 127
        %vm393 = vcmp.le.s32.totalorder %v385, 127
        %vm394 = vcmp.le.s32.totalorder %v386, 127
        %vm395 = vcmp.le.s32.totalorder %v387, 127
        %vm396 = vmand %vm388, %vm392
        %vm397 = vmand %vm389, %vm393
        %vm398 = vmand %vm390, %vm394
        %vm399 = vmand %vm391, %vm395
        %v400 = vsel %vm396, 1, 0
        %v401 = vsel %vm397, 1, 0
        %v402 = vsel %vm398, 1, 0
        %v403 = vsel %vm399, 1, 0
        %v404 = vcvt.s32.f32 %v400
        %v405 = vcvt.s32.f32 %v401
        %v406 = vcvt.s32.f32 %v402
        %v407 = vcvt.s32.f32 %v403
        %v408 = vadd.s32 %v356, 4294967295
        %v409 = vadd.s32 %v357, 4294967295
        %v410 = vadd.s32 %v358, 4294967295
        %v411 = vadd.s32 %v359, 4294967295
        %vm412 = vcmp.ge.s32.totalorder %v408, 0
        %vm413 = vcmp.ge.s32.totalorder %v409, 0
        %vm414 = vcmp.ge.s32.totalorder %v410, 0
        %vm415 = vcmp.ge.s32.totalorder %v411, 0
        %vm416 = vcmp.le.s32.totalorder %v408, 127
        %vm417 = vcmp.le.s32.totalorder %v409, 127
        %vm418 = vcmp.le.s32.totalorder %v410, 127
        %vm419 = vcmp.le.s32.totalorder %v411, 127
        %vm420 = vmand %vm412, %vm416
        %vm421 = vmand %vm413, %vm417
        %vm422 = vmand %vm414, %vm418
        %vm423 = vmand %vm415, %vm419
        %v424 = vsel %vm420, 1, 0
        %v425 = vsel %vm421, 1, 0
        %v426 = vsel %vm422, 1, 0
        %v427 = vsel %vm423, 1, 0
        %v428 = vcvt.s32.f32 %v424
        %v429 = vcvt.s32.f32 %v425
        %v430 = vcvt.s32.f32 %v426
        %v431 = vcvt.s32.f32 %v427
        %v432 = vadd.s32 %v356, 1
        %v433 = vadd.s32 %v357, 1
        %v434 = vadd.s32 %v358, 1
        %v435 = vadd.s32 %v359, 1
        %vm436 = vcmp.ge.s32.totalorder %v432, 0
        %vm437 = vcmp.ge.s32.totalorder %v433, 0
        %vm438 = vcmp.ge.s32.totalorder %v434, 0
        %vm439 = vcmp.ge.s32.totalorder %v435, 0
        %vm440 = vcmp.le.s32.totalorder %v432, 127
        %vm441 = vcmp.le.s32.totalorder %v433, 127
        %vm442 = vcmp.le.s32.totalorder %v434, 127
        %vm443 = vcmp.le.s32.totalorder %v435, 127
        %vm444 = vmand %vm436, %vm440
        %vm445 = vmand %vm437, %vm441
        %vm446 = vmand %vm438, %vm442
        %vm447 = vmand %vm439, %vm443
        %v448 = vsel %vm444, 1, 0
        %v449 = vsel %vm445, 1, 0
        %v450 = vsel %vm446, 1, 0
        %v451 = vsel %vm447, 1, 0
        %v452 = vcvt.s32.f32 %v448
        %v453 = vcvt.s32.f32 %v449
        %v454 = vcvt.s32.f32 %v450
        %v455 = vcvt.s32.f32 %v451
        %v456 = vadd.s32 %v356, 2
        %v457 = vadd.s32 %v357, 2
        %v458 = vadd.s32 %v358, 2
        %v459 = vadd.s32 %v359, 2
        %vm460 = vcmp.ge.s32.totalorder %v456, 0
        %vm461 = vcmp.ge.s32.totalorder %v457, 0
        %vm462 = vcmp.ge.s32.totalorder %v458, 0
        %vm463 = vcmp.ge.s32.totalorder %v459, 0
        %vm464 = vcmp.le.s32.totalorder %v456, 127
        %vm465 = vcmp.le.s32.totalorder %v457, 127
        %vm466 = vcmp.le.s32.totalorder %v458, 127
        %vm467 = vcmp.le.s32.totalorder %v459, 127
        %vm468 = vmand %vm460, %vm464
        %vm469 = vmand %vm461, %vm465
        %vm470 = vmand %vm462, %vm466
        %vm471 = vmand %vm463, %vm467
        %v472 = vsel %vm468, 1, 0
        %v473 = vsel %vm469, 1, 0
        %v474 = vsel %vm470, 1, 0
        %v475 = vsel %vm471, 1, 0
        %v476 = vcvt.s32.f32 %v472
        %v477 = vcvt.s32.f32 %v473
        %v478 = vcvt.s32.f32 %v474
        %v479 = vcvt.s32.f32 %v475
        %v480 = vadd.s32 %v356, 3
        %v481 = vadd.s32 %v357, 3
        %v482 = vadd.s32 %v358, 3
        %v483 = vadd.s32 %v359, 3
        %vm484 = vcmp.ge.s32.totalorder %v480, 0
        %vm485 = vcmp.ge.s32.totalorder %v481, 0
        %vm486 = vcmp.ge.s32.totalorder %v482, 0
        %vm487 = vcmp.ge.s32.totalorder %v483, 0
        %vm488 = vcmp.le.s32.totalorder %v480, 127
        %vm489 = vcmp.le.s32.totalorder %v481, 127
        %vm490 = vcmp.le.s32.totalorder %v482, 127
        %vm491 = vcmp.le.s32.totalorder %v483, 127
        %vm492 = vmand %vm484, %vm488
        %vm493 = vmand %vm485, %vm489
        %vm494 = vmand %vm486, %vm490
        %vm495 = vmand %vm487, %vm491
        %v496 = vsel %vm492, 1, 0
        %v497 = vsel %vm493, 1, 0
        %v498 = vsel %vm494, 1, 0
        %v499 = vsel %vm495, 1, 0
        %v500 = vcvt.s32.f32 %v496
        %v501 = vcvt.s32.f32 %v497
        %v502 = vcvt.s32.f32 %v498
        %v503 = vcvt.s32.f32 %v499
        %504 = vadd.xlane.f32.xlu0 %v285
        %v505 = vpop.xlane.xlu0 %504
        %506 = vadd.xlane.f32.xlu0 %v289
        %v507 = vpop.xlane.xlu0 %506
        %508 = vadd.xlane.f32.xlu0 %v293
        %v509 = vpop.xlane.xlu0 %508
        %510 = vadd.xlane.f32.xlu0 %v297
        %v511 = vpop.xlane.xlu0 %510
        %v512 = vmul.f32 %v505, 0.0078125
        %v513 = vmul.f32 %v507, 0.0078125
        %v514 = vmul.f32 %v509, 0.0078125
        %v515 = vmul.f32 %v511, 0.0078125
        %v516 = vsub.f32 %v285, %v512
        %v517 = vsub.f32 %v289, %v513
        %v518 = vsub.f32 %v293, %v514
        %v519 = vsub.f32 %v297, %v515
        %v520 = vmul.f32 %v516, %v516
        %v521 = vmul.f32 %v517, %v517
        %v522 = vmul.f32 %v518, %v518
        %v523 = vmul.f32 %v519, %v519
        %524 = vadd.xlane.f32.xlu0 %v520
        %v525 = vpop.xlane.xlu0 %524
        %526 = vadd.xlane.f32.xlu0 %v521
        %v527 = vpop.xlane.xlu0 %526
        %528 = vadd.xlane.f32.xlu0 %v522
        %v529 = vpop.xlane.xlu0 %528
        %530 = vadd.xlane.f32.xlu0 %v523
        %v531 = vpop.xlane.xlu0 %530
        %v532 = vmul.f32 %v525, 0.007874016
        %v533 = vmul.f32 %v527, 0.007874016
        %v534 = vmul.f32 %v529, 0.007874016
        %v535 = vmul.f32 %v531, 0.007874016
        %v536 = vmax.f32 %v532, 0.0
        %v537 = vmax.f32 %v533, 0.0
        %v538 = vmax.f32 %v534, 0.0
        %v539 = vmax.f32 %v535, 0.0
        %v540 = vrsqrt.pop %v536
        %v541 = vmul.f32 %v536, %v540
        %vm542 = vcmp.eq.f32.partialorder %v536, inf
        %v543 = vsel %vm542, %v536, %v541
        %vm544 = vcmp.eq.f32.partialorder %v536, 0.0
        %v545 = vand.u32 %v536, 2147483648
        %v546 = vsel %vm544, %v545, %v543
        %v547 = vrsqrt.pop %v537
        %v548 = vmul.f32 %v537, %v547
        %vm549 = vcmp.eq.f32.partialorder %v537, inf
        %v550 = vsel %vm549, %v537, %v548
        %vm551 = vcmp.eq.f32.partialorder %v537, 0.0
        %v552 = vand.u32 %v537, 2147483648
        %v553 = vsel %vm551, %v552, %v550
        %v554 = vrsqrt.pop %v538
        %v555 = vmul.f32 %v538, %v554
        %vm556 = vcmp.eq.f32.partialorder %v538, inf
        %v557 = vsel %vm556, %v538, %v555
        %vm558 = vcmp.eq.f32.partialorder %v538, 0.0
        %v559 = vand.u32 %v538, 2147483648
        %v560 = vsel %vm558, %v559, %v557
        %v561 = vrsqrt.pop %v539
        %v562 = vmul.f32 %v539, %v561
        %vm563 = vcmp.eq.f32.partialorder %v539, inf
        %v564 = vsel %vm563, %v539, %v562
        %vm565 = vcmp.eq.f32.partialorder %v539, 0.0
        %v566 = vand.u32 %v539, 2147483648
        %v567 = vsel %vm565, %v566, %v564
        %v568 = vmax.f32 %v546, 1e-10
        %v569 = vmax.f32 %v553, 1e-10
        %v570 = vmax.f32 %v560, 1e-10
        %v571 = vmax.f32 %v567, 1e-10
        %572 = vmax.xlane.f32.xlu0 %v285
        %v573 = vpop.xlane.xlu0 %572
        %574 = vmax.xlane.f32.xlu0 %v289
        %v575 = vpop.xlane.xlu0 %574
        %576 = vmax.xlane.f32.xlu0 %v293
        %v577 = vpop.xlane.xlu0 %576
        %578 = vmax.xlane.f32.xlu0 %v297
        %v579 = vpop.xlane.xlu0 %578
        %580 = vadd.xlane.f32.xlu0 %v286
        %v581 = vpop.xlane.xlu0 %580
        %582 = vadd.xlane.f32.xlu0 %v290
        %v583 = vpop.xlane.xlu0 %582
        %584 = vadd.xlane.f32.xlu0 %v294
        %v585 = vpop.xlane.xlu0 %584
        %586 = vadd.xlane.f32.xlu0 %v298
        %v587 = vpop.xlane.xlu0 %586
        %v588 = vmul.f32 %v581, 0.0078125
        %v589 = vmul.f32 %v583, 0.0078125
        %v590 = vmul.f32 %v585, 0.0078125
        %v591 = vmul.f32 %v587, 0.0078125
        %v592 = vsub.f32 %v286, %v588
        %v593 = vsub.f32 %v290, %v589
        %v594 = vsub.f32 %v294, %v590
        %v595 = vsub.f32 %v298, %v591
        %v596 = vmul.f32 %v592, %v592
        %v597 = vmul.f32 %v593, %v593
        %v598 = vmul.f32 %v594, %v594
        %v599 = vmul.f32 %v595, %v595
        %600 = vadd.xlane.f32.xlu0 %v596
        %v601 = vpop.xlane.xlu0 %600
        %602 = vadd.xlane.f32.xlu0 %v597
        %v603 = vpop.xlane.xlu0 %602
        %604 = vadd.xlane.f32.xlu0 %v598
        %v605 = vpop.xlane.xlu0 %604
        %606 = vadd.xlane.f32.xlu0 %v599
        %v607 = vpop.xlane.xlu0 %606
        %v608 = vmul.f32 %v601, 0.007874016
        %v609 = vmul.f32 %v603, 0.007874016
        %v610 = vmul.f32 %v605, 0.007874016
        %v611 = vmul.f32 %v607, 0.007874016
        %v612 = vmax.f32 %v608, 0.0
        %v613 = vmax.f32 %v609, 0.0
        %v614 = vmax.f32 %v610, 0.0
        %v615 = vmax.f32 %v611, 0.0
        %v616 = vrsqrt.pop %v612
        %v617 = vmul.f32 %v612, %v616
        %vm618 = vcmp.eq.f32.partialorder %v612, inf
        %v619 = vsel %vm618, %v612, %v617
        %vm620 = vcmp.eq.f32.partialorder %v612, 0.0
        %v621 = vand.u32 %v612, 2147483648
        %v622 = vsel %vm620, %v621, %v619
        %v623 = vrsqrt.pop %v613
        %v624 = vmul.f32 %v613, %v623
        %vm625 = vcmp.eq.f32.partialorder %v613, inf
        %v626 = vsel %vm625, %v613, %v624
        %vm627 = vcmp.eq.f32.partialorder %v613, 0.0
        %v628 = vand.u32 %v613, 2147483648
        %v629 = vsel %vm627, %v628, %v626
        %v630 = vrsqrt.pop %v614
        %v631 = vmul.f32 %v614, %v630
        %vm632 = vcmp.eq.f32.partialorder %v614, inf
        %v633 = vsel %vm632, %v614, %v631
        %vm634 = vcmp.eq.f32.partialorder %v614, 0.0
        %v635 = vand.u32 %v614, 2147483648
        %v636 = vsel %vm634, %v635, %v633
        %v637 = vrsqrt.pop %v615
        %v638 = vmul.f32 %v615, %v637
        %vm639 = vcmp.eq.f32.partialorder %v615, inf
        %v640 = vsel %vm639, %v615, %v638
        %vm641 = vcmp.eq.f32.partialorder %v615, 0.0
        %v642 = vand.u32 %v615, 2147483648
        %v643 = vsel %vm641, %v642, %v640
        %v644 = vmax.f32 %v622, 1e-10
        %v645 = vmax.f32 %v629, 1e-10
        %v646 = vmax.f32 %v636, 1e-10
        %v647 = vmax.f32 %v643, 1e-10
        %648 = vmax.xlane.f32.xlu0 %v286
        %v649 = vpop.xlane.xlu0 %648
        %650 = vmax.xlane.f32.xlu0 %v290
        %v651 = vpop.xlane.xlu0 %650
        %652 = vmax.xlane.f32.xlu0 %v294
        %v653 = vpop.xlane.xlu0 %652
        %654 = vmax.xlane.f32.xlu0 %v298
        %v655 = vpop.xlane.xlu0 %654
        %656 = vadd.xlane.f32.xlu0 %v287
        %v657 = vpop.xlane.xlu0 %656
        %658 = vadd.xlane.f32.xlu0 %v291
        %v659 = vpop.xlane.xlu0 %658
        %660 = vadd.xlane.f32.xlu0 %v295
        %v661 = vpop.xlane.xlu0 %660
        %662 = vadd.xlane.f32.xlu0 %v299
        %v663 = vpop.xlane.xlu0 %662
        %v664 = vmul.f32 %v657, 0.0078125
        %v665 = vmul.f32 %v659, 0.0078125
        %v666 = vmul.f32 %v661, 0.0078125
        %v667 = vmul.f32 %v663, 0.0078125
        %v668 = vsub.f32 %v287, %v664
        %v669 = vsub.f32 %v291, %v665
        %v670 = vsub.f32 %v295, %v666
        %v671 = vsub.f32 %v299, %v667
        %v672 = vmul.f32 %v668, %v668
        %v673 = vmul.f32 %v669, %v669
        %v674 = vmul.f32 %v670, %v670
        %v675 = vmul.f32 %v671, %v671
        %676 = vadd.xlane.f32.xlu0 %v672
        %v677 = vpop.xlane.xlu0 %676
        %678 = vadd.xlane.f32.xlu0 %v673
        %v679 = vpop.xlane.xlu0 %678
        %680 = vadd.xlane.f32.xlu0 %v674
        %v681 = vpop.xlane.xlu0 %680
        %682 = vadd.xlane.f32.xlu0 %v675
        %v683 = vpop.xlane.xlu0 %682
        %v684 = vmul.f32 %v677, 0.007874016
        %v685 = vmul.f32 %v679, 0.007874016
        %v686 = vmul.f32 %v681, 0.007874016
        %v687 = vmul.f32 %v683, 0.007874016
        %v688 = vmax.f32 %v684, 0.0
        %v689 = vmax.f32 %v685, 0.0
        %v690 = vmax.f32 %v686, 0.0
        %v691 = vmax.f32 %v687, 0.0
        %v692 = vrsqrt.pop %v688
        %v693 = vmul.f32 %v688, %v692
        %vm694 = vcmp.eq.f32.partialorder %v688, inf
        %v695 = vsel %vm694, %v688, %v693
        %vm696 = vcmp.eq.f32.partialorder %v688, 0.0
        %v697 = vand.u32 %v688, 2147483648
        %v698 = vsel %vm696, %v697, %v695
        %v699 = vrsqrt.pop %v689
        %v700 = vmul.f32 %v689, %v699
        %vm701 = vcmp.eq.f32.partialorder %v689, inf
        %v702 = vsel %vm701, %v689, %v700
        %vm703 = vcmp.eq.f32.partialorder %v689, 0.0
        %v704 = vand.u32 %v689, 2147483648
        %v705 = vsel %vm703, %v704, %v702
        %v706 = vrsqrt.pop %v690
        %v707 = vmul.f32 %v690, %v706
        %vm708 = vcmp.eq.f32.partialorder %v690, inf
        %v709 = vsel %vm708, %v690, %v707
        %vm710 = vcmp.eq.f32.partialorder %v690, 0.0
        %v711 = vand.u32 %v690, 2147483648
        %v712 = vsel %vm710, %v711, %v709
        %v713 = vrsqrt.pop %v691
        %v714 = vmul.f32 %v691, %v713
        %vm715 = vcmp.eq.f32.partialorder %v691, inf
        %v716 = vsel %vm715, %v691, %v714
        %vm717 = vcmp.eq.f32.partialorder %v691, 0.0
        %v718 = vand.u32 %v691, 2147483648
        %v719 = vsel %vm717, %v718, %v716
        %v720 = vmax.f32 %v698, 1e-10
        %v721 = vmax.f32 %v705, 1e-10
        %v722 = vmax.f32 %v712, 1e-10
        %v723 = vmax.f32 %v719, 1e-10
        %724 = vmax.xlane.f32.xlu0 %v287
        %v725 = vpop.xlane.xlu0 %724
        %726 = vmax.xlane.f32.xlu0 %v291
        %v727 = vpop.xlane.xlu0 %726
        %728 = vmax.xlane.f32.xlu0 %v295
        %v729 = vpop.xlane.xlu0 %728
        %730 = vmax.xlane.f32.xlu0 %v299
        %v731 = vpop.xlane.xlu0 %730
        %732 = vadd.xlane.f32.xlu0 %v288
        %v733 = vpop.xlane.xlu0 %732
        %734 = vadd.xlane.f32.xlu0 %v292
        %v735 = vpop.xlane.xlu0 %734
        %736 = vadd.xlane.f32.xlu0 %v296
        %v737 = vpop.xlane.xlu0 %736
        %738 = vadd.xlane.f32.xlu0 %v300
        %v739 = vpop.xlane.xlu0 %738
        %v740 = vmul.f32 %v733, 0.0078125
        %v741 = vmul.f32 %v735, 0.0078125
        %v742 = vmul.f32 %v737, 0.0078125
        %v743 = vmul.f32 %v739, 0.0078125
        %v744 = vsub.f32 %v288, %v740
        %v745 = vsub.f32 %v292, %v741
        %v746 = vsub.f32 %v296, %v742
        %v747 = vsub.f32 %v300, %v743
        %v748 = vmul.f32 %v744, %v744
        %v749 = vmul.f32 %v745, %v745
        %v750 = vmul.f32 %v746, %v746
        %v751 = vmul.f32 %v747, %v747
        %752 = vadd.xlane.f32.xlu0 %v748
        %v753 = vpop.xlane.xlu0 %752
        %754 = vadd.xlane.f32.xlu0 %v749
        %v755 = vpop.xlane.xlu0 %754
        %756 = vadd.xlane.f32.xlu0 %v750
        %v757 = vpop.xlane.xlu0 %756
        %758 = vadd.xlane.f32.xlu0 %v751
        %v759 = vpop.xlane.xlu0 %758
        %v760 = vmul.f32 %v753, 0.007874016
        %v761 = vmul.f32 %v755, 0.007874016
        %v762 = vmul.f32 %v757, 0.007874016
        %v763 = vmul.f32 %v759, 0.007874016
        %v764 = vmax.f32 %v760, 0.0
        %v765 = vmax.f32 %v761, 0.0
        %v766 = vmax.f32 %v762, 0.0
        %v767 = vmax.f32 %v763, 0.0
        %v768 = vrsqrt.pop %v764
        %v769 = vmul.f32 %v764, %v768
        %vm770 = vcmp.eq.f32.partialorder %v764, inf
        %v771 = vsel %vm770, %v764, %v769
        %vm772 = vcmp.eq.f32.partialorder %v764, 0.0
        %v773 = vand.u32 %v764, 2147483648
        %v774 = vsel %vm772, %v773, %v771
        %v775 = vrsqrt.pop %v765
        %v776 = vmul.f32 %v765, %v775
        %vm777 = vcmp.eq.f32.partialorder %v765, inf
        %v778 = vsel %vm777, %v765, %v776
        %vm779 = vcmp.eq.f32.partialorder %v765, 0.0
        %v780 = vand.u32 %v765, 2147483648
        %v781 = vsel %vm779, %v780, %v778
        %v782 = vrsqrt.pop %v766
        %v783 = vmul.f32 %v766, %v782
        %vm784 = vcmp.eq.f32.partialorder %v766, inf
        %v785 = vsel %vm784, %v766, %v783
        %vm786 = vcmp.eq.f32.partialorder %v766, 0.0
        %v787 = vand.u32 %v766, 2147483648
        %v788 = vsel %vm786, %v787, %v785
        %v789 = vrsqrt.pop %v767
        %v790 = vmul.f32 %v767, %v789
        %vm791 = vcmp.eq.f32.partialorder %v767, inf
        %v792 = vsel %vm791, %v767, %v790
        %vm793 = vcmp.eq.f32.partialorder %v767, 0.0
        %v794 = vand.u32 %v767, 2147483648
        %v795 = vsel %vm793, %v794, %v792
        %v796 = vmax.f32 %v774, 1e-10
        %v797 = vmax.f32 %v781, 1e-10
        %v798 = vmax.f32 %v788, 1e-10
        %v799 = vmax.f32 %v795, 1e-10
        %800 = vmax.xlane.f32.xlu0 %v288
        %v801 = vpop.xlane.xlu0 %800
        %802 = vmax.xlane.f32.xlu0 %v292
        %v803 = vpop.xlane.xlu0 %802
        %804 = vmax.xlane.f32.xlu0 %v296
        %v805 = vpop.xlane.xlu0 %804
        %806 = vmax.xlane.f32.xlu0 %v300
        %v807 = vpop.xlane.xlu0 %806
        %820 = vrot.lane.b32.xlu0 %v588, 1
        %v821 = vpop.permute.xlu0 %820
        %822 = vrot.lane.b32.xlu0 %v589, 1
        %v823 = vpop.permute.xlu0 %822
        %824 = vrot.lane.b32.xlu0 %v590, 1
        %v825 = vpop.permute.xlu0 %824
        %826 = vrot.lane.b32.xlu0 %v591, 1
        %v827 = vpop.permute.xlu0 %826
        %828 = vrot.lane.b32.xlu0 %v644, 1
        %v829 = vpop.permute.xlu0 %828
        %830 = vrot.lane.b32.xlu0 %v645, 1
        %v831 = vpop.permute.xlu0 %830
        %832 = vrot.lane.b32.xlu0 %v646, 1
        %v833 = vpop.permute.xlu0 %832
        %834 = vrot.lane.b32.xlu0 %v647, 1
        %v835 = vpop.permute.xlu0 %834
        %836 = vrot.lane.b32.xlu0 %v649, 1
        %v837 = vpop.permute.xlu0 %836
        %838 = vrot.lane.b32.xlu0 %v651, 1
        %v839 = vpop.permute.xlu0 %838
        %840 = vrot.lane.b32.xlu0 %v653, 1
        %v841 = vpop.permute.xlu0 %840
        %842 = vrot.lane.b32.xlu0 %v655, 1
        %v843 = vpop.permute.xlu0 %842
        %868 = vrot.lane.b32.xlu0 %v664, 2
        %v869 = vpop.permute.xlu0 %868
        %870 = vrot.lane.b32.xlu0 %v665, 2
        %v871 = vpop.permute.xlu0 %870
        %872 = vrot.lane.b32.xlu0 %v666, 2
        %v873 = vpop.permute.xlu0 %872
        %874 = vrot.lane.b32.xlu0 %v667, 2
        %v875 = vpop.permute.xlu0 %874
        %876 = vrot.lane.b32.xlu0 %v720, 2
        %v877 = vpop.permute.xlu0 %876
        %878 = vrot.lane.b32.xlu0 %v721, 2
        %v879 = vpop.permute.xlu0 %878
        %880 = vrot.lane.b32.xlu0 %v722, 2
        %v881 = vpop.permute.xlu0 %880
        %882 = vrot.lane.b32.xlu0 %v723, 2
        %v883 = vpop.permute.xlu0 %882
        %884 = vrot.lane.b32.xlu0 %v725, 2
        %v885 = vpop.permute.xlu0 %884
        %886 = vrot.lane.b32.xlu0 %v727, 2
        %v887 = vpop.permute.xlu0 %886
        %888 = vrot.lane.b32.xlu0 %v729, 2
        %v889 = vpop.permute.xlu0 %888
        %890 = vrot.lane.b32.xlu0 %v731, 2
        %v891 = vpop.permute.xlu0 %890
        %916 = vrot.lane.b32.xlu0 %v740, 3
        %v917 = vpop.permute.xlu0 %916
        %918 = vrot.lane.b32.xlu0 %v741, 3
        %v919 = vpop.permute.xlu0 %918
        %920 = vrot.lane.b32.xlu0 %v742, 3
        %v921 = vpop.permute.xlu0 %920
        %922 = vrot.lane.b32.xlu0 %v743, 3
        %v923 = vpop.permute.xlu0 %922
        %924 = vrot.lane.b32.xlu0 %v796, 3
        %v925 = vpop.permute.xlu0 %924
        %926 = vrot.lane.b32.xlu0 %v797, 3
        %v927 = vpop.permute.xlu0 %926
        %928 = vrot.lane.b32.xlu0 %v798, 3
        %v929 = vpop.permute.xlu0 %928
        %930 = vrot.lane.b32.xlu0 %v799, 3
        %v931 = vpop.permute.xlu0 %930
        %932 = vrot.lane.b32.xlu0 %v801, 3
        %v933 = vpop.permute.xlu0 %932
        %934 = vrot.lane.b32.xlu0 %v803, 3
        %v935 = vpop.permute.xlu0 %934
        %936 = vrot.lane.b32.xlu0 %v805, 3
        %v937 = vpop.permute.xlu0 %936
        %938 = vrot.lane.b32.xlu0 %v807, 3
        %v939 = vpop.permute.xlu0 %938
        %vm952 = vcmask 7168
        %v953 = vsel %vm952, %v512, %v821
        %v954 = vsel %vm952, %v513, %v823
        %v955 = vsel %vm952, %v514, %v825
        %v956 = vsel %vm952, %v515, %v827
        %v957 = vsel %vm952, %v568, %v829
        %v958 = vsel %vm952, %v569, %v831
        %v959 = vsel %vm952, %v570, %v833
        %v960 = vsel %vm952, %v571, %v835
        %v961 = vsel %vm952, %v573, %v837
        %v962 = vsel %vm952, %v575, %v839
        %v963 = vsel %vm952, %v577, %v841
        %v964 = vsel %vm952, %v579, %v843
        %vm965 = vcmask 15360
        %v966 = vsel %vm965, %v953, %v869
        %v967 = vsel %vm965, %v954, %v871
        %v968 = vsel %vm965, %v955, %v873
        %v969 = vsel %vm965, %v956, %v875
        %v970 = vsel %vm965, %v957, %v877
        %v971 = vsel %vm965, %v958, %v879
        %v972 = vsel %vm965, %v959, %v881
        %v973 = vsel %vm965, %v960, %v883
        %v974 = vsel %vm965, %v961, %v885
        %v975 = vsel %vm965, %v962, %v887
        %v976 = vsel %vm965, %v963, %v889
        %v977 = vsel %vm965, %v964, %v891
        %vm978 = vcmask 23552
        %v979 = vsel %vm978, %v966, %v917
        %v980 = vsel %vm978, %v967, %v919
        %v981 = vsel %vm978, %v968, %v921
        %v982 = vsel %vm978, %v969, %v923
        %v983 = vsel %vm978, %v970, %v925
        %v984 = vsel %vm978, %v971, %v927
        %v985 = vsel %vm978, %v972, %v929
        %v986 = vsel %vm978, %v973, %v931
        %v987 = vsel %vm978, %v974, %v933
        %v988 = vsel %vm978, %v975, %v935
        %v989 = vsel %vm978, %v976, %v937
        %v990 = vsel %vm978, %v977, %v939
        %v991 = vld [vmem:[%s1] sm:$0x3]
        %993 = vset.pattern.permute.xlu0 0
        %994 = vperm.xlu0 %993, %v301
        %v995 = vpop.permute.xlu0 %994
        %vm997 = vcmask 785408
        %v999 = vsel %vm997, %v991, 0
        %1001 = vmatprep.subr.mxu0 0.0
        %1002 = vmatpush1.msra.mxu0 %v979
        %1003 = vmatprep.subr.mxu0 0.0
        %1004 = vmatpush1.msra.mxu0 %v980
        %1005 = vmatprep.subr.mxu0 0.0
        %1006 = vmatpush1.msra.mxu0 %v981
        %1007 = vmatprep.subr.mxu0 0.0
        %1008 = vmatpush1.msra.mxu0 %v982
        %1009 = vmatprep.subr.mxu0 0.0
        %1010 = vmatpush1.msra.mxu0 %v983
        %1011 = vmatprep.subr.mxu0 0.0
        %1012 = vmatpush1.msra.mxu0 %v984
        %1013 = vmatprep.subr.mxu0 0.0
        %1014 = vmatpush1.msra.mxu0 %v985
        %1015 = vmatprep.subr.mxu0 0.0
        %1016 = vmatpush1.msra.mxu0 %v986
        %1017 = vmatprep.subr.mxu0 0.0
        %1018 = vmatpush1.msra.mxu0 %v987
        %1019 = vmatprep.subr.mxu0 0.0
        %1020 = vmatpush1.msra.mxu0 %v988
        %1021 = vmatprep.subr.mxu0 0.0
        %1022 = vmatpush1.msra.mxu0 %v989
        %1023 = vmatprep.subr.mxu0 0.0
        %1024 = vmatpush1.msra.mxu0 %v990
        %1025 = vmatprep.subr.mxu0 0.0
        %1026 = vmatpush1.msra.mxu0 0.0
        %1027 = vmatprep.subr.mxu0 0.0
        %1028 = vmatpush1.msra.mxu0 0.0
        %1029 = vmatprep.subr.mxu0 0.0
        %1030 = vmatpush1.msra.mxu0 0.0
        %1031 = vmatprep.subr.mxu0 0.0
        %1032 = vmatpush1.msra.mxu0 0.0
        %1033 = vmatprep.subr.mxu0 0.0
        %1034 = vmatpush1.msra.mxu0 0.0
        %1035 = vmatprep.subr.mxu0 0.0
        %1036 = vmatpush1.msra.mxu0 0.0
        %1037 = vmatprep.subr.mxu0 0.0
        %1038 = vmatpush1.msra.mxu0 0.0
        %1039 = vmatprep.subr.mxu0 0.0
        %1040 = vmatpush1.msra.mxu0 0.0
        %1041 = vmatprep.subr.mxu0 0.0
        %1042 = vmatpush1.msra.mxu0 0.0
        %1043 = vmatprep.subr.mxu0 0.0
        %1044 = vmatpush1.msra.mxu0 0.0
        %1045 = vmatprep.subr.mxu0 0.0
        %1046 = vmatpush1.msra.mxu0 0.0
        %1047 = vmatprep.subr.mxu0 0.0
        %1048 = vmatpush1.msra.mxu0 0.0
        %1049 = vmatprep.subr.mxu0 0.0
        %1050 = vmatpush1.msra.mxu0 0.0
        %1051 = vmatprep.subr.mxu0 0.0
        %1052 = vmatpush1.msra.mxu0 0.0
        %1053 = vmatprep.subr.mxu0 0.0
        %1054 = vmatpush1.msra.mxu0 0.0
        %1055 = vmatprep.subr.mxu0 0.0
        %1056 = vmatpush1.msra.mxu0 0.0
        %1057 = vmatprep.subr.mxu0 0.0
        %1058 = vmatpush1.msra.mxu0 0.0
        %1059 = vmatprep.subr.mxu0 0.0
        %1060 = vmatpush1.msra.mxu0 0.0
        %1061 = vmatprep.subr.mxu0 0.0
        %1062 = vmatpush1.msra.mxu0 0.0
        %1063 = vmatprep.subr.mxu0 0.0
        %1064 = vmatpush1.msra.mxu0 0.0
        %1065 = vmatprep.mubr.f32.mxu0 0.0
        %1066 = vmatmul.mubr.f32.gmra.mrb[0].mxu0 %v999
        %v1067 = vpop.f32.mrb[0].mxu0
        %v1068 = vadd.f32 %v995, %v1067
        %v1069 = vpop.f32.mrb[0].mxu0
        %1070 = vdwg.mxu0
        %v1071 = vmax.f32 %v1068, 0.0
        %v1072 = vld [vmem:[%s2] sm:$0xff]
        %v1073 = vld [vmem:[%s2 + $0x8] sm:$0xff]
        %v1074 = vld [vmem:[%s2 + $0x10] sm:$0xff]
        %v1075 = vld [vmem:[%s2 + $0x18] sm:$0xff]
        %1076 = vset.pattern.permute.xlu0 1
        %1077 = vperm.xlu0 %1076, %v301
        %v1078 = vpop.permute.xlu0 %1077
        %1081 = vset.pattern.permute.xlu0 1
        %1082 = vperm.xlu0 %1081, %v302
        %v1083 = vpop.permute.xlu0 %1082
        %1086 = vset.pattern.permute.xlu0 1
        %1087 = vperm.xlu0 %1086, %v303
        %v1088 = vpop.permute.xlu0 %1087
        %1091 = vset.pattern.permute.xlu0 1
        %1092 = vperm.xlu0 %1091, %v304
        %v1093 = vpop.permute.xlu0 %1092
        %v1096 = vsel %vm965, %v1072, 0
        %v1099 = vsel %vm965, %v1073, 0
        %v1102 = vsel %vm965, %v1074, 0
        %v1105 = vsel %vm965, %v1075, 0
        %vm1107 = vcmask 1041408
        %v1109 = vsel %vm1107, %v1071, 0
        %1111 = vmatprep.subr.mxu0 0.0
        %1112 = vmatpush1.msra.mxu0 %v1109
        %1113 = vmatprep.subr.mxu0 0.0
        %1114 = vmatpush1.msra.mxu0 0.0
        %1115 = vmatprep.subr.mxu0 0.0
        %1116 = vmatpush1.msra.mxu0 0.0
        %1117 = vmatprep.subr.mxu0 0.0
        %1118 = vmatpush1.msra.mxu0 0.0
        %1119 = vmatprep.subr.mxu0 0.0
        %1120 = vmatpush1.msra.mxu0 0.0
        %1121 = vmatprep.subr.mxu0 0.0
        %1122 = vmatpush1.msra.mxu0 0.0
        %1123 = vmatprep.subr.mxu0 0.0
        %1124 = vmatpush1.msra.mxu0 0.0
        %1125 = vmatprep.subr.mxu0 0.0
        %1126 = vmatpush1.msra.mxu0 0.0
        %1127 = vmatprep.subr.mxu0 0.0
        %1128 = vmatpush1.msra.mxu0 0.0
        %1129 = vmatprep.subr.mxu0 0.0
        %1130 = vmatpush1.msra.mxu0 0.0
        %1131 = vmatprep.subr.mxu0 0.0
        %1132 = vmatpush1.msra.mxu0 0.0
        %1133 = vmatprep.subr.mxu0 0.0
        %1134 = vmatpush1.msra.mxu0 0.0
        %1135 = vmatprep.subr.mxu0 0.0
        %1136 = vmatpush1.msra.mxu0 0.0
        %1137 = vmatprep.subr.mxu0 0.0
        %1138 = vmatpush1.msra.mxu0 0.0
        %1139 = vmatprep.subr.mxu0 0.0
        %1140 = vmatpush1.msra.mxu0 0.0
        %1141 = vmatprep.subr.mxu0 0.0
        %1142 = vmatpush1.msra.mxu0 0.0
        %1143 = vmatprep.subr.mxu0 0.0
        %1144 = vmatpush1.msra.mxu0 0.0
        %1145 = vmatprep.subr.mxu0 0.0
        %1146 = vmatpush1.msra.mxu0 0.0
        %1147 = vmatprep.subr.mxu0 0.0
        %1148 = vmatpush1.msra.mxu0 0.0
        %1149 = vmatprep.subr.mxu0 0.0
        %1150 = vmatpush1.msra.mxu0 0.0
        %1151 = vmatprep.subr.mxu0 0.0
        %1152 = vmatpush1.msra.mxu0 0.0
        %1153 = vmatprep.subr.mxu0 0.0
        %1154 = vmatpush1.msra.mxu0 0.0
        %1155 = vmatprep.subr.mxu0 0.0
        %1156 = vmatpush1.msra.mxu0 0.0
        %1157 = vmatprep.subr.mxu0 0.0
        %1158 = vmatpush1.msra.mxu0 0.0
        %1159 = vmatprep.subr.mxu0 0.0
        %1160 = vmatpush1.msra.mxu0 0.0
        %1161 = vmatprep.subr.mxu0 0.0
        %1162 = vmatpush1.msra.mxu0 0.0
        %1163 = vmatprep.subr.mxu0 0.0
        %1164 = vmatpush1.msra.mxu0 0.0
        %1165 = vmatprep.subr.mxu0 0.0
        %1166 = vmatpush1.msra.mxu0 0.0
        %1167 = vmatprep.subr.mxu0 0.0
        %1168 = vmatpush1.msra.mxu0 0.0
        %1169 = vmatprep.subr.mxu0 0.0
        %1170 = vmatpush1.msra.mxu0 0.0
        %1171 = vmatprep.subr.mxu0 0.0
        %1172 = vmatpush1.msra.mxu0 0.0
        %1173 = vmatprep.subr.mxu0 0.0
        %1174 = vmatpush1.msra.mxu0 0.0
        %1175 = vmatprep.mubr.f32.mxu0 0.0
        %1176 = vmatmul.mubr.f32.gmra.mrb[0].mxu0 %v1096
        %v1177 = vpop.f32.mrb[0].mxu0
        %v1178 = vadd.f32 %v1078, %v1177
        %v1179 = vpop.f32.mrb[0].mxu0
        %1180 = vmatprep.mubr.f32.mxu0 0.0
        %1181 = vmatmul.mubr.f32.gmra.mrb[0].mxu0 %v1099
        %v1182 = vpop.f32.mrb[0].mxu0
        %v1183 = vadd.f32 %v1083, %v1182
        %v1184 = vpop.f32.mrb[0].mxu0
        %1185 = vmatprep.mubr.f32.mxu0 0.0
        %1186 = vmatmul.mubr.f32.gmra.mrb[0].mxu0 %v1102
        %v1187 = vpop.f32.mrb[0].mxu0
        %v1188 = vadd.f32 %v1088, %v1187
        %v1189 = vpop.f32.mrb[0].mxu0
        %1190 = vmatprep.mubr.f32.mxu0 0.0
        %1191 = vmatmul.mubr.f32.gmra.mrb[0].mxu0 %v1105
        %v1192 = vpop.f32.mrb[0].mxu0
        %v1193 = vadd.f32 %v1093, %v1192
        %v1194 = vpop.f32.mrb[0].mxu0
        %1195 = vdwg.mxu0
        %v1196 = vxor.u32 %v1178, 2147483648
        %v1197 = vxor.u32 %v1183, 2147483648
        %v1198 = vxor.u32 %v1188, 2147483648
        %v1199 = vxor.u32 %v1193, 2147483648
        %v1200 = vmul.f32 %v1196, 1.442695
        %v1201 = vpow.pop %v1200
        %v1202 = vmul.f32 %v1197, 1.442695
        %v1203 = vpow.pop %v1202
        %v1204 = vmul.f32 %v1198, 1.442695
        %v1205 = vpow.pop %v1204
        %v1206 = vmul.f32 %v1199, 1.442695
        %v1207 = vpow.pop %v1206
        %v1208 = vadd.f32 %v1201, 1.0
        %v1209 = vadd.f32 %v1203, 1.0
        %v1210 = vadd.f32 %v1205, 1.0
        %v1211 = vadd.f32 %v1207, 1.0
        %v1212 = vrcp.pop %v1208
        %v1213 = vmul.f32 1.0, %v1212
        %v1214 = vrcp.pop %v1209
        %v1215 = vmul.f32 1.0, %v1214
        %v1216 = vrcp.pop %v1210
        %v1217 = vmul.f32 1.0, %v1216
        %v1218 = vrcp.pop %v1211
        %v1219 = vmul.f32 1.0, %v1218
        %v1220 = vmax.f32 %v1213, 1e-06
        %v1221 = vmax.f32 %v1215, 1e-06
        %v1222 = vmax.f32 %v1217, 1e-06
        %v1223 = vmax.f32 %v1219, 1e-06
        %1225 = vset.pattern.permute.xlu0 0
        %1226 = vperm.xlu0 %1225, %v1220
        %v1227 = vpop.permute.xlu0 %1226
        %1230 = vset.pattern.permute.xlu0 0
        %1231 = vperm.xlu0 %1230, %v1221
        %v1232 = vpop.permute.xlu0 %1231
        %1235 = vset.pattern.permute.xlu0 0
        %1236 = vperm.xlu0 %1235, %v1222
        %v1237 = vpop.permute.xlu0 %1236
        %1240 = vset.pattern.permute.xlu0 0
        %1241 = vperm.xlu0 %1240, %v1223
        %v1242 = vpop.permute.xlu0 %1241
        %v1244 = vmul.f32 %v285, %v1227
        %v1245 = vmul.f32 %v289, %v1232
        %v1246 = vmul.f32 %v293, %v1237
        %v1247 = vmul.f32 %v297, %v1242
        %1248 = vset.pattern.permute.xlu0 1
        %1249 = vperm.xlu0 %1248, %v1220
        %v1250 = vpop.permute.xlu0 %1249
        %1252 = vset.pattern.permute.xlu0 1
        %1253 = vperm.xlu0 %1252, %v1221
        %v1254 = vpop.permute.xlu0 %1253
        %1256 = vset.pattern.permute.xlu0 1
        %1257 = vperm.xlu0 %1256, %v1222
        %v1258 = vpop.permute.xlu0 %1257
        %1260 = vset.pattern.permute.xlu0 1
        %1261 = vperm.xlu0 %1260, %v1223
        %v1262 = vpop.permute.xlu0 %1261
        %v1264 = vmul.f32 %v286, %v1250
        %v1265 = vmul.f32 %v290, %v1254
        %v1266 = vmul.f32 %v294, %v1258
        %v1267 = vmul.f32 %v298, %v1262
        %1268 = vset.pattern.permute.xlu0 2
        %1269 = vperm.xlu0 %1268, %v1220
        %v1270 = vpop.permute.xlu0 %1269
        %1272 = vset.pattern.permute.xlu0 2
        %1273 = vperm.xlu0 %1272, %v1221
        %v1274 = vpop.permute.xlu0 %1273
        %1276 = vset.pattern.permute.xlu0 2
        %1277 = vperm.xlu0 %1276, %v1222
        %v1278 = vpop.permute.xlu0 %1277
        %1280 = vset.pattern.permute.xlu0 2
        %1281 = vperm.xlu0 %1280, %v1223
        %v1282 = vpop.permute.xlu0 %1281
        %v1284 = vmul.f32 %v287, %v1270
        %v1285 = vmul.f32 %v291, %v1274
        %v1286 = vmul.f32 %v295, %v1278
        %v1287 = vmul.f32 %v299, %v1282
        %1288 = vset.pattern.permute.xlu0 3
        %1289 = vperm.xlu0 %1288, %v1220
        %v1290 = vpop.permute.xlu0 %1289
        %1292 = vset.pattern.permute.xlu0 3
        %1293 = vperm.xlu0 %1292, %v1221
        %v1294 = vpop.permute.xlu0 %1293
        %1296 = vset.pattern.permute.xlu0 3
        %1297 = vperm.xlu0 %1296, %v1222
        %v1298 = vpop.permute.xlu0 %1297
        %1300 = vset.pattern.permute.xlu0 3
        %1301 = vperm.xlu0 %1300, %v1223
        %v1302 = vpop.permute.xlu0 %1301
        %v1304 = vmul.f32 %v288, %v1290
        %v1305 = vmul.f32 %v292, %v1294
        %v1306 = vmul.f32 %v296, %v1298
        %v1307 = vmul.f32 %v300, %v1302
        %v1308 = vadd.f32 %v1244, %v1245
        %v1309 = vadd.f32 %v1308, %v1246
        %v1310 = vadd.f32 %v1309, %v1247
        %v1311 = vrot.slane %v1310, 4
        %v1312 = vadd.f32 %v1310, %v1311
        %v1313 = vrot.slane %v1312, 2
        %v1314 = vadd.f32 %v1312, %v1313
        %v1315 = vrot.slane %v1314, 1
        %v1316 = vadd.f32 %v1314, %v1315
        %v1317 = vadd.f32 %v1264, %v1265
        %v1318 = vadd.f32 %v1317, %v1266
        %v1319 = vadd.f32 %v1318, %v1267
        %v1320 = vrot.slane %v1319, 4
        %v1321 = vadd.f32 %v1319, %v1320
        %v1322 = vrot.slane %v1321, 2
        %v1323 = vadd.f32 %v1321, %v1322
        %v1324 = vrot.slane %v1323, 1
        %v1325 = vadd.f32 %v1323, %v1324
        %v1326 = vadd.f32 %v1284, %v1285
        %v1327 = vadd.f32 %v1326, %v1286
        %v1328 = vadd.f32 %v1327, %v1287
        %v1329 = vrot.slane %v1328, 4
        %v1330 = vadd.f32 %v1328, %v1329
        %v1331 = vrot.slane %v1330, 2
        %v1332 = vadd.f32 %v1330, %v1331
        %v1333 = vrot.slane %v1332, 1
        %v1334 = vadd.f32 %v1332, %v1333
        %v1335 = vadd.f32 %v1304, %v1305
        %v1336 = vadd.f32 %v1335, %v1306
        %v1337 = vadd.f32 %v1336, %v1307
        %v1338 = vrot.slane %v1337, 4
        %v1339 = vadd.f32 %v1337, %v1338
        %v1340 = vrot.slane %v1339, 2
        %v1341 = vadd.f32 %v1339, %v1340
        %v1342 = vrot.slane %v1341, 1
        %v1343 = vadd.f32 %v1341, %v1342
        %v1344 = vmul.f32 %v1316, 0.03125
        %v1345 = vmul.f32 %v1325, 0.03125
        %v1346 = vmul.f32 %v1334, 0.03125
        %v1347 = vmul.f32 %v1343, 0.03125
        %v1348 = vsub.f32 %v1244, %v1344
        %v1349 = vsub.f32 %v1264, %v1345
        %v1350 = vsub.f32 %v1284, %v1346
        %v1351 = vsub.f32 %v1304, %v1347
        %v1352 = vsub.f32 %v1245, %v1344
        %v1353 = vsub.f32 %v1265, %v1345
        %v1354 = vsub.f32 %v1285, %v1346
        %v1355 = vsub.f32 %v1305, %v1347
        %v1356 = vsub.f32 %v1246, %v1344
        %v1357 = vsub.f32 %v1266, %v1345
        %v1358 = vsub.f32 %v1286, %v1346
        %v1359 = vsub.f32 %v1306, %v1347
        %v1360 = vsub.f32 %v1247, %v1344
        %v1361 = vsub.f32 %v1267, %v1345
        %v1362 = vsub.f32 %v1287, %v1346
        %v1363 = vsub.f32 %v1307, %v1347
        %v1364 = vmul.f32 %v1348, %v1348
        %v1365 = vmul.f32 %v1349, %v1349
        %v1366 = vmul.f32 %v1350, %v1350
        %v1367 = vmul.f32 %v1351, %v1351
        %v1368 = vmul.f32 %v1352, %v1352
        %v1369 = vmul.f32 %v1353, %v1353
        %v1370 = vmul.f32 %v1354, %v1354
        %v1371 = vmul.f32 %v1355, %v1355
        %v1372 = vmul.f32 %v1356, %v1356
        %v1373 = vmul.f32 %v1357, %v1357
        %v1374 = vmul.f32 %v1358, %v1358
        %v1375 = vmul.f32 %v1359, %v1359
        %v1376 = vmul.f32 %v1360, %v1360
        %v1377 = vmul.f32 %v1361, %v1361
        %v1378 = vmul.f32 %v1362, %v1362
        %v1379 = vmul.f32 %v1363, %v1363
        %v1380 = vadd.f32 %v1364, %v1368
        %v1381 = vadd.f32 %v1380, %v1372
        %v1382 = vadd.f32 %v1381, %v1376
        %v1383 = vrot.slane %v1382, 4
        %v1384 = vadd.f32 %v1382, %v1383
        %v1385 = vrot.slane %v1384, 2
        %v1386 = vadd.f32 %v1384, %v1385
        %v1387 = vrot.slane %v1386, 1
        %v1388 = vadd.f32 %v1386, %v1387
        %v1389 = vadd.f32 %v1365, %v1369
        %v1390 = vadd.f32 %v1389, %v1373
        %v1391 = vadd.f32 %v1390, %v1377
        %v1392 = vrot.slane %v1391, 4
        %v1393 = vadd.f32 %v1391, %v1392
        %v1394 = vrot.slane %v1393, 2
        %v1395 = vadd.f32 %v1393, %v1394
        %v1396 = vrot.slane %v1395, 1
        %v1397 = vadd.f32 %v1395, %v1396
        %v1398 = vadd.f32 %v1366, %v1370
        %v1399 = vadd.f32 %v1398, %v1374
        %v1400 = vadd.f32 %v1399, %v1378
        %v1401 = vrot.slane %v1400, 4
        %v1402 = vadd.f32 %v1400, %v1401
        %v1403 = vrot.slane %v1402, 2
        %v1404 = vadd.f32 %v1402, %v1403
        %v1405 = vrot.slane %v1404, 1
        %v1406 = vadd.f32 %v1404, %v1405
        %v1407 = vadd.f32 %v1367, %v1371
        %v1408 = vadd.f32 %v1407, %v1375
        %v1409 = vadd.f32 %v1408, %v1379
        %v1410 = vrot.slane %v1409, 4
        %v1411 = vadd.f32 %v1409, %v1410
        %v1412 = vrot.slane %v1411, 2
        %v1413 = vadd.f32 %v1411, %v1412
        %v1414 = vrot.slane %v1413, 1
        %v1415 = vadd.f32 %v1413, %v1414
        %v1416 = vmul.f32 %v1388, 0.032258064
        %v1417 = vmul.f32 %v1397, 0.032258064
        %v1418 = vmul.f32 %v1406, 0.032258064
        %v1419 = vmul.f32 %v1415, 0.032258064
        %v1420 = vmax.f32 %v1416, 0.0
        %v1421 = vmax.f32 %v1417, 0.0
        %v1422 = vmax.f32 %v1418, 0.0
        %v1423 = vmax.f32 %v1419, 0.0
        %v1424 = vrsqrt.pop %v1420
        %v1425 = vmul.f32 %v1420, %v1424
        %vm1426 = vcmp.eq.f32.partialorder %v1420, inf
        %v1427 = vsel %vm1426, %v1420, %v1425
        %vm1428 = vcmp.eq.f32.partialorder %v1420, 0.0
        %v1429 = vand.u32 %v1420, 2147483648
        %v1430 = vsel %vm1428, %v1429, %v1427
        %v1431 = vrsqrt.pop %v1421
        %v1432 = vmul.f32 %v1421, %v1431
        %vm1433 = vcmp.eq.f32.partialorder %v1421, inf
        %v1434 = vsel %vm1433, %v1421, %v1432
        %vm1435 = vcmp.eq.f32.partialorder %v1421, 0.0
        %v1436 = vand.u32 %v1421, 2147483648
        %v1437 = vsel %vm1435, %v1436, %v1434
        %v1438 = vrsqrt.pop %v1422
        %v1439 = vmul.f32 %v1422, %v1438
        %vm1440 = vcmp.eq.f32.partialorder %v1422, inf
        %v1441 = vsel %vm1440, %v1422, %v1439
        %vm1442 = vcmp.eq.f32.partialorder %v1422, 0.0
        %v1443 = vand.u32 %v1422, 2147483648
        %v1444 = vsel %vm1442, %v1443, %v1441
        %v1445 = vrsqrt.pop %v1423
        %v1446 = vmul.f32 %v1423, %v1445
        %vm1447 = vcmp.eq.f32.partialorder %v1423, inf
        %v1448 = vsel %vm1447, %v1423, %v1446
        %vm1449 = vcmp.eq.f32.partialorder %v1423, 0.0
        %v1450 = vand.u32 %v1423, 2147483648
        %v1451 = vsel %vm1449, %v1450, %v1448
        %v1452 = vmax.f32 %v1430, 1e-10
        %v1453 = vmax.f32 %v1437, 1e-10
        %v1454 = vmax.f32 %v1444, 1e-10
        %v1455 = vmax.f32 %v1451, 1e-10
        %v1456 = vmax.f32 %v1244, %v1245
        %v1457 = vmax.f32 %v1456, %v1246
        %v1458 = vmax.f32 %v1457, %v1247
        %v1459 = vrot.slane %v1458, 4
        %v1460 = vmax.f32 %v1458, %v1459
        %v1461 = vrot.slane %v1460, 2
        %v1462 = vmax.f32 %v1460, %v1461
        %v1463 = vrot.slane %v1462, 1
        %v1464 = vmax.f32 %v1462, %v1463
        %v1465 = vmax.f32 %v1264, %v1265
        %v1466 = vmax.f32 %v1465, %v1266
        %v1467 = vmax.f32 %v1466, %v1267
        %v1468 = vrot.slane %v1467, 4
        %v1469 = vmax.f32 %v1467, %v1468
        %v1470 = vrot.slane %v1469, 2
        %v1471 = vmax.f32 %v1469, %v1470
        %v1472 = vrot.slane %v1471, 1
        %v1473 = vmax.f32 %v1471, %v1472
        %v1474 = vmax.f32 %v1284, %v1285
        %v1475 = vmax.f32 %v1474, %v1286
        %v1476 = vmax.f32 %v1475, %v1287
        %v1477 = vrot.slane %v1476, 4
        %v1478 = vmax.f32 %v1476, %v1477
        %v1479 = vrot.slane %v1478, 2
        %v1480 = vmax.f32 %v1478, %v1479
        %v1481 = vrot.slane %v1480, 1
        %v1482 = vmax.f32 %v1480, %v1481
        %v1483 = vmax.f32 %v1304, %v1305
        %v1484 = vmax.f32 %v1483, %v1306
        %v1485 = vmax.f32 %v1484, %v1307
        %v1486 = vrot.slane %v1485, 4
        %v1487 = vmax.f32 %v1485, %v1486
        %v1488 = vrot.slane %v1487, 2
        %v1489 = vmax.f32 %v1487, %v1488
        %v1490 = vrot.slane %v1489, 1
        %v1491 = vmax.f32 %v1489, %v1490
        %vm1492 = vcmask 1040384
        %v1493 = vsel %vm1492, %v1344, %v1452
        %v1494 = vsel %vm1492, %v1345, %v1453
        %v1495 = vsel %vm1492, %v1346, %v1454
        %v1496 = vsel %vm1492, %v1347, %v1455
        %v1497 = vsel %vm1107, %v1493, %v1464
        %v1498 = vsel %vm1107, %v1494, %v1473
        %v1499 = vsel %vm1107, %v1495, %v1482
        %v1500 = vsel %vm1107, %v1496, %v1491
        %1501 = vset.pattern.permute.xlu0 5
        %1502 = vperm.xlu0 %1501, %v301
        %v1503 = vpop.permute.xlu0 %1502
        %v1505 = vmul.f32 %v1503, %v1497
        %v1506 = vmul.f32 %v1503, %v1498
        %v1507 = vmul.f32 %v1503, %v1499
        %v1508 = vmul.f32 %v1503, %v1500
        %1509 = vrot.lane.b32.xlu0 %v1497, 3
        %v1510 = vpop.permute.xlu0 %1509
        %1511 = vrot.lane.b32.xlu0 %v1498, 3
        %v1512 = vpop.permute.xlu0 %1511
        %1513 = vrot.lane.b32.xlu0 %v1499, 3
        %v1514 = vpop.permute.xlu0 %1513
        %1515 = vrot.lane.b32.xlu0 %v1500, 3
        %v1516 = vpop.permute.xlu0 %1515
        %vm1517 = vcmp.lt.s32.totalorder %v308, 3
        %v1518 = vsel %vm1517, %v1514, %v1516
        %v1519 = vsel %vm1517, %v1512, %v1514
        %v1520 = vsel %vm1517, %v1510, %v1512
        %v1521 = vsel %vm1517, %v1516, %v1510
        %v1522 = vmul.f32 %v380, %v1521
        %v1523 = vmul.f32 %v381, %v1520
        %v1524 = vmul.f32 %v382, %v1519
        %v1525 = vmul.f32 %v383, %v1518
        %1526 = vset.pattern.permute.xlu0 2
        %1527 = vperm.xlu0 %1526, %v301
        %v1528 = vpop.permute.xlu0 %1527
        %v1530 = vmul.f32 %v1528, %v1522
        %v1531 = vmul.f32 %v1528, %v1523
        %v1532 = vmul.f32 %v1528, %v1524
        %v1533 = vmul.f32 %v1528, %v1525
        %v1534 = vadd.f32 %v1505, %v1530
        %v1535 = vadd.f32 %v1506, %v1531
        %v1536 = vadd.f32 %v1507, %v1532
        %v1537 = vadd.f32 %v1508, %v1533
        %1538 = vrot.lane.b32.xlu0 %v1497, 2
        %v1539 = vpop.permute.xlu0 %1538
        %1540 = vrot.lane.b32.xlu0 %v1498, 2
        %v1541 = vpop.permute.xlu0 %1540
        %1542 = vrot.lane.b32.xlu0 %v1499, 2
        %v1543 = vpop.permute.xlu0 %1542
        %1544 = vrot.lane.b32.xlu0 %v1500, 2
        %v1545 = vpop.permute.xlu0 %1544
        %vm1546 = vcmp.lt.s32.totalorder %v308, 2
        %v1547 = vsel %vm1546, %v1543, %v1545
        %v1548 = vsel %vm1546, %v1541, %v1543
        %v1549 = vsel %vm1546, %v1539, %v1541
        %v1550 = vsel %vm1546, %v1545, %v1539
        %v1551 = vmul.f32 %v404, %v1550
        %v1552 = vmul.f32 %v405, %v1549
        %v1553 = vmul.f32 %v406, %v1548
        %v1554 = vmul.f32 %v407, %v1547
        %1555 = vset.pattern.permute.xlu0 3
        %1556 = vperm.xlu0 %1555, %v301
        %v1557 = vpop.permute.xlu0 %1556
        %v1559 = vmul.f32 %v1557, %v1551
        %v1560 = vmul.f32 %v1557, %v1552
        %v1561 = vmul.f32 %v1557, %v1553
        %v1562 = vmul.f32 %v1557, %v1554
        %v1563 = vadd.f32 %v1534, %v1559
        %v1564 = vadd.f32 %v1535, %v1560
        %v1565 = vadd.f32 %v1536, %v1561
        %v1566 = vadd.f32 %v1537, %v1562
        %1567 = vrot.lane.b32.xlu0 %v1497, 1
        %v1568 = vpop.permute.xlu0 %1567
        %1569 = vrot.lane.b32.xlu0 %v1498, 1
        %v1570 = vpop.permute.xlu0 %1569
        %1571 = vrot.lane.b32.xlu0 %v1499, 1
        %v1572 = vpop.permute.xlu0 %1571
        %1573 = vrot.lane.b32.xlu0 %v1500, 1
        %v1574 = vpop.permute.xlu0 %1573
        %vm1575 = vcmp.lt.s32.totalorder %v308, 1
        %v1576 = vsel %vm1575, %v1572, %v1574
        %v1577 = vsel %vm1575, %v1570, %v1572
        %v1578 = vsel %vm1575, %v1568, %v1570
        %v1579 = vsel %vm1575, %v1574, %v1568
        %v1580 = vmul.f32 %v428, %v1579
        %v1581 = vmul.f32 %v429, %v1578
        %v1582 = vmul.f32 %v430, %v1577
        %v1583 = vmul.f32 %v431, %v1576
        %1584 = vset.pattern.permute.xlu0 4
        %1585 = vperm.xlu0 %1584, %v301
        %v1586 = vpop.permute.xlu0 %1585
        %v1588 = vmul.f32 %v1586, %v1580
        %v1589 = vmul.f32 %v1586, %v1581
        %v1590 = vmul.f32 %v1586, %v1582
        %v1591 = vmul.f32 %v1586, %v1583
        %v1592 = vadd.f32 %v1563, %v1588
        %v1593 = vadd.f32 %v1564, %v1589
        %v1594 = vadd.f32 %v1565, %v1590
        %v1595 = vadd.f32 %v1566, %v1591
        %1596 = vrot.lane.b32.xlu0 %v1497, 127
        %v1597 = vpop.permute.xlu0 %1596
        %1598 = vrot.lane.b32.xlu0 %v1498, 127
        %v1599 = vpop.permute.xlu0 %1598
        %1600 = vrot.lane.b32.xlu0 %v1499, 127
        %v1601 = vpop.permute.xlu0 %1600
        %1602 = vrot.lane.b32.xlu0 %v1500, 127
        %v1603 = vpop.permute.xlu0 %1602
        %vm1604 = vcmp.lt.s32.totalorder %v308, 127
        %v1605 = vsel %vm1604, %v1601, %v1603
        %v1606 = vsel %vm1604, %v1599, %v1601
        %v1607 = vsel %vm1604, %v1597, %v1599
        %v1608 = vsel %vm1604, %v1603, %v1597
        %v1609 = vmul.f32 %v452, %v1607
        %v1610 = vmul.f32 %v453, %v1606
        %v1611 = vmul.f32 %v454, %v1605
        %v1612 = vmul.f32 %v455, %v1608
        %1613 = vset.pattern.permute.xlu0 6
        %1614 = vperm.xlu0 %1613, %v301
        %v1615 = vpop.permute.xlu0 %1614
        %v1617 = vmul.f32 %v1615, %v1609
        %v1618 = vmul.f32 %v1615, %v1610
        %v1619 = vmul.f32 %v1615, %v1611
        %v1620 = vmul.f32 %v1615, %v1612
        %v1621 = vadd.f32 %v1592, %v1617
        %v1622 = vadd.f32 %v1593, %v1618
        %v1623 = vadd.f32 %v1594, %v1619
        %v1624 = vadd.f32 %v1595, %v1620
        %1625 = vrot.lane.b32.xlu0 %v1497, 126
        %v1626 = vpop.permute.xlu0 %1625
        %1627 = vrot.lane.b32.xlu0 %v1498, 126
        %v1628 = vpop.permute.xlu0 %1627
        %1629 = vrot.lane.b32.xlu0 %v1499, 126
        %v1630 = vpop.permute.xlu0 %1629
        %1631 = vrot.lane.b32.xlu0 %v1500, 126
        %v1632 = vpop.permute.xlu0 %1631
        %vm1633 = vcmp.lt.s32.totalorder %v308, 126
        %v1634 = vsel %vm1633, %v1630, %v1632
        %v1635 = vsel %vm1633, %v1628, %v1630
        %v1636 = vsel %vm1633, %v1626, %v1628
        %v1637 = vsel %vm1633, %v1632, %v1626
        %v1638 = vmul.f32 %v476, %v1636
        %v1639 = vmul.f32 %v477, %v1635
        %v1640 = vmul.f32 %v478, %v1634
        %v1641 = vmul.f32 %v479, %v1637
        %1642 = vset.pattern.permute.xlu0 7
        %1643 = vperm.xlu0 %1642, %v301
        %v1644 = vpop.permute.xlu0 %1643
        %v1646 = vmul.f32 %v1644, %v1638
        %v1647 = vmul.f32 %v1644, %v1639
        %v1648 = vmul.f32 %v1644, %v1640
        %v1649 = vmul.f32 %v1644, %v1641
        %v1650 = vadd.f32 %v1621, %v1646
        %v1651 = vadd.f32 %v1622, %v1647
        %v1652 = vadd.f32 %v1623, %v1648
        %v1653 = vadd.f32 %v1624, %v1649
        %1654 = vrot.lane.b32.xlu0 %v1497, 125
        %v1655 = vpop.permute.xlu0 %1654
        %1656 = vrot.lane.b32.xlu0 %v1498, 125
        %v1657 = vpop.permute.xlu0 %1656
        %1658 = vrot.lane.b32.xlu0 %v1499, 125
        %v1659 = vpop.permute.xlu0 %1658
        %1660 = vrot.lane.b32.xlu0 %v1500, 125
        %v1661 = vpop.permute.xlu0 %1660
        %vm1662 = vcmp.lt.s32.totalorder %v308, 125
        %v1663 = vsel %vm1662, %v1659, %v1661
        %v1664 = vsel %vm1662, %v1657, %v1659
        %v1665 = vsel %vm1662, %v1655, %v1657
        %v1666 = vsel %vm1662, %v1661, %v1655
        %v1667 = vmul.f32 %v500, %v1665
        %v1668 = vmul.f32 %v501, %v1664
        %v1669 = vmul.f32 %v502, %v1663
        %v1670 = vmul.f32 %v503, %v1666
        %1671 = vset.pattern.permute.xlu0 8
        %1672 = vperm.xlu0 %1671, %v301
        %v1673 = vpop.permute.xlu0 %1672
        %v1675 = vmul.f32 %v1673, %v1667
        %v1676 = vmul.f32 %v1673, %v1668
        %v1677 = vmul.f32 %v1673, %v1669
        %v1678 = vmul.f32 %v1673, %v1670
        %v1679 = vadd.f32 %v1650, %v1675
        %v1680 = vadd.f32 %v1651, %v1676
        %v1681 = vadd.f32 %v1652, %v1677
        %v1682 = vadd.f32 %v1653, %v1678
        %vm1683 = vcmask 1042432
        %v1684 = vsel %vm1683, %v1679, 0.0
        %v1685 = vrot.slane %v1684, 4
        %v1686 = vadd.f32 %v1684, %v1685
        %v1687 = vrot.slane %v1686, 2
        %v1688 = vadd.f32 %v1686, %v1687
        %v1689 = vrot.slane %v1688, 1
        %v1690 = vadd.f32 %v1688, %v1689
        %v1691 = vsel %vm1683, %v1680, 0.0
        %v1692 = vrot.slane %v1691, 4
        %v1693 = vadd.f32 %v1691, %v1692
        %v1694 = vrot.slane %v1693, 2
        %v1695 = vadd.f32 %v1693, %v1694
        %v1696 = vrot.slane %v1695, 1
        %v1697 = vadd.f32 %v1695, %v1696
        %v1698 = vsel %vm1683, %v1681, 0.0
        %v1699 = vrot.slane %v1698, 4
        %v1700 = vadd.f32 %v1698, %v1699
        %v1701 = vrot.slane %v1700, 2
        %v1702 = vadd.f32 %v1700, %v1701
        %v1703 = vrot.slane %v1702, 1
        %v1704 = vadd.f32 %v1702, %v1703
        %v1705 = vsel %vm1683, %v1682, 0.0
        %v1706 = vrot.slane %v1705, 4
        %v1707 = vadd.f32 %v1705, %v1706
        %v1708 = vrot.slane %v1707, 2
        %v1709 = vadd.f32 %v1707, %v1708
        %v1710 = vrot.slane %v1709, 1
        %v1711 = vadd.f32 %v1709, %v1710
        %v1712 = vxor.u32 %v1690, 2147483648
        %v1713 = vxor.u32 %v1697, 2147483648
        %v1714 = vxor.u32 %v1704, 2147483648
        %v1715 = vxor.u32 %v1711, 2147483648
        %v1716 = vmul.f32 %v1712, 1.442695
        %v1717 = vpow.pop %v1716
        %v1718 = vmul.f32 %v1713, 1.442695
        %v1719 = vpow.pop %v1718
        %v1720 = vmul.f32 %v1714, 1.442695
        %v1721 = vpow.pop %v1720
        %v1722 = vmul.f32 %v1715, 1.442695
        %v1723 = vpow.pop %v1722
        %v1724 = vadd.f32 %v1717, 1.0
        %v1725 = vadd.f32 %v1719, 1.0
        %v1726 = vadd.f32 %v1721, 1.0
        %v1727 = vadd.f32 %v1723, 1.0
        %v1728 = vrcp.pop %v1724
        %v1729 = vmul.f32 1.0, %v1728
        %v1730 = vrcp.pop %v1725
        %v1731 = vmul.f32 1.0, %v1730
        %v1732 = vrcp.pop %v1726
        %v1733 = vmul.f32 1.0, %v1732
        %v1734 = vrcp.pop %v1727
        %v1735 = vmul.f32 1.0, %v1734
        %v1736 = vmax.f32 %v1729, 1e-06
        %v1737 = vmax.f32 %v1731, 1e-06
        %v1738 = vmax.f32 %v1733, 1e-06
        %v1739 = vmax.f32 %v1735, 1e-06
        %v1740 = vmul.f32 %v1244, %v1736
        %v1741 = vmul.f32 %v1264, %v1737
        %v1742 = vmul.f32 %v1284, %v1738
        %v1743 = vmul.f32 %v1304, %v1739
        %v1744 = vmul.f32 %v1245, %v1736
        %v1745 = vmul.f32 %v1265, %v1737
        %v1746 = vmul.f32 %v1285, %v1738
        %v1747 = vmul.f32 %v1305, %v1739
        %v1748 = vmul.f32 %v1246, %v1736
        %v1749 = vmul.f32 %v1266, %v1737
        %v1750 = vmul.f32 %v1286, %v1738
        %v1751 = vmul.f32 %v1306, %v1739
        %v1752 = vmul.f32 %v1247, %v1736
        %v1753 = vmul.f32 %v1267, %v1737
        %v1754 = vmul.f32 %v1287, %v1738
        %v1755 = vmul.f32 %v1307, %v1739
        %1756 = vset.pattern.permute.xlu0 9
        %1757 = vperm.xlu0 %1756, %v301
        %v1758 = vpop.permute.xlu0 %1757
        %1760 = vset.pattern.permute.xlu0 9
        %1761 = vperm.xlu0 %1760, %v302
        %v1762 = vpop.permute.xlu0 %1761
        %1764 = vset.pattern.permute.xlu0 9
        %1765 = vperm.xlu0 %1764, %v303
        %v1766 = vpop.permute.xlu0 %1765
        %1768 = vset.pattern.permute.xlu0 9
        %1769 = vperm.xlu0 %1768, %v304
        %v1770 = vpop.permute.xlu0 %1769
        %v1772 = vmul.f32 %v1740, %v1758
        %v1773 = vmul.f32 %v1741, %v1758
        %v1774 = vmul.f32 %v1742, %v1758
        %v1775 = vmul.f32 %v1743, %v1758
        %v1776 = vmul.f32 %v1744, %v1762
        %v1777 = vmul.f32 %v1745, %v1762
        %v1778 = vmul.f32 %v1746, %v1762
        %v1779 = vmul.f32 %v1747, %v1762
        %v1780 = vmul.f32 %v1748, %v1766
        %v1781 = vmul.f32 %v1749, %v1766
        %v1782 = vmul.f32 %v1750, %v1766
        %v1783 = vmul.f32 %v1751, %v1766
        %v1784 = vmul.f32 %v1752, %v1770
        %v1785 = vmul.f32 %v1753, %v1770
        %v1786 = vmul.f32 %v1754, %v1770
        %v1787 = vmul.f32 %v1755, %v1770
        %1788 = vset.pattern.permute.xlu0 10
        %1789 = vperm.xlu0 %1788, %v301
        %v1790 = vpop.permute.xlu0 %1789
        %1792 = vset.pattern.permute.xlu0 10
        %1793 = vperm.xlu0 %1792, %v302
        %v1794 = vpop.permute.xlu0 %1793
        %1796 = vset.pattern.permute.xlu0 10
        %1797 = vperm.xlu0 %1796, %v303
        %v1798 = vpop.permute.xlu0 %1797
        %1800 = vset.pattern.permute.xlu0 10
        %1801 = vperm.xlu0 %1800, %v304
        %v1802 = vpop.permute.xlu0 %1801
        %v1804 = vadd.f32 %v1772, %v1790
        %v1805 = vadd.f32 %v1773, %v1790
        %v1806 = vadd.f32 %v1774, %v1790
        %v1807 = vadd.f32 %v1775, %v1790
        %v1808 = vadd.f32 %v1776, %v1794
        %v1809 = vadd.f32 %v1777, %v1794
        %v1810 = vadd.f32 %v1778, %v1794
        %v1811 = vadd.f32 %v1779, %v1794
        %v1812 = vadd.f32 %v1780, %v1798
        %v1813 = vadd.f32 %v1781, %v1798
        %v1814 = vadd.f32 %v1782, %v1798
        %v1815 = vadd.f32 %v1783, %v1798
        %v1816 = vadd.f32 %v1784, %v1802
        %v1817 = vadd.f32 %v1785, %v1802
        %v1818 = vadd.f32 %v1786, %v1802
        %v1819 = vadd.f32 %v1787, %v1802
        %vm1820 = vcmp.ge.f32.partialorder %v1804, 0.0
        %vm1821 = vcmp.ge.f32.partialorder %v1805, 0.0
        %vm1822 = vcmp.ge.f32.partialorder %v1806, 0.0
        %vm1823 = vcmp.ge.f32.partialorder %v1807, 0.0
        %vm1824 = vcmp.ge.f32.partialorder %v1808, 0.0
        %vm1825 = vcmp.ge.f32.partialorder %v1809, 0.0
        %vm1826 = vcmp.ge.f32.partialorder %v1810, 0.0
        %vm1827 = vcmp.ge.f32.partialorder %v1811, 0.0
        %vm1828 = vcmp.ge.f32.partialorder %v1812, 0.0
        %vm1829 = vcmp.ge.f32.partialorder %v1813, 0.0
        %vm1830 = vcmp.ge.f32.partialorder %v1814, 0.0
        %vm1831 = vcmp.ge.f32.partialorder %v1815, 0.0
        %vm1832 = vcmp.ge.f32.partialorder %v1816, 0.0
        %vm1833 = vcmp.ge.f32.partialorder %v1817, 0.0
        %vm1834 = vcmp.ge.f32.partialorder %v1818, 0.0
        %vm1835 = vcmp.ge.f32.partialorder %v1819, 0.0
        %v1836 = vmul.f32 %v1804, 0.01
        %v1837 = vmul.f32 %v1805, 0.01
        %v1838 = vmul.f32 %v1806, 0.01
        %v1839 = vmul.f32 %v1807, 0.01
        %v1840 = vmul.f32 %v1808, 0.01
        %v1841 = vmul.f32 %v1809, 0.01
        %v1842 = vmul.f32 %v1810, 0.01
        %v1843 = vmul.f32 %v1811, 0.01
        %v1844 = vmul.f32 %v1812, 0.01
        %v1845 = vmul.f32 %v1813, 0.01
        %v1846 = vmul.f32 %v1814, 0.01
        %v1847 = vmul.f32 %v1815, 0.01
        %v1848 = vmul.f32 %v1816, 0.01
        %v1849 = vmul.f32 %v1817, 0.01
        %v1850 = vmul.f32 %v1818, 0.01
        %v1851 = vmul.f32 %v1819, 0.01
        %v1852 = vsel %vm1820, %v1804, %v1836
        %v1853 = vsel %vm1821, %v1805, %v1837
        %v1854 = vsel %vm1822, %v1806, %v1838
        %v1855 = vsel %vm1823, %v1807, %v1839
        %v1856 = vsel %vm1824, %v1808, %v1840
        %v1857 = vsel %vm1825, %v1809, %v1841
        %v1858 = vsel %vm1826, %v1810, %v1842
        %v1859 = vsel %vm1827, %v1811, %v1843
        %v1860 = vsel %vm1828, %v1812, %v1844
        %v1861 = vsel %vm1829, %v1813, %v1845
        %v1862 = vsel %vm1830, %v1814, %v1846
        %v1863 = vsel %vm1831, %v1815, %v1847
        %v1864 = vsel %vm1832, %v1816, %v1848
        %v1865 = vsel %vm1833, %v1817, %v1849
        %v1866 = vsel %vm1834, %v1818, %v1850
        %v1867 = vsel %vm1835, %v1819, %v1851
        %1868 = vrot.lane.b32.xlu0 %v1852, 1
        %v1869 = vpop.permute.xlu0 %1868
        %1870 = vrot.lane.b32.xlu0 %v1856, 1
        %v1871 = vpop.permute.xlu0 %1870
        %1872 = vrot.lane.b32.xlu0 %v1860, 1
        %v1873 = vpop.permute.xlu0 %1872
        %1874 = vrot.lane.b32.xlu0 %v1864, 1
        %v1875 = vpop.permute.xlu0 %1874
        %1876 = vrot.lane.b32.xlu0 %v1853, 1
        %v1877 = vpop.permute.xlu0 %1876
        %1878 = vrot.lane.b32.xlu0 %v1857, 1
        %v1879 = vpop.permute.xlu0 %1878
        %1880 = vrot.lane.b32.xlu0 %v1861, 1
        %v1881 = vpop.permute.xlu0 %1880
        %1882 = vrot.lane.b32.xlu0 %v1865, 1
        %v1883 = vpop.permute.xlu0 %1882
        %1884 = vrot.lane.b32.xlu0 %v1854, 1
        %v1885 = vpop.permute.xlu0 %1884
        %1886 = vrot.lane.b32.xlu0 %v1858, 1
        %v1887 = vpop.permute.xlu0 %1886
        %1888 = vrot.lane.b32.xlu0 %v1862, 1
        %v1889 = vpop.permute.xlu0 %1888
        %1890 = vrot.lane.b32.xlu0 %v1866, 1
        %v1891 = vpop.permute.xlu0 %1890
        %1892 = vrot.lane.b32.xlu0 %v1855, 1
        %v1893 = vpop.permute.xlu0 %1892
        %1894 = vrot.lane.b32.xlu0 %v1859, 1
        %v1895 = vpop.permute.xlu0 %1894
        %1896 = vrot.lane.b32.xlu0 %v1863, 1
        %v1897 = vpop.permute.xlu0 %1896
        %1898 = vrot.lane.b32.xlu0 %v1867, 1
        %v1899 = vpop.permute.xlu0 %1898
        %v1900 = vsel %vm1575, %v1885, %v1893
        %v1901 = vsel %vm1575, %v1887, %v1895
        %v1902 = vsel %vm1575, %v1889, %v1897
        %v1903 = vsel %vm1575, %v1891, %v1899
        %v1904 = vsel %vm1575, %v1877, %v1885
        %v1905 = vsel %vm1575, %v1879, %v1887
        %v1906 = vsel %vm1575, %v1881, %v1889
        %v1907 = vsel %vm1575, %v1883, %v1891
        %v1908 = vsel %vm1575, %v1869, %v1877
        %v1909 = vsel %vm1575, %v1871, %v1879
        %v1910 = vsel %vm1575, %v1873, %v1881
        %v1911 = vsel %vm1575, %v1875, %v1883
        %v1912 = vsel %vm1575, %v1893, %v1869
        %v1913 = vsel %vm1575, %v1895, %v1871
        %v1914 = vsel %vm1575, %v1897, %v1873
        %v1915 = vsel %vm1575, %v1899, %v1875
        %v1916 = vmul.f32 %v428, %v1912
        %v1917 = vmul.f32 %v429, %v1908
        %v1918 = vmul.f32 %v430, %v1904
        %v1919 = vmul.f32 %v431, %v1900
        %v1920 = vmul.f32 %v428, %v1913
        %v1921 = vmul.f32 %v429, %v1909
        %v1922 = vmul.f32 %v430, %v1905
        %v1923 = vmul.f32 %v431, %v1901
        %v1924 = vmul.f32 %v428, %v1914
        %v1925 = vmul.f32 %v429, %v1910
        %v1926 = vmul.f32 %v430, %v1906
        %v1927 = vmul.f32 %v431, %v1902
        %v1928 = vmul.f32 %v428, %v1915
        %v1929 = vmul.f32 %v429, %v1911
        %v1930 = vmul.f32 %v430, %v1907
        %v1931 = vmul.f32 %v431, %v1903
        %1932 = vst [vmem:[#allocation2] sm:$0xff] %v1916
        %1933 = vst [vmem:[#allocation2 + $0x8] sm:$0xff] %v1917
        %1934 = vst [vmem:[#allocation2 + $0x10] sm:$0xff] %v1918
        %1935 = vst [vmem:[#allocation2 + $0x18] sm:$0xff] %v1919
        %1936 = vst [vmem:[#allocation2 + $0x20] sm:$0xff] %v1920
        %1937 = vst [vmem:[#allocation2 + $0x28] sm:$0xff] %v1921
        %1938 = vst [vmem:[#allocation2 + $0x30] sm:$0xff] %v1922
        %1939 = vst [vmem:[#allocation2 + $0x38] sm:$0xff] %v1923
        %1940 = vst [vmem:[#allocation2 + $0x40] sm:$0xff] %v1924
        %1941 = vst [vmem:[#allocation2 + $0x48] sm:$0xff] %v1925
        %1942 = vst [vmem:[#allocation2 + $0x50] sm:$0xff] %v1926
        %1943 = vst [vmem:[#allocation2 + $0x58] sm:$0xff] %v1927
        %1944 = vst [vmem:[#allocation2 + $0x60] sm:$0xff] %v1928
        %1945 = vst [vmem:[#allocation2 + $0x68] sm:$0xff] %v1929
        %1946 = vst [vmem:[#allocation2 + $0x70] sm:$0xff] %v1930
        %1947 = vst [vmem:[#allocation2 + $0x78] sm:$0xff] %v1931
        %1948 = vst [vmem:[#allocation2 + $0x80] sm:$0xff] %v1852
        %1949 = vst [vmem:[#allocation2 + $0x88] sm:$0xff] %v1853
        %1950 = vst [vmem:[#allocation2 + $0x90] sm:$0xff] %v1854
        %1951 = vst [vmem:[#allocation2 + $0x98] sm:$0xff] %v1855
        %1952 = vst [vmem:[#allocation2 + $0xa0] sm:$0xff] %v1856
        %1953 = vst [vmem:[#allocation2 + $0xa8] sm:$0xff] %v1857
        %1954 = vst [vmem:[#allocation2 + $0xb0] sm:$0xff] %v1858
        %1955 = vst [vmem:[#allocation2 + $0xb8] sm:$0xff] %v1859
        %1956 = vst [vmem:[#allocation2 + $0xc0] sm:$0xff] %v1860
        %1957 = vst [vmem:[#allocation2 + $0xc8] sm:$0xff] %v1861
        %1958 = vst [vmem:[#allocation2 + $0xd0] sm:$0xff] %v1862
        %1959 = vst [vmem:[#allocation2 + $0xd8] sm:$0xff] %v1863
        %1960 = vst [vmem:[#allocation2 + $0xe0] sm:$0xff] %v1864
        %1961 = vst [vmem:[#allocation2 + $0xe8] sm:$0xff] %v1865
        %1962 = vst [vmem:[#allocation2 + $0xf0] sm:$0xff] %v1866
        %1963 = vst [vmem:[#allocation2 + $0xf8] sm:$0xff] %v1867
        %1964 = vrot.lane.b32.xlu0 %v1852, 127
        %v1965 = vpop.permute.xlu0 %1964
        %1966 = vrot.lane.b32.xlu0 %v1856, 127
        %v1967 = vpop.permute.xlu0 %1966
        %1968 = vrot.lane.b32.xlu0 %v1860, 127
        %v1969 = vpop.permute.xlu0 %1968
        %1970 = vrot.lane.b32.xlu0 %v1864, 127
        %v1971 = vpop.permute.xlu0 %1970
        %1972 = vrot.lane.b32.xlu0 %v1853, 127
        %v1973 = vpop.permute.xlu0 %1972
        %1974 = vrot.lane.b32.xlu0 %v1857, 127
        %v1975 = vpop.permute.xlu0 %1974
        %1976 = vrot.lane.b32.xlu0 %v1861, 127
        %v1977 = vpop.permute.xlu0 %1976
        %1978 = vrot.lane.b32.xlu0 %v1865, 127
        %v1979 = vpop.permute.xlu0 %1978
        %1980 = vrot.lane.b32.xlu0 %v1854, 127
        %v1981 = vpop.permute.xlu0 %1980
        %1982 = vrot.lane.b32.xlu0 %v1858, 127
        %v1983 = vpop.permute.xlu0 %1982
        %1984 = vrot.lane.b32.xlu0 %v1862, 127
        %v1985 = vpop.permute.xlu0 %1984
        %1986 = vrot.lane.b32.xlu0 %v1866, 127
        %v1987 = vpop.permute.xlu0 %1986
        %1988 = vrot.lane.b32.xlu0 %v1855, 127
        %v1989 = vpop.permute.xlu0 %1988
        %1990 = vrot.lane.b32.xlu0 %v1859, 127
        %v1991 = vpop.permute.xlu0 %1990
        %1992 = vrot.lane.b32.xlu0 %v1863, 127
        %v1993 = vpop.permute.xlu0 %1992
        %1994 = vrot.lane.b32.xlu0 %v1867, 127
        %v1995 = vpop.permute.xlu0 %1994
        %v1996 = vsel %vm1604, %v1981, %v1989
        %v1997 = vsel %vm1604, %v1983, %v1991
        %v1998 = vsel %vm1604, %v1985, %v1993
        %v1999 = vsel %vm1604, %v1987, %v1995
        %v2000 = vsel %vm1604, %v1973, %v1981
        %v2001 = vsel %vm1604, %v1975, %v1983
        %v2002 = vsel %vm1604, %v1977, %v1985
        %v2003 = vsel %vm1604, %v1979, %v1987
        %v2004 = vsel %vm1604, %v1965, %v1973
        %v2005 = vsel %vm1604, %v1967, %v1975
        %v2006 = vsel %vm1604, %v1969, %v1977
        %v2007 = vsel %vm1604, %v1971, %v1979
        %v2008 = vsel %vm1604, %v1989, %v1965
        %v2009 = vsel %vm1604, %v1991, %v1967
        %v2010 = vsel %vm1604, %v1993, %v1969
        %v2011 = vsel %vm1604, %v1995, %v1971
        %v2012 = vmul.f32 %v452, %v2004
        %v2013 = vmul.f32 %v453, %v2000
        %v2014 = vmul.f32 %v454, %v1996
        %v2015 = vmul.f32 %v455, %v2008
        %v2016 = vmul.f32 %v452, %v2005
        %v2017 = vmul.f32 %v453, %v2001
        %v2018 = vmul.f32 %v454, %v1997
        %v2019 = vmul.f32 %v455, %v2009
        %v2020 = vmul.f32 %v452, %v2006
        %v2021 = vmul.f32 %v453, %v2002
        %v2022 = vmul.f32 %v454, %v1998
        %v2023 = vmul.f32 %v455, %v2010
        %v2024 = vmul.f32 %v452, %v2007
        %v2025 = vmul.f32 %v453, %v2003
        %v2026 = vmul.f32 %v454, %v1999
        %v2027 = vmul.f32 %v455, %v2011
        %2028 = vst [vmem:[#allocation2 + $0x100] sm:$0xff] %v2012
        %2029 = vst [vmem:[#allocation2 + $0x108] sm:$0xff] %v2013
        %2030 = vst [vmem:[#allocation2 + $0x110] sm:$0xff] %v2014
        %2031 = vst [vmem:[#allocation2 + $0x118] sm:$0xff] %v2015
        %2032 = vst [vmem:[#allocation2 + $0x120] sm:$0xff] %v2016
        %2033 = vst [vmem:[#allocation2 + $0x128] sm:$0xff] %v2017
        %2034 = vst [vmem:[#allocation2 + $0x130] sm:$0xff] %v2018
        %2035 = vst [vmem:[#allocation2 + $0x138] sm:$0xff] %v2019
        %2036 = vst [vmem:[#allocation2 + $0x140] sm:$0xff] %v2020
        %2037 = vst [vmem:[#allocation2 + $0x148] sm:$0xff] %v2021
        %2038 = vst [vmem:[#allocation2 + $0x150] sm:$0xff] %v2022
        %2039 = vst [vmem:[#allocation2 + $0x158] sm:$0xff] %v2023
        %2040 = vst [vmem:[#allocation2 + $0x160] sm:$0xff] %v2024
        %2041 = vst [vmem:[#allocation2 + $0x168] sm:$0xff] %v2025
        %2042 = vst [vmem:[#allocation2 + $0x170] sm:$0xff] %v2026
        %2043 = vst [vmem:[#allocation2 + $0x178] sm:$0xff] %v2027
        %v2044 = vld [vmem:[#allocation6] sm:$0xff]
        %v2045 = vld [vmem:[#allocation6 + $0x8] sm:$0xff]
        %v2046 = vld [vmem:[#allocation6 + $0x10] sm:$0xff]
        %v2047 = vld [vmem:[#allocation6 + $0x18] sm:$0xff]
        %v2048 = vld [vmem:[#allocation6 + $0x20] sm:$0xff]
        %v2049 = vld [vmem:[#allocation6 + $0x28] sm:$0xff]
        %v2050 = vld [vmem:[#allocation2] sm:$0xff]
        %v2051 = vld [vmem:[#allocation2 + $0x8] sm:$0xff]
        %v2052 = vld [vmem:[#allocation2 + $0x10] sm:$0xff]
        %v2053 = vld [vmem:[#allocation2 + $0x18] sm:$0xff]
        %v2054 = vld [vmem:[#allocation2 + $0x20] sm:$0xff]
        %v2055 = vld [vmem:[#allocation2 + $0x28] sm:$0xff]
        %v2056 = vld [vmem:[#allocation2 + $0x30] sm:$0xff]
        %v2057 = vld [vmem:[#allocation2 + $0x38] sm:$0xff]
        %v2058 = vld [vmem:[#allocation2 + $0x40] sm:$0xff]
        %v2059 = vld [vmem:[#allocation2 + $0x48] sm:$0xff]
        %v2060 = vld [vmem:[#allocation2 + $0x50] sm:$0xff]
        %v2061 = vld [vmem:[#allocation2 + $0x58] sm:$0xff]
        %v2062 = vld [vmem:[#allocation2 + $0x60] sm:$0xff]
        %v2063 = vld [vmem:[#allocation2 + $0x68] sm:$0xff]
        %v2064 = vld [vmem:[#allocation2 + $0x70] sm:$0xff]
        %v2065 = vld [vmem:[#allocation2 + $0x78] sm:$0xff]
        %v2066 = vld [vmem:[#allocation2 + $0x80] sm:$0xff]
        %v2067 = vld [vmem:[#allocation2 + $0x88] sm:$0xff]
        %v2068 = vld [vmem:[#allocation2 + $0x90] sm:$0xff]
        %v2069 = vld [vmem:[#allocation2 + $0x98] sm:$0xff]
        %v2070 = vld [vmem:[#allocation2 + $0xa0] sm:$0xff]
        %v2071 = vld [vmem:[#allocation2 + $0xa8] sm:$0xff]
        %v2072 = vld [vmem:[#allocation2 + $0xb0] sm:$0xff]
        %v2073 = vld [vmem:[#allocation2 + $0xb8] sm:$0xff]
        %v2074 = vld [vmem:[#allocation2 + $0xc0] sm:$0xff]
        %v2075 = vld [vmem:[#allocation2 + $0xc8] sm:$0xff]
        %v2076 = vld [vmem:[#allocation2 + $0xd0] sm:$0xff]
        %v2077 = vld [vmem:[#allocation2 + $0xd8] sm:$0xff]
        %v2078 = vld [vmem:[#allocation2 + $0xe0] sm:$0xff]
        %v2079 = vld [vmem:[#allocation2 + $0xe8] sm:$0xff]
        %v2080 = vld [vmem:[#allocation2 + $0xf0] sm:$0xff]
        %v2081 = vld [vmem:[#allocation2 + $0xf8] sm:$0xff]
        %v2082 = vld [vmem:[#allocation2 + $0x100] sm:$0xff]
        %v2083 = vld [vmem:[#allocation2 + $0x108] sm:$0xff]
        %v2084 = vld [vmem:[#allocation2 + $0x110] sm:$0xff]
        %v2085 = vld [vmem:[#allocation2 + $0x118] sm:$0xff]
        %v2086 = vld [vmem:[#allocation2 + $0x120] sm:$0xff]
        %v2087 = vld [vmem:[#allocation2 + $0x128] sm:$0xff]
        %v2088 = vld [vmem:[#allocation2 + $0x130] sm:$0xff]
        %v2089 = vld [vmem:[#allocation2 + $0x138] sm:$0xff]
        %v2090 = vld [vmem:[#allocation2 + $0x140] sm:$0xff]
        %v2091 = vld [vmem:[#allocation2 + $0x148] sm:$0xff]
        %v2092 = vld [vmem:[#allocation2 + $0x150] sm:$0xff]
        %v2093 = vld [vmem:[#allocation2 + $0x158] sm:$0xff]
        %v2094 = vld [vmem:[#allocation2 + $0x160] sm:$0xff]
        %v2095 = vld [vmem:[#allocation2 + $0x168] sm:$0xff]
        %v2096 = vld [vmem:[#allocation2 + $0x170] sm:$0xff]
        %v2097 = vld [vmem:[#allocation2 + $0x178] sm:$0xff]
        %2098 = vset.pattern.permute.xlu0 11
        %2099 = vperm.xlu0 %2098, %v301
        %v2100 = vpop.permute.xlu0 %2099
        %2102 = vset.pattern.permute.xlu0 11
        %2103 = vperm.xlu0 %2102, %v302
        %v2104 = vpop.permute.xlu0 %2103
        %2106 = vset.pattern.permute.xlu0 11
        %2107 = vperm.xlu0 %2106, %v303
        %v2108 = vpop.permute.xlu0 %2107
        %2110 = vset.pattern.permute.xlu0 11
        %2111 = vperm.xlu0 %2110, %v304
        %v2112 = vpop.permute.xlu0 %2111
        %2115 = vset.pattern.permute.xlu0 11
        %2116 = vperm.xlu0 %2115, %v305
        %v2117 = vpop.permute.xlu0 %2116
        %2120 = vset.pattern.permute.xlu0 11
        %2121 = vperm.xlu0 %2120, %v306
        %v2122 = vpop.permute.xlu0 %2121
        %v2125 = vsel %vm997, %v2044, 0
        %v2128 = vsel %vm997, %v2045, 0
        %v2131 = vsel %vm997, %v2046, 0
        %v2134 = vsel %vm997, %v2047, 0
        %v2137 = vsel %vm997, %v2048, 0
        %v2140 = vsel %vm997, %v2049, 0
        %2142 = vmatprep.subr.mxu0 %v2051
        %2143 = vmatpush1.msra.mxu0 %v2050
        %2144 = vmatprep.subr.mxu0 %v2055
        %2145 = vmatpush1.msra.mxu0 %v2054
        %2146 = vmatprep.subr.mxu0 %v2059
        %2147 = vmatpush1.msra.mxu0 %v2058
        %2148 = vmatprep.subr.mxu0 %v2063
        %2149 = vmatpush1.msra.mxu0 %v2062
        %2150 = vmatprep.subr.mxu0 %v2067
        %2151 = vmatpush1.msra.mxu0 %v2066
        %2152 = vmatprep.subr.mxu0 %v2071
        %2153 = vmatpush1.msra.mxu0 %v2070
        %2154 = vmatprep.subr.mxu0 %v2075
        %2155 = vmatpush1.msra.mxu0 %v2074
        %2156 = vmatprep.subr.mxu0 %v2079
        %2157 = vmatpush1.msra.mxu0 %v2078
        %2158 = vmatprep.subr.mxu0 %v2083
        %2159 = vmatpush1.msra.mxu0 %v2082
        %2160 = vmatprep.subr.mxu0 %v2087
        %2161 = vmatpush1.msra.mxu0 %v2086
        %2162 = vmatprep.subr.mxu0 %v2091
        %2163 = vmatpush1.msra.mxu0 %v2090
        %2164 = vmatprep.subr.mxu0 %v2095
        %2165 = vmatpush1.msra.mxu0 %v2094
        %2166 = vmatprep.subr.mxu0 0.0
        %2167 = vmatpush1.msra.mxu0 0.0
        %2168 = vmatprep.subr.mxu0 0.0
        %2169 = vmatpush1.msra.mxu0 0.0
        %2170 = vmatprep.subr.mxu0 0.0
        %2171 = vmatpush1.msra.mxu0 0.0
        %2172 = vmatprep.subr.mxu0 0.0
        %2173 = vmatpush1.msra.mxu0 0.0
        %2174 = vmatprep.subr.mxu0 0.0
        %2175 = vmatpush1.msra.mxu0 0.0
        %2176 = vmatprep.subr.mxu0 0.0
        %2177 = vmatpush1.msra.mxu0 0.0
        %2178 = vmatprep.subr.mxu0 0.0
        %2179 = vmatpush1.msra.mxu0 0.0
        %2180 = vmatprep.subr.mxu0 0.0
        %2181 = vmatpush1.msra.mxu0 0.0
        %2182 = vmatprep.subr.mxu0 0.0
        %2183 = vmatpush1.msra.mxu0 0.0
        %2184 = vmatprep.subr.mxu0 0.0
        %2185 = vmatpush1.msra.mxu0 0.0
        %2186 = vmatprep.subr.mxu0 0.0
        %2187 = vmatpush1.msra.mxu0 0.0
        %2188 = vmatprep.subr.mxu0 0.0
        %2189 = vmatpush1.msra.mxu0 0.0
        %2190 = vmatprep.subr.mxu0 0.0
        %2191 = vmatpush1.msra.mxu0 0.0
        %2192 = vmatprep.subr.mxu0 0.0
        %2193 = vmatpush1.msra.mxu0 0.0
        %2194 = vmatprep.subr.mxu0 0.0
        %2195 = vmatpush1.msra.mxu0 0.0
        %2196 = vmatprep.subr.mxu0 0.0
        %2197 = vmatpush1.msra.mxu0 0.0
        %2198 = vmatprep.subr.mxu0 0.0
        %2199 = vmatpush1.msra.mxu0 0.0
        %2200 = vmatprep.subr.mxu0 0.0
        %2201 = vmatpush1.msra.mxu0 0.0
        %2202 = vmatprep.subr.mxu0 0.0
        %2203 = vmatpush1.msra.mxu0 0.0
        %2204 = vmatprep.subr.mxu0 0.0
        %2205 = vmatpush1.msra.mxu0 0.0
        %2206 = vmatprep.mubr.f32.mxu0 0.0
        %2207 = vmatmul.mubr.f32.gmra.mrb[0].mxu0 %v2125
        %v2208 = vpop.f32.mrb[0].mxu0
        %v2209 = vadd.f32 %v2100, %v2208
        %v2210 = vpop.f32.mrb[0].mxu0
        %v2211 = vadd.f32 %v2100, %v2210
        %2212 = vmatprep.mubr.f32.mxu0 0.0
        %2213 = vmatmul.mubr.f32.gmra.mrb[0].mxu0 %v2128
        %v2214 = vpop.f32.mrb[0].mxu0
        %v2215 = vadd.f32 %v2104, %v2214
        %v2216 = vpop.f32.mrb[0].mxu0
        %v2217 = vadd.f32 %v2104, %v2216
        %2218 = vmatprep.mubr.f32.mxu0 0.0
        %2219 = vmatmul.mubr.f32.gmra.mrb[0].mxu0 %v2131
        %v2220 = vpop.f32.mrb[0].mxu0
        %v2221 = vadd.f32 %v2108, %v2220
        %v2222 = vpop.f32.mrb[0].mxu0
        %v2223 = vadd.f32 %v2108, %v2222
        %2224 = vmatprep.mubr.f32.mxu0 0.0
        %2225 = vmatmul.mubr.f32.gmra.mrb[0].mxu0 %v2134
        %v2226 = vpop.f32.mrb[0].mxu0
        %v2227 = vadd.f32 %v2112, %v2226
        %v2228 = vpop.f32.mrb[0].mxu0
        %v2229 = vadd.f32 %v2112, %v2228
        %2230 = vmatprep.mubr.f32.mxu0 0.0
        %2231 = vmatmul.mubr.f32.gmra.mrb[0].mxu0 %v2137
        %v2232 = vpop.f32.mrb[0].mxu0
        %v2233 = vadd.f32 %v2117, %v2232
        %v2234 = vpop.f32.mrb[0].mxu0
        %v2235 = vadd.f32 %v2117, %v2234
        %2236 = vmatprep.mubr.f32.mxu0 0.0
        %2237 = vmatmul.mubr.f32.gmra.mrb[0].mxu0 %v2140
        %v2238 = vpop.f32.mrb[0].mxu0
        %v2239 = vadd.f32 %v2122, %v2238
        %v2240 = vpop.f32.mrb[0].mxu0
        %v2241 = vadd.f32 %v2122, %v2240
        %2242 = vdwg.mxu0
        %2243 = vmatprep.subr.mxu0 %v2053
        %2244 = vmatpush1.msra.mxu0 %v2052
        %2245 = vmatprep.subr.mxu0 %v2057
        %2246 = vmatpush1.msra.mxu0 %v2056
        %2247 = vmatprep.subr.mxu0 %v2061
        %2248 = vmatpush1.msra.mxu0 %v2060
        %2249 = vmatprep.subr.mxu0 %v2065
        %2250 = vmatpush1.msra.mxu0 %v2064
        %2251 = vmatprep.subr.mxu0 %v2069
        %2252 = vmatpush1.msra.mxu0 %v2068
        %2253 = vmatprep.subr.mxu0 %v2073
        %2254 = vmatpush1.msra.mxu0 %v2072
        %2255 = vmatprep.subr.mxu0 %v2077
        %2256 = vmatpush1.msra.mxu0 %v2076
        %2257 = vmatprep.subr.mxu0 %v2081
        %2258 = vmatpush1.msra.mxu0 %v2080
        %2259 = vmatprep.subr.mxu0 %v2085
        %2260 = vmatpush1.msra.mxu0 %v2084
        %2261 = vmatprep.subr.mxu0 %v2089
        %2262 = vmatpush1.msra.mxu0 %v2088
        %2263 = vmatprep.subr.mxu0 %v2093
        %2264 = vmatpush1.msra.mxu0 %v2092
        %2265 = vmatprep.subr.mxu0 %v2097
        %2266 = vmatpush1.msra.mxu0 %v2096
        %2267 = vmatprep.subr.mxu0 0.0
        %2268 = vmatpush1.msra.mxu0 0.0
        %2269 = vmatprep.subr.mxu0 0.0
        %2270 = vmatpush1.msra.mxu0 0.0
        %2271 = vmatprep.subr.mxu0 0.0
        %2272 = vmatpush1.msra.mxu0 0.0
        %2273 = vmatprep.subr.mxu0 0.0
        %2274 = vmatpush1.msra.mxu0 0.0
        %2275 = vmatprep.subr.mxu0 0.0
        %2276 = vmatpush1.msra.mxu0 0.0
        %2277 = vmatprep.subr.mxu0 0.0
        %2278 = vmatpush1.msra.mxu0 0.0
        %2279 = vmatprep.subr.mxu0 0.0
        %2280 = vmatpush1.msra.mxu0 0.0
        %2281 = vmatprep.subr.mxu0 0.0
        %2282 = vmatpush1.msra.mxu0 0.0
        %2283 = vmatprep.subr.mxu0 0.0
        %2284 = vmatpush1.msra.mxu0 0.0
        %2285 = vmatprep.subr.mxu0 0.0
        %2286 = vmatpush1.msra.mxu0 0.0
        %2287 = vmatprep.subr.mxu0 0.0
        %2288 = vmatpush1.msra.mxu0 0.0
        %2289 = vmatprep.subr.mxu0 0.0
        %2290 = vmatpush1.msra.mxu0 0.0
        %2291 = vmatprep.subr.mxu0 0.0
        %2292 = vmatpush1.msra.mxu0 0.0
        %2293 = vmatprep.subr.mxu0 0.0
        %2294 = vmatpush1.msra.mxu0 0.0
        %2295 = vmatprep.subr.mxu0 0.0
        %2296 = vmatpush1.msra.mxu0 0.0
        %2297 = vmatprep.subr.mxu0 0.0
        %2298 = vmatpush1.msra.mxu0 0.0
        %2299 = vmatprep.subr.mxu0 0.0
        %2300 = vmatpush1.msra.mxu0 0.0
        %2301 = vmatprep.subr.mxu0 0.0
        %2302 = vmatpush1.msra.mxu0 0.0
        %2303 = vmatprep.subr.mxu0 0.0
        %2304 = vmatpush1.msra.mxu0 0.0
        %2305 = vmatprep.subr.mxu0 0.0
        %2306 = vmatpush1.msra.mxu0 0.0
        %2307 = vmatprep.mubr.f32.mxu0 0.0
        %2308 = vmatmul.mubr.f32.gmra.mrb[0].mxu0 %v2125
        %v2309 = vpop.f32.mrb[0].mxu0
        %v2310 = vadd.f32 %v2100, %v2309
        %v2311 = vpop.f32.mrb[0].mxu0
        %v2312 = vadd.f32 %v2100, %v2311
        %2313 = vmatprep.mubr.f32.mxu0 0.0
        %2314 = vmatmul.mubr.f32.gmra.mrb[0].mxu0 %v2128
        %v2315 = vpop.f32.mrb[0].mxu0
        %v2316 = vadd.f32 %v2104, %v2315
        %v2317 = vpop.f32.mrb[0].mxu0
        %v2318 = vadd.f32 %v2104, %v2317
        %2319 = vmatprep.mubr.f32.mxu0 0.0
        %2320 = vmatmul.mubr.f32.gmra.mrb[0].mxu0 %v2131
        %v2321 = vpop.f32.mrb[0].mxu0
        %v2322 = vadd.f32 %v2108, %v2321
        %v2323 = vpop.f32.mrb[0].mxu0
        %v2324 = vadd.f32 %v2108, %v2323
        %2325 = vmatprep.mubr.f32.mxu0 0.0
        %2326 = vmatmul.mubr.f32.gmra.mrb[0].mxu0 %v2134
        %v2327 = vpop.f32.mrb[0].mxu0
        %v2328 = vadd.f32 %v2112, %v2327
        %v2329 = vpop.f32.mrb[0].mxu0
        %v2330 = vadd.f32 %v2112, %v2329
        %2331 = vmatprep.mubr.f32.mxu0 0.0
        %2332 = vmatmul.mubr.f32.gmra.mrb[0].mxu0 %v2137
        %v2333 = vpop.f32.mrb[0].mxu0
        %v2334 = vadd.f32 %v2117, %v2333
        %v2335 = vpop.f32.mrb[0].mxu0
        %v2336 = vadd.f32 %v2117, %v2335
        %2337 = vmatprep.mubr.f32.mxu0 0.0
        %2338 = vmatmul.mubr.f32.gmra.mrb[0].mxu0 %v2140
        %v2339 = vpop.f32.mrb[0].mxu0
        %v2340 = vadd.f32 %v2122, %v2339
        %v2341 = vpop.f32.mrb[0].mxu0
        %v2342 = vadd.f32 %v2122, %v2341
        %2343 = vdwg.mxu0
        %vm2344 = vcmp.ge.f32.partialorder %v2209, 0.0
        %vm2345 = vcmp.ge.f32.partialorder %v2211, 0.0
        %vm2346 = vcmp.ge.f32.partialorder %v2310, 0.0
        %vm2347 = vcmp.ge.f32.partialorder %v2312, 0.0
        %vm2348 = vcmp.ge.f32.partialorder %v2215, 0.0
        %vm2349 = vcmp.ge.f32.partialorder %v2217, 0.0
        %vm2350 = vcmp.ge.f32.partialorder %v2316, 0.0
        %vm2351 = vcmp.ge.f32.partialorder %v2318, 0.0
        %vm2352 = vcmp.ge.f32.partialorder %v2221, 0.0
        %vm2353 = vcmp.ge.f32.partialorder %v2223, 0.0
        %vm2354 = vcmp.ge.f32.partialorder %v2322, 0.0
        %vm2355 = vcmp.ge.f32.partialorder %v2324, 0.0
        %vm2356 = vcmp.ge.f32.partialorder %v2227, 0.0
        %vm2357 = vcmp.ge.f32.partialorder %v2229, 0.0
        %vm2358 = vcmp.ge.f32.partialorder %v2328, 0.0
        %vm2359 = vcmp.ge.f32.partialorder %v2330, 0.0
        %vm2360 = vcmp.ge.f32.partialorder %v2233, 0.0
        %vm2361 = vcmp.ge.f32.partialorder %v2235, 0.0
        %vm2362 = vcmp.ge.f32.partialorder %v2334, 0.0
        %vm2363 = vcmp.ge.f32.partialorder %v2336, 0.0
        %vm2364 = vcmp.ge.f32.partialorder %v2239, 0.0
        %vm2365 = vcmp.ge.f32.partialorder %v2241, 0.0
        %vm2366 = vcmp.ge.f32.partialorder %v2340, 0.0
        %vm2367 = vcmp.ge.f32.partialorder %v2342, 0.0
        %v2368 = vmul.f32 %v2209, 0.01
        %v2369 = vmul.f32 %v2211, 0.01
        %v2370 = vmul.f32 %v2310, 0.01
        %v2371 = vmul.f32 %v2312, 0.01
        %v2372 = vmul.f32 %v2215, 0.01
        %v2373 = vmul.f32 %v2217, 0.01
        %v2374 = vmul.f32 %v2316, 0.01
        %v2375 = vmul.f32 %v2318, 0.01
        %v2376 = vmul.f32 %v2221, 0.01
        %v2377 = vmul.f32 %v2223, 0.01
        %v2378 = vmul.f32 %v2322, 0.01
        %v2379 = vmul.f32 %v2324, 0.01
        %v2380 = vmul.f32 %v2227, 0.01
        %v2381 = vmul.f32 %v2229, 0.01
        %v2382 = vmul.f32 %v2328, 0.01
        %v2383 = vmul.f32 %v2330, 0.01
        %v2384 = vmul.f32 %v2233, 0.01
        %v2385 = vmul.f32 %v2235, 0.01
        %v2386 = vmul.f32 %v2334, 0.01
        %v2387 = vmul.f32 %v2336, 0.01
        %v2388 = vmul.f32 %v2239, 0.01
        %v2389 = vmul.f32 %v2241, 0.01
        %v2390 = vmul.f32 %v2340, 0.01
        %v2391 = vmul.f32 %v2342, 0.01
        %v2392 = vsel %vm2344, %v2209, %v2368
        %v2393 = vsel %vm2345, %v2211, %v2369
        %v2394 = vsel %vm2346, %v2310, %v2370
        %v2395 = vsel %vm2347, %v2312, %v2371
        %v2396 = vsel %vm2348, %v2215, %v2372
        %v2397 = vsel %vm2349, %v2217, %v2373
        %v2398 = vsel %vm2350, %v2316, %v2374
        %v2399 = vsel %vm2351, %v2318, %v2375
        %v2400 = vsel %vm2352, %v2221, %v2376
        %v2401 = vsel %vm2353, %v2223, %v2377
        %v2402 = vsel %vm2354, %v2322, %v2378
        %v2403 = vsel %vm2355, %v2324, %v2379
        %v2404 = vsel %vm2356, %v2227, %v2380
        %v2405 = vsel %vm2357, %v2229, %v2381
        %v2406 = vsel %vm2358, %v2328, %v2382
        %v2407 = vsel %vm2359, %v2330, %v2383
        %v2408 = vsel %vm2360, %v2233, %v2384
        %v2409 = vsel %vm2361, %v2235, %v2385
        %v2410 = vsel %vm2362, %v2334, %v2386
        %v2411 = vsel %vm2363, %v2336, %v2387
        %v2412 = vsel %vm2364, %v2239, %v2388
        %v2413 = vsel %vm2365, %v2241, %v2389
        %v2414 = vsel %vm2366, %v2340, %v2390
        %v2415 = vsel %vm2367, %v2342, %v2391
        %2416 = vrot.lane.b32.xlu0 %v2392, 1
        %v2417 = vpop.permute.xlu0 %2416
        %2418 = vrot.lane.b32.xlu0 %v2396, 1
        %v2419 = vpop.permute.xlu0 %2418
        %2420 = vrot.lane.b32.xlu0 %v2400, 1
        %v2421 = vpop.permute.xlu0 %2420
        %2422 = vrot.lane.b32.xlu0 %v2404, 1
        %v2423 = vpop.permute.xlu0 %2422
        %2424 = vrot.lane.b32.xlu0 %v2408, 1
        %v2425 = vpop.permute.xlu0 %2424
        %2426 = vrot.lane.b32.xlu0 %v2412, 1
        %v2427 = vpop.permute.xlu0 %2426
        %2428 = vrot.lane.b32.xlu0 %v2393, 1
        %v2429 = vpop.permute.xlu0 %2428
        %2430 = vrot.lane.b32.xlu0 %v2397, 1
        %v2431 = vpop.permute.xlu0 %2430
        %2432 = vrot.lane.b32.xlu0 %v2401, 1
        %v2433 = vpop.permute.xlu0 %2432
        %2434 = vrot.lane.b32.xlu0 %v2405, 1
        %v2435 = vpop.permute.xlu0 %2434
        %2436 = vrot.lane.b32.xlu0 %v2409, 1
        %v2437 = vpop.permute.xlu0 %2436
        %2438 = vrot.lane.b32.xlu0 %v2413, 1
        %v2439 = vpop.permute.xlu0 %2438
        %2440 = vrot.lane.b32.xlu0 %v2394, 1
        %v2441 = vpop.permute.xlu0 %2440
        %2442 = vrot.lane.b32.xlu0 %v2398, 1
        %v2443 = vpop.permute.xlu0 %2442
        %2444 = vrot.lane.b32.xlu0 %v2402, 1
        %v2445 = vpop.permute.xlu0 %2444
        %2446 = vrot.lane.b32.xlu0 %v2406, 1
        %v2447 = vpop.permute.xlu0 %2446
        %2448 = vrot.lane.b32.xlu0 %v2410, 1
        %v2449 = vpop.permute.xlu0 %2448
        %2450 = vrot.lane.b32.xlu0 %v2414, 1
        %v2451 = vpop.permute.xlu0 %2450
        %2452 = vrot.lane.b32.xlu0 %v2395, 1
        %v2453 = vpop.permute.xlu0 %2452
        %2454 = vrot.lane.b32.xlu0 %v2399, 1
        %v2455 = vpop.permute.xlu0 %2454
        %2456 = vrot.lane.b32.xlu0 %v2403, 1
        %v2457 = vpop.permute.xlu0 %2456
        %2458 = vrot.lane.b32.xlu0 %v2407, 1
        %v2459 = vpop.permute.xlu0 %2458
        %2460 = vrot.lane.b32.xlu0 %v2411, 1
        %v2461 = vpop.permute.xlu0 %2460
        %2462 = vrot.lane.b32.xlu0 %v2415, 1
        %v2463 = vpop.permute.xlu0 %2462
        %v2464 = vsel %vm1575, %v2441, %v2453
        %v2465 = vsel %vm1575, %v2443, %v2455
        %v2466 = vsel %vm1575, %v2445, %v2457
        %v2467 = vsel %vm1575, %v2447, %v2459
        %v2468 = vsel %vm1575, %v2449, %v2461
        %v2469 = vsel %vm1575, %v2451, %v2463
        %v2470 = vsel %vm1575, %v2429, %v2441
        %v2471 = vsel %vm1575, %v2431, %v2443
        %v2472 = vsel %vm1575, %v2433, %v2445
        %v2473 = vsel %vm1575, %v2435, %v2447
        %v2474 = vsel %vm1575, %v2437, %v2449
        %v2475 = vsel %vm1575, %v2439, %v2451
        %v2476 = vsel %vm1575, %v2417, %v2429
        %v2477 = vsel %vm1575, %v2419, %v2431
        %v2478 = vsel %vm1575, %v2421, %v2433
        %v2479 = vsel %vm1575, %v2423, %v2435
        %v2480 = vsel %vm1575, %v2425, %v2437
        %v2481 = vsel %vm1575, %v2427, %v2439
        %v2482 = vsel %vm1575, %v2453, %v2417
        %v2483 = vsel %vm1575, %v2455, %v2419
        %v2484 = vsel %vm1575, %v2457, %v2421
        %v2485 = vsel %vm1575, %v2459, %v2423
        %v2486 = vsel %vm1575, %v2461, %v2425
        %v2487 = vsel %vm1575, %v2463, %v2427
        %v2488 = vmul.f32 %v428, %v2482
        %v2489 = vmul.f32 %v429, %v2476
        %v2490 = vmul.f32 %v430, %v2470
        %v2491 = vmul.f32 %v431, %v2464
        %v2492 = vmul.f32 %v428, %v2483
        %v2493 = vmul.f32 %v429, %v2477
        %v2494 = vmul.f32 %v430, %v2471
        %v2495 = vmul.f32 %v431, %v2465
        %v2496 = vmul.f32 %v428, %v2484
        %v2497 = vmul.f32 %v429, %v2478
        %v2498 = vmul.f32 %v430, %v2472
        %v2499 = vmul.f32 %v431, %v2466
        %v2500 = vmul.f32 %v428, %v2485
        %v2501 = vmul.f32 %v429, %v2479
        %v2502 = vmul.f32 %v430, %v2473
        %v2503 = vmul.f32 %v431, %v2467
        %v2504 = vmul.f32 %v428, %v2486
        %v2505 = vmul.f32 %v429, %v2480
        %v2506 = vmul.f32 %v430, %v2474
        %v2507 = vmul.f32 %v431, %v2468
        %v2508 = vmul.f32 %v428, %v2487
        %v2509 = vmul.f32 %v429, %v2481
        %v2510 = vmul.f32 %v430, %v2475
        %v2511 = vmul.f32 %v431, %v2469
        %2512 = vst [vmem:[#allocation2] sm:$0xff] %v2488
        %2513 = vst [vmem:[#allocation2 + $0x8] sm:$0xff] %v2489
        %2514 = vst [vmem:[#allocation2 + $0x10] sm:$0xff] %v2490
        %2515 = vst [vmem:[#allocation2 + $0x18] sm:$0xff] %v2491
        %2516 = vst [vmem:[#allocation2 + $0x20] sm:$0xff] %v2492
        %2517 = vst [vmem:[#allocation2 + $0x28] sm:$0xff] %v2493
        %2518 = vst [vmem:[#allocation2 + $0x30] sm:$0xff] %v2494
        %2519 = vst [vmem:[#allocation2 + $0x38] sm:$0xff] %v2495
        %2520 = vst [vmem:[#allocation2 + $0x40] sm:$0xff] %v2496
        %2521 = vst [vmem:[#allocation2 + $0x48] sm:$0xff] %v2497
        %2522 = vst [vmem:[#allocation2 + $0x50] sm:$0xff] %v2498
        %2523 = vst [vmem:[#allocation2 + $0x58] sm:$0xff] %v2499
        %2524 = vst [vmem:[#allocation2 + $0x60] sm:$0xff] %v2500
        %2525 = vst [vmem:[#allocation2 + $0x68] sm:$0xff] %v2501
        %2526 = vst [vmem:[#allocation2 + $0x70] sm:$0xff] %v2502
        %2527 = vst [vmem:[#allocation2 + $0x78] sm:$0xff] %v2503
        %2528 = vst [vmem:[#allocation2 + $0x80] sm:$0xff] %v2504
        %2529 = vst [vmem:[#allocation2 + $0x88] sm:$0xff] %v2505
        %2530 = vst [vmem:[#allocation2 + $0x90] sm:$0xff] %v2506
        %2531 = vst [vmem:[#allocation2 + $0x98] sm:$0xff] %v2507
        %2532 = vst [vmem:[#allocation2 + $0xa0] sm:$0xff] %v2508
        %2533 = vst [vmem:[#allocation2 + $0xa8] sm:$0xff] %v2509
        %2534 = vst [vmem:[#allocation2 + $0xb0] sm:$0xff] %v2510
        %2535 = vst [vmem:[#allocation2 + $0xb8] sm:$0xff] %v2511
        %2536 = vst [vmem:[#allocation2 + $0xc0] sm:$0xff] %v2392
        %2537 = vst [vmem:[#allocation2 + $0xc8] sm:$0xff] %v2393
        %2538 = vst [vmem:[#allocation2 + $0xd0] sm:$0xff] %v2394
        %2539 = vst [vmem:[#allocation2 + $0xd8] sm:$0xff] %v2395
        %2540 = vst [vmem:[#allocation2 + $0xe0] sm:$0xff] %v2396
        %2541 = vst [vmem:[#allocation2 + $0xe8] sm:$0xff] %v2397
        %2542 = vst [vmem:[#allocation2 + $0xf0] sm:$0xff] %v2398
        %2543 = vst [vmem:[#allocation2 + $0xf8] sm:$0xff] %v2399
        %2544 = vst [vmem:[#allocation2 + $0x100] sm:$0xff] %v2400
        %2545 = vst [vmem:[#allocation2 + $0x108] sm:$0xff] %v2401
        %2546 = vst [vmem:[#allocation2 + $0x110] sm:$0xff] %v2402
        %2547 = vst [vmem:[#allocation2 + $0x118] sm:$0xff] %v2403
        %2548 = vst [vmem:[#allocation2 + $0x120] sm:$0xff] %v2404
        %2549 = vst [vmem:[#allocation2 + $0x128] sm:$0xff] %v2405
        %2550 = vst [vmem:[#allocation2 + $0x130] sm:$0xff] %v2406
        %2551 = vst [vmem:[#allocation2 + $0x138] sm:$0xff] %v2407
        %2552 = vst [vmem:[#allocation2 + $0x140] sm:$0xff] %v2408
        %2553 = vst [vmem:[#allocation2 + $0x148] sm:$0xff] %v2409
        %2554 = vst [vmem:[#allocation2 + $0x150] sm:$0xff] %v2410
        %2555 = vst [vmem:[#allocation2 + $0x158] sm:$0xff] %v2411
        %2556 = vst [vmem:[#allocation2 + $0x160] sm:$0xff] %v2412
        %2557 = vst [vmem:[#allocation2 + $0x168] sm:$0xff] %v2413
        %2558 = vst [vmem:[#allocation2 + $0x170] sm:$0xff] %v2414
        %2559 = vst [vmem:[#allocation2 + $0x178] sm:$0xff] %v2415
        %2560 = vrot.lane.b32.xlu0 %v2392, 127
        %v2561 = vpop.permute.xlu0 %2560
        %2562 = vrot.lane.b32.xlu0 %v2396, 127
        %v2563 = vpop.permute.xlu0 %2562
        %2564 = vrot.lane.b32.xlu0 %v2400, 127
        %v2565 = vpop.permute.xlu0 %2564
        %2566 = vrot.lane.b32.xlu0 %v2404, 127
        %v2567 = vpop.permute.xlu0 %2566
        %2568 = vrot.lane.b32.xlu0 %v2408, 127
        %v2569 = vpop.permute.xlu0 %2568
        %2570 = vrot.lane.b32.xlu0 %v2412, 127
        %v2571 = vpop.permute.xlu0 %2570
        %2572 = vrot.lane.b32.xlu0 %v2393, 127
        %v2573 = vpop.permute.xlu0 %2572
        %2574 = vrot.lane.b32.xlu0 %v2397, 127
        %v2575 = vpop.permute.xlu0 %2574
        %2576 = vrot.lane.b32.xlu0 %v2401, 127
        %v2577 = vpop.permute.xlu0 %2576
        %2578 = vrot.lane.b32.xlu0 %v2405, 127
        %v2579 = vpop.permute.xlu0 %2578
        %2580 = vrot.lane.b32.xlu0 %v2409, 127
        %v2581 = vpop.permute.xlu0 %2580
        %2582 = vrot.lane.b32.xlu0 %v2413, 127
        %v2583 = vpop.permute.xlu0 %2582
        %2584 = vrot.lane.b32.xlu0 %v2394, 127
        %v2585 = vpop.permute.xlu0 %2584
        %2586 = vrot.lane.b32.xlu0 %v2398, 127
        %v2587 = vpop.permute.xlu0 %2586
        %2588 = vrot.lane.b32.xlu0 %v2402, 127
        %v2589 = vpop.permute.xlu0 %2588
        %2590 = vrot.lane.b32.xlu0 %v2406, 127
        %v2591 = vpop.permute.xlu0 %2590
        %2592 = vrot.lane.b32.xlu0 %v2410, 127
        %v2593 = vpop.permute.xlu0 %2592
        %2594 = vrot.lane.b32.xlu0 %v2414, 127
        %v2595 = vpop.permute.xlu0 %2594
        %2596 = vrot.lane.b32.xlu0 %v2395, 127
        %v2597 = vpop.permute.xlu0 %2596
        %2598 = vrot.lane.b32.xlu0 %v2399, 127
        %v2599 = vpop.permute.xlu0 %2598
        %2600 = vrot.lane.b32.xlu0 %v2403, 127
        %v2601 = vpop.permute.xlu0 %2600
        %2602 = vrot.lane.b32.xlu0 %v2407, 127
        %v2603 = vpop.permute.xlu0 %2602
        %2604 = vrot.lane.b32.xlu0 %v2411, 127
        %v2605 = vpop.permute.xlu0 %2604
        %2606 = vrot.lane.b32.xlu0 %v2415, 127
        %v2607 = vpop.permute.xlu0 %2606
        %v2608 = vsel %vm1604, %v2585, %v2597
        %v2609 = vsel %vm1604, %v2587, %v2599
        %v2610 = vsel %vm1604, %v2589, %v2601
        %v2611 = vsel %vm1604, %v2591, %v2603
        %v2612 = vsel %vm1604, %v2593, %v2605
        %v2613 = vsel %vm1604, %v2595, %v2607
        %v2614 = vsel %vm1604, %v2573, %v2585
        %v2615 = vsel %vm1604, %v2575, %v2587
        %v2616 = vsel %vm1604, %v2577, %v2589
        %v2617 = vsel %vm1604, %v2579, %v2591
        %v2618 = vsel %vm1604, %v2581, %v2593
        %v2619 = vsel %vm1604, %v2583, %v2595
        %v2620 = vsel %vm1604, %v2561, %v2573
        %v2621 = vsel %vm1604, %v2563, %v2575
        %v2622 = vsel %vm1604, %v2565, %v2577
        %v2623 = vsel %vm1604, %v2567, %v2579
        %v2624 = vsel %vm1604, %v2569, %v2581
        %v2625 = vsel %vm1604, %v2571, %v2583
        %v2626 = vsel %vm1604, %v2597, %v2561
        %v2627 = vsel %vm1604, %v2599, %v2563
        %v2628 = vsel %vm1604, %v2601, %v2565
        %v2629 = vsel %vm1604, %v2603, %v2567
        %v2630 = vsel %vm1604, %v2605, %v2569
        %v2631 = vsel %vm1604, %v2607, %v2571
        %v2632 = vmul.f32 %v452, %v2620
        %v2633 = vmul.f32 %v453, %v2614
        %v2634 = vmul.f32 %v454, %v2608
        %v2635 = vmul.f32 %v455, %v2626
        %v2636 = vmul.f32 %v452, %v2621
        %v2637 = vmul.f32 %v453, %v2615
        %v2638 = vmul.f32 %v454, %v2609
        %v2639 = vmul.f32 %v455, %v2627
        %v2640 = vmul.f32 %v452, %v2622
        %v2641 = vmul.f32 %v453, %v2616
        %v2642 = vmul.f32 %v454, %v2610
        %v2643 = vmul.f32 %v455, %v2628
        %v2644 = vmul.f32 %v452, %v2623
        %v2645 = vmul.f32 %v453, %v2617
        %v2646 = vmul.f32 %v454, %v2611
        %v2647 = vmul.f32 %v455, %v2629
        %v2648 = vmul.f32 %v452, %v2624
        %v2649 = vmul.f32 %v453, %v2618
        %v2650 = vmul.f32 %v454, %v2612
        %v2651 = vmul.f32 %v455, %v2630
        %v2652 = vmul.f32 %v452, %v2625
        %v2653 = vmul.f32 %v453, %v2619
        %v2654 = vmul.f32 %v454, %v2613
        %v2655 = vmul.f32 %v455, %v2631
        %2656 = vst [vmem:[#allocation2 + $0x180] sm:$0xff] %v2632
        %2657 = vst [vmem:[#allocation2 + $0x188] sm:$0xff] %v2633
        %2658 = vst [vmem:[#allocation2 + $0x190] sm:$0xff] %v2634
        %2659 = vst [vmem:[#allocation2 + $0x198] sm:$0xff] %v2635
        %2660 = vst [vmem:[#allocation2 + $0x1a0] sm:$0xff] %v2636
        %2661 = vst [vmem:[#allocation2 + $0x1a8] sm:$0xff] %v2637
        %2662 = vst [vmem:[#allocation2 + $0x1b0] sm:$0xff] %v2638
        %2663 = vst [vmem:[#allocation2 + $0x1b8] sm:$0xff] %v2639
        %2664 = vst [vmem:[#allocation2 + $0x1c0] sm:$0xff] %v2640
        %2665 = vst [vmem:[#allocation2 + $0x1c8] sm:$0xff] %v2641
        %2666 = vst [vmem:[#allocation2 + $0x1d0] sm:$0xff] %v2642
        %2667 = vst [vmem:[#allocation2 + $0x1d8] sm:$0xff] %v2643
        %2668 = vst [vmem:[#allocation2 + $0x1e0] sm:$0xff] %v2644
        %2669 = vst [vmem:[#allocation2 + $0x1e8] sm:$0xff] %v2645
        %2670 = vst [vmem:[#allocation2 + $0x1f0] sm:$0xff] %v2646
        %2671 = vst [vmem:[#allocation2 + $0x1f8] sm:$0xff] %v2647
        %2672 = vst [vmem:[#allocation2 + $0x200] sm:$0xff] %v2648
        %2673 = vst [vmem:[#allocation2 + $0x208] sm:$0xff] %v2649
        %2674 = vst [vmem:[#allocation2 + $0x210] sm:$0xff] %v2650
        %2675 = vst [vmem:[#allocation2 + $0x218] sm:$0xff] %v2651
        %2676 = vst [vmem:[#allocation2 + $0x220] sm:$0xff] %v2652
        %2677 = vst [vmem:[#allocation2 + $0x228] sm:$0xff] %v2653
        %2678 = vst [vmem:[#allocation2 + $0x230] sm:$0xff] %v2654
        %2679 = vst [vmem:[#allocation2 + $0x238] sm:$0xff] %v2655
        %2680 = vst [vmem:[#allocation2 + $0x240] sm:$0xff] %v285
        %2681 = vst [vmem:[#allocation2 + $0x248] sm:$0xff] %v286
        %2682 = vst [vmem:[#allocation2 + $0x250] sm:$0xff] %v287
        %2683 = vst [vmem:[#allocation2 + $0x258] sm:$0xff] %v288
        %2684 = vst [vmem:[#allocation2 + $0x260] sm:$0xff] %v289
        %2685 = vst [vmem:[#allocation2 + $0x268] sm:$0xff] %v290
        %2686 = vst [vmem:[#allocation2 + $0x270] sm:$0xff] %v291
        %2687 = vst [vmem:[#allocation2 + $0x278] sm:$0xff] %v292
        %2688 = vst [vmem:[#allocation2 + $0x280] sm:$0xff] %v293
        %2689 = vst [vmem:[#allocation2 + $0x288] sm:$0xff] %v294
        %2690 = vst [vmem:[#allocation2 + $0x290] sm:$0xff] %v295
        %2691 = vst [vmem:[#allocation2 + $0x298] sm:$0xff] %v296
        %2692 = vst [vmem:[#allocation2 + $0x2a0] sm:$0xff] %v297
        %2693 = vst [vmem:[#allocation2 + $0x2a8] sm:$0xff] %v298
        %2694 = vst [vmem:[#allocation2 + $0x2b0] sm:$0xff] %v299
        %2695 = vst [vmem:[#allocation2 + $0x2b8] sm:$0xff] %v300
        %v2696 = vld [vmem:[%s4] sm:$0xff]
        %v2697 = vld [vmem:[%s4 + $0x8] sm:$0xff]
        %v2698 = vld [vmem:[%s4 + $0x10] sm:$0xff]
        %v2699 = vld [vmem:[%s4 + $0x18] sm:$0xff]
        %v2700 = vld [vmem:[%s4 + $0x20] sm:$0xff]
        %v2701 = vld [vmem:[%s4 + $0x28] sm:$0xff]
        %v2702 = vld [vmem:[%s4 + $0x30] sm:$0xff]
        %v2703 = vld [vmem:[%s4 + $0x38] sm:$0xff]
        %v2704 = vld [vmem:[%s4 + $0x40] sm:$0xff]
        %v2705 = vld [vmem:[%s4 + $0x48] sm:$0xff]
        %v2706 = vld [vmem:[%s4 + $0x50] sm:$0xff]
        %v2707 = vld [vmem:[%s4 + $0x58] sm:$0xff]
        %v2708 = vld [vmem:[#allocation2] sm:$0xff]
        %v2709 = vld [vmem:[#allocation2 + $0x8] sm:$0xff]
        %v2710 = vld [vmem:[#allocation2 + $0x10] sm:$0xff]
        %v2711 = vld [vmem:[#allocation2 + $0x18] sm:$0xff]
        %v2712 = vld [vmem:[#allocation2 + $0x20] sm:$0xff]
        %v2713 = vld [vmem:[#allocation2 + $0x28] sm:$0xff]
        %v2714 = vld [vmem:[#allocation2 + $0x30] sm:$0xff]
        %v2715 = vld [vmem:[#allocation2 + $0x38] sm:$0xff]
        %v2716 = vld [vmem:[#allocation2 + $0x40] sm:$0xff]
        %v2717 = vld [vmem:[#allocation2 + $0x48] sm:$0xff]
        %v2718 = vld [vmem:[#allocation2 + $0x50] sm:$0xff]
        %v2719 = vld [vmem:[#allocation2 + $0x58] sm:$0xff]
        %v2720 = vld [vmem:[#allocation2 + $0x60] sm:$0xff]
        %v2721 = vld [vmem:[#allocation2 + $0x68] sm:$0xff]
        %v2722 = vld [vmem:[#allocation2 + $0x70] sm:$0xff]
        %v2723 = vld [vmem:[#allocation2 + $0x78] sm:$0xff]
        %v2724 = vld [vmem:[#allocation2 + $0x80] sm:$0xff]
        %v2725 = vld [vmem:[#allocation2 + $0x88] sm:$0xff]
        %v2726 = vld [vmem:[#allocation2 + $0x90] sm:$0xff]
        %v2727 = vld [vmem:[#allocation2 + $0x98] sm:$0xff]
        %v2728 = vld [vmem:[#allocation2 + $0xa0] sm:$0xff]
        %v2729 = vld [vmem:[#allocation2 + $0xa8] sm:$0xff]
        %v2730 = vld [vmem:[#allocation2 + $0xb0] sm:$0xff]
        %v2731 = vld [vmem:[#allocation2 + $0xb8] sm:$0xff]
        %v2732 = vld [vmem:[#allocation2 + $0xc0] sm:$0xff]
        %v2733 = vld [vmem:[#allocation2 + $0xc8] sm:$0xff]
        %v2734 = vld [vmem:[#allocation2 + $0xd0] sm:$0xff]
        %v2735 = vld [vmem:[#allocation2 + $0xd8] sm:$0xff]
        %v2736 = vld [vmem:[#allocation2 + $0xe0] sm:$0xff]
        %v2737 = vld [vmem:[#allocation2 + $0xe8] sm:$0xff]
        %v2738 = vld [vmem:[#allocation2 + $0xf0] sm:$0xff]
        %v2739 = vld [vmem:[#allocation2 + $0xf8] sm:$0xff]
        %v2740 = vld [vmem:[#allocation2 + $0x100] sm:$0xff]
        %v2741 = vld [vmem:[#allocation2 + $0x108] sm:$0xff]
        %v2742 = vld [vmem:[#allocation2 + $0x110] sm:$0xff]
        %v2743 = vld [vmem:[#allocation2 + $0x118] sm:$0xff]
        %v2744 = vld [vmem:[#allocation2 + $0x120] sm:$0xff]
        %v2745 = vld [vmem:[#allocation2 + $0x128] sm:$0xff]
        %v2746 = vld [vmem:[#allocation2 + $0x130] sm:$0xff]
        %v2747 = vld [vmem:[#allocation2 + $0x138] sm:$0xff]
        %v2748 = vld [vmem:[#allocation2 + $0x140] sm:$0xff]
        %v2749 = vld [vmem:[#allocation2 + $0x148] sm:$0xff]
        %v2750 = vld [vmem:[#allocation2 + $0x150] sm:$0xff]
        %v2751 = vld [vmem:[#allocation2 + $0x158] sm:$0xff]
        %v2752 = vld [vmem:[#allocation2 + $0x160] sm:$0xff]
        %v2753 = vld [vmem:[#allocation2 + $0x168] sm:$0xff]
        %v2754 = vld [vmem:[#allocation2 + $0x170] sm:$0xff]
        %v2755 = vld [vmem:[#allocation2 + $0x178] sm:$0xff]
        %v2756 = vld [vmem:[#allocation2 + $0x180] sm:$0xff]
        %v2757 = vld [vmem:[#allocation2 + $0x188] sm:$0xff]
        %v2758 = vld [vmem:[#allocation2 + $0x190] sm:$0xff]
        %v2759 = vld [vmem:[#allocation2 + $0x198] sm:$0xff]
        %v2760 = vld [vmem:[#allocation2 + $0x1a0] sm:$0xff]
        %v2761 = vld [vmem:[#allocation2 + $0x1a8] sm:$0xff]
        %v2762 = vld [vmem:[#allocation2 + $0x1b0] sm:$0xff]
        %v2763 = vld [vmem:[#allocation2 + $0x1b8] sm:$0xff]
        %v2764 = vld [vmem:[#allocation2 + $0x1c0] sm:$0xff]
        %v2765 = vld [vmem:[#allocation2 + $0x1c8] sm:$0xff]
        %v2766 = vld [vmem:[#allocation2 + $0x1d0] sm:$0xff]
        %v2767 = vld [vmem:[#allocation2 + $0x1d8] sm:$0xff]
        %v2768 = vld [vmem:[#allocation2 + $0x1e0] sm:$0xff]
        %v2769 = vld [vmem:[#allocation2 + $0x1e8] sm:$0xff]
        %v2770 = vld [vmem:[#allocation2 + $0x1f0] sm:$0xff]
        %v2771 = vld [vmem:[#allocation2 + $0x1f8] sm:$0xff]
        %v2772 = vld [vmem:[#allocation2 + $0x200] sm:$0xff]
        %v2773 = vld [vmem:[#allocation2 + $0x208] sm:$0xff]
        %v2774 = vld [vmem:[#allocation2 + $0x210] sm:$0xff]
        %v2775 = vld [vmem:[#allocation2 + $0x218] sm:$0xff]
        %v2776 = vld [vmem:[#allocation2 + $0x220] sm:$0xff]
        %v2777 = vld [vmem:[#allocation2 + $0x228] sm:$0xff]
        %v2778 = vld [vmem:[#allocation2 + $0x230] sm:$0xff]
        %v2779 = vld [vmem:[#allocation2 + $0x238] sm:$0xff]
        %v2780 = vld [vmem:[#allocation2 + $0x240] sm:$0xff]
        %v2781 = vld [vmem:[#allocation2 + $0x248] sm:$0xff]
        %v2782 = vld [vmem:[#allocation2 + $0x250] sm:$0xff]
        %v2783 = vld [vmem:[#allocation2 + $0x258] sm:$0xff]
        %v2784 = vld [vmem:[#allocation2 + $0x260] sm:$0xff]
        %v2785 = vld [vmem:[#allocation2 + $0x268] sm:$0xff]
        %v2786 = vld [vmem:[#allocation2 + $0x270] sm:$0xff]
        %v2787 = vld [vmem:[#allocation2 + $0x278] sm:$0xff]
        %v2788 = vld [vmem:[#allocation2 + $0x280] sm:$0xff]
        %v2789 = vld [vmem:[#allocation2 + $0x288] sm:$0xff]
        %v2790 = vld [vmem:[#allocation2 + $0x290] sm:$0xff]
        %v2791 = vld [vmem:[#allocation2 + $0x298] sm:$0xff]
        %v2792 = vld [vmem:[#allocation2 + $0x2a0] sm:$0xff]
        %v2793 = vld [vmem:[#allocation2 + $0x2a8] sm:$0xff]
        %v2794 = vld [vmem:[#allocation2 + $0x2b0] sm:$0xff]
        %v2795 = vld [vmem:[#allocation2 + $0x2b8] sm:$0xff]
        %2796 = vset.pattern.permute.xlu0 12
        %2797 = vperm.xlu0 %2796, %v301
        %v2798 = vpop.permute.xlu0 %2797
        %2800 = vset.pattern.permute.xlu0 12
        %2801 = vperm.xlu0 %2800, %v302
        %v2802 = vpop.permute.xlu0 %2801
        %2804 = vset.pattern.permute.xlu0 12
        %2805 = vperm.xlu0 %2804, %v303
        %v2806 = vpop.permute.xlu0 %2805
        %2808 = vset.pattern.permute.xlu0 12
        %2809 = vperm.xlu0 %2808, %v304
        %v2810 = vpop.permute.xlu0 %2809
        %2812 = vset.pattern.permute.xlu0 12
        %2813 = vperm.xlu0 %2812, %v305
        %v2814 = vpop.permute.xlu0 %2813
        %2816 = vset.pattern.permute.xlu0 12
        %2817 = vperm.xlu0 %2816, %v306
        %v2818 = vpop.permute.xlu0 %2817
        %vm2820 = vcmask 392192
        %v2822 = vsel %vm2820, %v2697, 0
        %v2825 = vsel %vm2820, %v2699, 0
        %v2828 = vsel %vm2820, %v2701, 0
        %v2831 = vsel %vm2820, %v2703, 0
        %v2834 = vsel %vm2820, %v2705, 0
        %v2837 = vsel %vm2820, %v2707, 0
        %2839 = vmatprep.subr.mxu0 %v2709
        %2840 = vmatpush1.msra.mxu0 %v2708
        %2841 = vmatprep.subr.mxu0 %v2713
        %2842 = vmatpush1.msra.mxu0 %v2712
        %2843 = vmatprep.subr.mxu0 %v2717
        %2844 = vmatpush1.msra.mxu0 %v2716
        %2845 = vmatprep.subr.mxu0 %v2721
        %2846 = vmatpush1.msra.mxu0 %v2720
        %2847 = vmatprep.subr.mxu0 %v2725
        %2848 = vmatpush1.msra.mxu0 %v2724
        %2849 = vmatprep.subr.mxu0 %v2729
        %2850 = vmatpush1.msra.mxu0 %v2728
        %2851 = vmatprep.subr.mxu0 %v2733
        %2852 = vmatpush1.msra.mxu0 %v2732
        %2853 = vmatprep.subr.mxu0 %v2737
        %2854 = vmatpush1.msra.mxu0 %v2736
        %2855 = vmatprep.subr.mxu0 %v2741
        %2856 = vmatpush1.msra.mxu0 %v2740
        %2857 = vmatprep.subr.mxu0 %v2745
        %2858 = vmatpush1.msra.mxu0 %v2744
        %2859 = vmatprep.subr.mxu0 %v2749
        %2860 = vmatpush1.msra.mxu0 %v2748
        %2861 = vmatprep.subr.mxu0 %v2753
        %2862 = vmatpush1.msra.mxu0 %v2752
        %2863 = vmatprep.subr.mxu0 %v2757
        %2864 = vmatpush1.msra.mxu0 %v2756
        %2865 = vmatprep.subr.mxu0 %v2761
        %2866 = vmatpush1.msra.mxu0 %v2760
        %2867 = vmatprep.subr.mxu0 %v2765
        %2868 = vmatpush1.msra.mxu0 %v2764
        %2869 = vmatprep.subr.mxu0 %v2769
        %2870 = vmatpush1.msra.mxu0 %v2768
        %2871 = vmatprep.subr.mxu0 %v2773
        %2872 = vmatpush1.msra.mxu0 %v2772
        %2873 = vmatprep.subr.mxu0 %v2777
        %2874 = vmatpush1.msra.mxu0 %v2776
        %2875 = vmatprep.subr.mxu0 %v2781
        %2876 = vmatpush1.msra.mxu0 %v2780
        %2877 = vmatprep.subr.mxu0 %v2785
        %2878 = vmatpush1.msra.mxu0 %v2784
        %2879 = vmatprep.subr.mxu0 %v2789
        %2880 = vmatpush1.msra.mxu0 %v2788
        %2881 = vmatprep.subr.mxu0 %v2793
        %2882 = vmatpush1.msra.mxu0 %v2792
        %2883 = vmatprep.subr.mxu0 0.0
        %2884 = vmatpush1.msra.mxu0 0.0
        %2885 = vmatprep.subr.mxu0 0.0
        %2886 = vmatpush1.msra.mxu0 0.0
        %2887 = vmatprep.subr.mxu0 0.0
        %2888 = vmatpush1.msra.mxu0 0.0
        %2889 = vmatprep.subr.mxu0 0.0
        %2890 = vmatpush1.msra.mxu0 0.0
        %2891 = vmatprep.subr.mxu0 0.0
        %2892 = vmatpush1.msra.mxu0 0.0
        %2893 = vmatprep.subr.mxu0 0.0
        %2894 = vmatpush1.msra.mxu0 0.0
        %2895 = vmatprep.subr.mxu0 0.0
        %2896 = vmatpush1.msra.mxu0 0.0
        %2897 = vmatprep.subr.mxu0 0.0
        %2898 = vmatpush1.msra.mxu0 0.0
        %2899 = vmatprep.subr.mxu0 0.0
        %2900 = vmatpush1.msra.mxu0 0.0
        %2901 = vmatprep.subr.mxu0 0.0
        %2902 = vmatpush1.msra.mxu0 0.0
        %2903 = vmatprep.mubr.f32.mxu0 %v2822
        %2904 = vmatmul.mubr.f32.gmra.mrb[0].mxu0 %v2696
        %v2905 = vpop.f32.mrb[0].mxu0
        %v2906 = vadd.f32 %v2798, %v2905
        %v2907 = vpop.f32.mrb[0].mxu0
        %v2908 = vadd.f32 %v2798, %v2907
        %2909 = vmatprep.mubr.f32.mxu0 %v2825
        %2910 = vmatmul.mubr.f32.gmra.mrb[0].mxu0 %v2698
        %v2911 = vpop.f32.mrb[0].mxu0
        %v2912 = vadd.f32 %v2802, %v2911
        %v2913 = vpop.f32.mrb[0].mxu0
        %v2914 = vadd.f32 %v2802, %v2913
        %2915 = vmatprep.mubr.f32.mxu0 %v2828
        %2916 = vmatmul.mubr.f32.gmra.mrb[0].mxu0 %v2700
        %v2917 = vpop.f32.mrb[0].mxu0
        %v2918 = vadd.f32 %v2806, %v2917
        %v2919 = vpop.f32.mrb[0].mxu0
        %v2920 = vadd.f32 %v2806, %v2919
        %2921 = vmatprep.mubr.f32.mxu0 %v2831
        %2922 = vmatmul.mubr.f32.gmra.mrb[0].mxu0 %v2702
        %v2923 = vpop.f32.mrb[0].mxu0
        %v2924 = vadd.f32 %v2810, %v2923
        %v2925 = vpop.f32.mrb[0].mxu0
        %v2926 = vadd.f32 %v2810, %v2925
        %2927 = vmatprep.mubr.f32.mxu0 %v2834
        %2928 = vmatmul.mubr.f32.gmra.mrb[0].mxu0 %v2704
        %v2929 = vpop.f32.mrb[0].mxu0
        %v2930 = vadd.f32 %v2814, %v2929
        %v2931 = vpop.f32.mrb[0].mxu0
        %v2932 = vadd.f32 %v2814, %v2931
        %2933 = vmatprep.mubr.f32.mxu0 %v2837
        %2934 = vmatmul.mubr.f32.gmra.mrb[0].mxu0 %v2706
        %v2935 = vpop.f32.mrb[0].mxu0
        %v2936 = vadd.f32 %v2818, %v2935
        %v2937 = vpop.f32.mrb[0].mxu0
        %v2938 = vadd.f32 %v2818, %v2937
        %2939 = vdwg.mxu0
        %2940 = vmatprep.subr.mxu0 %v2711
        %2941 = vmatpush1.msra.mxu0 %v2710
        %2942 = vmatprep.subr.mxu0 %v2715
        %2943 = vmatpush1.msra.mxu0 %v2714
        %2944 = vmatprep.subr.mxu0 %v2719
        %2945 = vmatpush1.msra.mxu0 %v2718
        %2946 = vmatprep.subr.mxu0 %v2723
        %2947 = vmatpush1.msra.mxu0 %v2722
        %2948 = vmatprep.subr.mxu0 %v2727
        %2949 = vmatpush1.msra.mxu0 %v2726
        %2950 = vmatprep.subr.mxu0 %v2731
        %2951 = vmatpush1.msra.mxu0 %v2730
        %2952 = vmatprep.subr.mxu0 %v2735
        %2953 = vmatpush1.msra.mxu0 %v2734
        %2954 = vmatprep.subr.mxu0 %v2739
        %2955 = vmatpush1.msra.mxu0 %v2738
        %2956 = vmatprep.subr.mxu0 %v2743
        %2957 = vmatpush1.msra.mxu0 %v2742
        %2958 = vmatprep.subr.mxu0 %v2747
        %2959 = vmatpush1.msra.mxu0 %v2746
        %2960 = vmatprep.subr.mxu0 %v2751
        %2961 = vmatpush1.msra.mxu0 %v2750
        %2962 = vmatprep.subr.mxu0 %v2755
        %2963 = vmatpush1.msra.mxu0 %v2754
        %2964 = vmatprep.subr.mxu0 %v2759
        %2965 = vmatpush1.msra.mxu0 %v2758
        %2966 = vmatprep.subr.mxu0 %v2763
        %2967 = vmatpush1.msra.mxu0 %v2762
        %2968 = vmatprep.subr.mxu0 %v2767
        %2969 = vmatpush1.msra.mxu0 %v2766
        %2970 = vmatprep.subr.mxu0 %v2771
        %2971 = vmatpush1.msra.mxu0 %v2770
        %2972 = vmatprep.subr.mxu0 %v2775
        %2973 = vmatpush1.msra.mxu0 %v2774
        %2974 = vmatprep.subr.mxu0 %v2779
        %2975 = vmatpush1.msra.mxu0 %v2778
        %2976 = vmatprep.subr.mxu0 %v2783
        %2977 = vmatpush1.msra.mxu0 %v2782
        %2978 = vmatprep.subr.mxu0 %v2787
        %2979 = vmatpush1.msra.mxu0 %v2786
        %2980 = vmatprep.subr.mxu0 %v2791
        %2981 = vmatpush1.msra.mxu0 %v2790
        %2982 = vmatprep.subr.mxu0 %v2795
        %2983 = vmatpush1.msra.mxu0 %v2794
        %2984 = vmatprep.subr.mxu0 0.0
        %2985 = vmatpush1.msra.mxu0 0.0
        %2986 = vmatprep.subr.mxu0 0.0
        %2987 = vmatpush1.msra.mxu0 0.0
        %2988 = vmatprep.subr.mxu0 0.0
        %2989 = vmatpush1.msra.mxu0 0.0
        %2990 = vmatprep.subr.mxu0 0.0
        %2991 = vmatpush1.msra.mxu0 0.0
        %2992 = vmatprep.subr.mxu0 0.0
        %2993 = vmatpush1.msra.mxu0 0.0
        %2994 = vmatprep.subr.mxu0 0.0
        %2995 = vmatpush1.msra.mxu0 0.0
        %2996 = vmatprep.subr.mxu0 0.0
        %2997 = vmatpush1.msra.mxu0 0.0
        %2998 = vmatprep.subr.mxu0 0.0
        %2999 = vmatpush1.msra.mxu0 0.0
        %3000 = vmatprep.subr.mxu0 0.0
        %3001 = vmatpush1.msra.mxu0 0.0
        %3002 = vmatprep.subr.mxu0 0.0
        %3003 = vmatpush1.msra.mxu0 0.0
        %3004 = vmatprep.mubr.f32.mxu0 %v2822
        %3005 = vmatmul.mubr.f32.gmra.mrb[0].mxu0 %v2696
        %v3006 = vpop.f32.mrb[0].mxu0
        %v3007 = vadd.f32 %v2798, %v3006
        %v3008 = vpop.f32.mrb[0].mxu0
        %v3009 = vadd.f32 %v2798, %v3008
        %3010 = vmatprep.mubr.f32.mxu0 %v2825
        %3011 = vmatmul.mubr.f32.gmra.mrb[0].mxu0 %v2698
        %v3012 = vpop.f32.mrb[0].mxu0
        %v3013 = vadd.f32 %v2802, %v3012
        %v3014 = vpop.f32.mrb[0].mxu0
        %v3015 = vadd.f32 %v2802, %v3014
        %3016 = vmatprep.mubr.f32.mxu0 %v2828
        %3017 = vmatmul.mubr.f32.gmra.mrb[0].mxu0 %v2700
        %v3018 = vpop.f32.mrb[0].mxu0
        %v3019 = vadd.f32 %v2806, %v3018
        %v3020 = vpop.f32.mrb[0].mxu0
        %v3021 = vadd.f32 %v2806, %v3020
        %3022 = vmatprep.mubr.f32.mxu0 %v2831
        %3023 = vmatmul.mubr.f32.gmra.mrb[0].mxu0 %v2702
        %v3024 = vpop.f32.mrb[0].mxu0
        %v3025 = vadd.f32 %v2810, %v3024
        %v3026 = vpop.f32.mrb[0].mxu0
        %v3027 = vadd.f32 %v2810, %v3026
        %3028 = vmatprep.mubr.f32.mxu0 %v2834
        %3029 = vmatmul.mubr.f32.gmra.mrb[0].mxu0 %v2704
        %v3030 = vpop.f32.mrb[0].mxu0
        %v3031 = vadd.f32 %v2814, %v3030
        %v3032 = vpop.f32.mrb[0].mxu0
        %v3033 = vadd.f32 %v2814, %v3032
        %3034 = vmatprep.mubr.f32.mxu0 %v2837
        %3035 = vmatmul.mubr.f32.gmra.mrb[0].mxu0 %v2706
        %v3036 = vpop.f32.mrb[0].mxu0
        %v3037 = vadd.f32 %v2818, %v3036
        %v3038 = vpop.f32.mrb[0].mxu0
        %v3039 = vadd.f32 %v2818, %v3038
        %3040 = vdwg.mxu0
        %3041 = vst [vmem:[%s284] sm:$0xff] %v2906
        %3042 = vst [vmem:[%s284 + $0x8] sm:$0xff] %v2908
        %3043 = vst [vmem:[%s284 + $0x10] sm:$0xff] %v3007
        %3044 = vst [vmem:[%s284 + $0x18] sm:$0xff] %v3009
        %3045 = vst [vmem:[%s284 + $0x20] sm:$0xff] %v2912
        %3046 = vst [vmem:[%s284 + $0x28] sm:$0xff] %v2914
        %3047 = vst [vmem:[%s284 + $0x30] sm:$0xff] %v3013
        %3048 = vst [vmem:[%s284 + $0x38] sm:$0xff] %v3015
        %3049 = vst [vmem:[%s284 + $0x40] sm:$0xff] %v2918
        %3050 = vst [vmem:[%s284 + $0x48] sm:$0xff] %v2920
        %3051 = vst [vmem:[%s284 + $0x50] sm:$0xff] %v3019
        %3052 = vst [vmem:[%s284 + $0x58] sm:$0xff] %v3021
        %3053 = vst [vmem:[%s284 + $0x60] sm:$0xff] %v2924
        %3054 = vst [vmem:[%s284 + $0x68] sm:$0xff] %v2926
        %3055 = vst [vmem:[%s284 + $0x70] sm:$0xff] %v3025
        %3056 = vst [vmem:[%s284 + $0x78] sm:$0xff] %v3027
        %3057 = vst [vmem:[%s284 + $0x80] sm:$0xff] %v2930
        %3058 = vst [vmem:[%s284 + $0x88] sm:$0xff] %v2932
        %3059 = vst [vmem:[%s284 + $0x90] sm:$0xff] %v3031
        %3060 = vst [vmem:[%s284 + $0x98] sm:$0xff] %v3033
        %3061 = vst [vmem:[%s284 + $0xa0] sm:$0xff] %v2936
        %3062 = vst [vmem:[%s284 + $0xa8] sm:$0xff] %v2938
        %3063 = vst [vmem:[%s284 + $0xb0] sm:$0xff] %v3037
        %3064 = vst [vmem:[%s284 + $0xb8] sm:$0xff] %v3039
        %s3065 = sand.u32 %s163, 1
        %s3066 = scalar_lea.sflag [#allocation5], %s3065
        %s3067 = sand.u32 %s163, 1
        %s3068 = smul.addr %s3067, 192
        %s3069 = scalar_lea.vmem [#allocation8], %s3068
        // Predicated region
        $region53: #{tpu_custom_call.1} parent=43 // pred_check
          %p3070 = pneg %p173
        $region54: #{tpu_custom_call.1} parent=43 // pred_check_branch
          %3072 = sbr.rel (%p3070) target = $region56
        $region55: #{tpu_custom_call.1} parent=43 // pred_region
          %s3074 = ssub.s32 3072, 3072
          %3075 = vsyncadd %s3066, %s3074
          %s3076 = smul.addr %s24, 24
          %s3077 = smul.addr %s3076, 128
          %s3078 = scalar_lea.hbm %s6, %s3077
          %s3079 = sshll.u32 %s3069, 4
          %s3080 = int_to_ptr.vmem [resolvable:$true] %s3079
          %3085 = dma.vmem_to_hbm [thread:$0]  %s3080, 3072, %s3078, %s3066, 512, 512, 32
        $region56: #{tpu_custom_call.1} parent=43 // pred_fallthru
          _
      $region44: #{tpu_custom_call.1} parent=5 // pred_fallthru
        _
      %p3086 = scmp.le.s32.totalorder 2, %s19
      // Predicated region
      $region57: #{tpu_custom_call.1} parent=5 // pred_check
        %p3087 = pneg %p3086
      $region58: #{tpu_custom_call.1} parent=5 // pred_check_branch
        %3089 = sbr.rel (%p3087) target = $region60
      $region59: #{tpu_custom_call.1} parent=5 // pred_region
        %s3090 = ssub.s32 %s19, 2
        // Predicated region
        $region61: #{tpu_custom_call.1} parent=59 // pred_check
          %p3091 = pneg %p179
        $region62: #{tpu_custom_call.1} parent=59 // pred_check_branch
          %3093 = sbr.rel (%p3091) target = $region64
        $region63: #{tpu_custom_call.1} parent=59 // pred_region
          %s3094 = sand.u32 %s164, 1
          %s3095 = scalar_lea.sflag [#allocation5], %s3094
          %s3096 = sand.u32 %s164, 1
          %s3097 = smul.addr %s3096, 192
          %s3098 = scalar_lea.vmem [#allocation8], %s3097
          %3099 = dma.done %s3095, 3072
        $region64: #{tpu_custom_call.1} parent=59 // pred_fallthru
          _
      $region60: #{tpu_custom_call.1} parent=5 // pred_fallthru
        _
    $region6: #{tpu_custom_call.1} parent=1 // loop_footer
      %s23 = sadd.s32 1, %s19
    $region7: #{tpu_custom_call.1} parent=1 // loop_footer_branch
      %18 = sbr.rel target = $region3
    $region8: #{tpu_custom_call.1} parent=1 // loop_exit
      _
    %3100 = vsyncpa [#allocation4], 1
    %s3101 = scalar_lea.sflag [#allocation4], 1
    %3102 = vsyncpa %s3101, 1
    %3103 = vsyncpa [#allocation7], 1
    %3104 = vsyncpa [#allocation5], 1
    %s3105 = scalar_lea.sflag [#allocation5], 1
    %3106 = vsyncpa %s3105, 1

</llo_original>
